<compile_context>
chip_gen: v6e
topology: v6e:2x2x1
jax: 0.10.0
libtpu: 0.0.40
codegen_flags: <defaults>
</compile_context>

<pallas_src>
import functools

import numpy as np
import jax
import jax.numpy as jnp
from jax import lax
from jax.experimental import pallas as pl
from jax.experimental.pallas import tpu as pltpu

_EPS = 1e-5


# ---------------------------------------------------------------------------
# Pallas kernel: fused Conv3d(3x3x3, stride s, pad 1) + BN + (residual) + (ReLU)
# ---------------------------------------------------------------------------
def _conv_bn_kernel(x_ref, sel_ref, b_ref, scale_ref, bias_ref, *rest,
                    relu, has_res):
    """One batch element per grid step.

    x_ref     : (C_in*D, H*W)          lane-dense view of the input volume
    sel_ref   : (9, H*W, Ho*Wo)        per-(kh,kw) H/W gather matrices
    b_ref     : (9, C_out*Do, C_in*D)  conv-weight x depth-gather matrices
    scale_ref : (C_out*Do, 1)          folded-BN scale (repeated over Do)
    bias_ref  : (C_out*Do, 1)          folded-BN bias
    rest      : [res_ref,] o_ref ;  o_ref: (C_out*Do, Ho*Wo)
    """
    if has_res:
        res_ref, o_ref = rest
    else:
        (o_ref,) = rest

    x2d = x_ref[...].astype(jnp.float32)
    acc = jnp.zeros(o_ref.shape, jnp.float32)
    for j in range(9):                       # static unroll over (kh, kw) taps
        p = jnp.dot(x2d, sel_ref[j], preferred_element_type=jnp.float32)
        acc = acc + jnp.dot(b_ref[j], p, preferred_element_type=jnp.float32)

    out = acc * scale_ref[...] + bias_ref[...]
    if has_res:
        out = out + res_ref[...].astype(jnp.float32)
    if relu:
        out = jnp.maximum(out, 0.0)
    o_ref[...] = out.astype(o_ref.dtype)


# ---------------------------------------------------------------------------
# Parameter-setup glue (tiny numpy): gather / weight matrices for the conv.
# ---------------------------------------------------------------------------
def _sel_matrices(H, W, s):
    """Sel[kh*3+kw][h*W+w, ho*Wo+wo] = 1  iff  h==s*ho+kh-1 and w==s*wo+kw-1."""
    Ho = (H - 1) // s + 1
    Wo = (W - 1) // s + 1
    sel = np.zeros((9, H * W, Ho * Wo), np.float32)
    for kh in range(3):
        for kw in range(3):
            j = kh * 3 + kw
            for ho in range(Ho):
                h = s * ho + kh - 1
                if not 0 <= h < H:
                    continue
                for wo in range(Wo):
                    w = s * wo + kw - 1
                    if not 0 <= w < W:
                        continue
                    sel[j, h * W + w, ho * Wo + wo] = 1.0
    return sel


def _weight_matrices(wt, D, s):
    """B[kh*3+kw][co*Do+do, ci*D+d] = wt[co,ci, d-s*do+1, kh, kw] within band."""
    wt = np.asarray(wt, np.float32)
    C_out, C_in = wt.shape[:2]
    Do = (D - 1) // s + 1
    B = np.zeros((9, C_out * Do, C_in * D), np.float32)
    for kh in range(3):
        for kw in range(3):
            j = kh * 3 + kw
            for do in range(Do):
                for kd in range(3):
                    d = s * do + kd - 1
                    if not 0 <= d < D:
                        continue
                    for co in range(C_out):
                        for ci in range(C_in):
                            B[j, co * Do + do, ci * D + d] += wt[co, ci, kd, kh, kw]
    return B


# ---------------------------------------------------------------------------
# Per-layer wrapper: one pallas_call = Conv3d + BN + (residual) + (ReLU)
# ---------------------------------------------------------------------------
def conv3d_bn_act(x, w, bn, *, stride=1, relu=False, residual=None):
    Bn, C_in, D, H, W = x.shape
    C_out = int(w.shape[0])
    s = int(stride)
    Do, Ho, Wo = (D - 1) // s + 1, (H - 1) // s + 1, (W - 1) // s + 1
    HW, No = H * W, Ho * Wo
    CinD, CoDo = C_in * D, C_out * Do

    sel = jnp.asarray(_sel_matrices(H, W, s))
    bmat = jnp.asarray(_weight_matrices(w, D, s))

    gamma, beta, mean, var = (np.asarray(t, np.float32) for t in bn)
    sc = gamma / np.sqrt(var + _EPS)
    bi = beta - mean * sc
    scale = jnp.asarray(np.repeat(sc, Do)[:, None].astype(np.float32))
    bias = jnp.asarray(np.repeat(bi, Do)[:, None].astype(np.float32))

    x2d = x.reshape(Bn, CinD, HW)            # free row-major view, no copy
    args = [x2d, sel, bmat, scale, bias]
    in_specs = [
        pl.BlockSpec((None, CinD, HW), lambda b: (b, 0, 0)),
        pl.BlockSpec((9, HW, No), lambda b: (0, 0, 0)),
        pl.BlockSpec((9, CoDo, CinD), lambda b: (0, 0, 0)),
        pl.BlockSpec((CoDo, 1), lambda b: (0, 0)),
        pl.BlockSpec((CoDo, 1), lambda b: (0, 0)),
    ]
    if residual is not None:
        args.append(residual.reshape(Bn, CoDo, No))
        in_specs.append(pl.BlockSpec((None, CoDo, No), lambda b: (b, 0, 0)))

    kernel = functools.partial(_conv_bn_kernel, relu=relu,
                               has_res=residual is not None)
    out = pl.pallas_call(
        kernel,
        out_shape=jax.ShapeDtypeStruct((Bn, CoDo, No), jnp.float32),
        grid=(Bn,),
        in_specs=in_specs,
        out_specs=pl.BlockSpec((None, CoDo, No), lambda b: (b, 0, 0)),
        compiler_params=pltpu.CompilerParams(
            dimension_semantics=("parallel",)),
    )(*args)
    return out.reshape(Bn, C_out, Do, Ho, Wo)


# ---------------------------------------------------------------------------
# CustomResNet3D forward (list of per-stage feature maps, as in PyTorch).
# ---------------------------------------------------------------------------
def custom_resnet3d_forward(x, params):
    # TODO(synk): the optional F.interpolate(trilinear) resize (checksize=True)
    # and torch.utils.checkpoint path are not translated (no inference effect).
    feats = []
    h = x
    for stage in params["stages"]:
        for blk in stage:
            s = blk["stride"]
            if blk["downsample"] is not None:
                dw, dbn = blk["downsample"]
                identity = conv3d_bn_act(h, dw, dbn, stride=s, relu=False)
            else:
                identity = h
            t = conv3d_bn_act(h, blk["conv1_w"], blk["bn1"], stride=s, relu=True)
            h = conv3d_bn_act(t, blk["conv2_w"], blk["bn2"], stride=1,
                              relu=True, residual=identity)
        feats.append(h)
    return feats


# ---------------------------------------------------------------------------
# Parameter construction (deterministic) and pure-JAX reference.
# ---------------------------------------------------------------------------
def _make_bn(key, c):
    k1, k2, k3, k4 = jax.random.split(key, 4)
    gamma = 1.0 + 0.1 * jax.random.normal(k1, (c,), jnp.float32)
    beta = 0.1 * jax.random.normal(k2, (c,), jnp.float32)
    mean = 0.1 * jax.random.normal(k3, (c,), jnp.float32)
    var = 0.5 + 0.3 * jnp.abs(jax.random.normal(k4, (c,), jnp.float32))
    return (gamma, beta, mean, var)


def _make_conv(key, c_out, c_in):
    std = (2.0 / (27.0 * c_in)) ** 0.5
    return std * jax.random.normal(key, (c_out, c_in, 3, 3, 3), jnp.float32)


def make_params(key, num_c_in=4, num_channels=(8, 16, 32),
                num_layer=(2, 2, 2), stride=(2, 2, 2)):
    stages = []
    cur = num_c_in
    for i in range(len(num_layer)):
        c_out = num_channels[i]
        blocks = []
        for j in range(num_layer[i]):
            key, k1, k2, k3, k4, k5, k6 = jax.random.split(key, 7)
            s = stride[i] if j == 0 else 1
            c_in = cur if j == 0 else c_out
            blocks.append({
                "stride": s,
                "conv1_w": _make_conv(k1, c_out, c_in),
                "bn1": _make_bn(k2, c_out),
                "conv2_w": _make_conv(k3, c_out, c_out),
                "bn2": _make_bn(k4, c_out),
                "downsample": ((_make_conv(k5, c_out, c_in), _make_bn(k6, c_out))
                               if j == 0 else None),
            })
        stages.append(blocks)
        cur = c_out
    return {"stages": stages}


def _conv3d_ref(x, w, s):
    return lax.conv_general_dilated(
        x, w, window_strides=(s, s, s), padding=((1, 1), (1, 1), (1, 1)),
        dimension_numbers=("NCDHW", "OIDHW", "NCDHW"),
        precision=lax.Precision.HIGHEST)


def _bn_ref(x, bn):
    g, b, m, v = bn
    sc = g / jnp.sqrt(v + _EPS)
    bi = b - m * sc
    return x * sc[None, :, None, None, None] + bi[None, :, None, None, None]


def ref_forward(x, params):
    feats = []
    h = x
    for stage in params["stages"]:
        for blk in stage:
            s = blk["stride"]
            if blk["downsample"] is not None:
                dw, dbn = blk["downsample"]
                identity = _bn_ref(_conv3d_ref(h, dw, s), dbn)
            else:
                identity = h
            t = jax.nn.relu(_bn_ref(_conv3d_ref(h, blk["conv1_w"], s), blk["bn1"]))
            t = _bn_ref(_conv3d_ref(t, blk["conv2_w"], 1), blk["bn2"])
            h = jax.nn.relu(t + identity)
        feats.append(h)
    return feats


if __name__ == "__main__":
    key = jax.random.PRNGKey(0)
    kp, kx = jax.random.split(key)
    params = make_params(kp)

    B, C, D, H, W = 2, 4, 16, 16, 16
    x = jax.random.normal(kx, (B, C, D, H, W), jnp.float32)

    feats = custom_resnet3d_forward(x, params)
    feats = [jax.block_until_ready(f) for f in feats]

    refs = ref_forward(x, params)
    for i, (f, r) in enumerate(zip(feats, refs)):
        if f.shape != r.shape:
            raise AssertionError(f"stage {i}: shape {f.shape} vs ref {r.shape}")
        if not bool(jnp.allclose(f, r, atol=1e-2, rtol=1e-2)):
            err = float(jnp.max(jnp.abs(f - r)))
            raise AssertionError(f"stage {i}: mismatch vs reference, "
                                 f"max abs err={err}")
    print("KERNEL_OK")
</pallas_src>

<mosaic_0001>
module attributes {stable_mosaic.version = 11 : i64} {
  func.func @_conv_bn_kernel(%arg0: i32, %arg1: memref<1x64x256xf32, #tpu.memory_space<vmem>>, %arg2: memref<9x256x64xf32, #tpu.memory_space<vmem>>, %arg3: memref<9x64x64xf32, #tpu.memory_space<vmem>>, %arg4: memref<64x1xf32, #tpu.memory_space<vmem>>, %arg5: memref<64x1xf32, #tpu.memory_space<vmem>>, %arg6: memref<1x64x64xf32, #tpu.memory_space<vmem>>) attributes {dimension_semantics = [#tpu.dimension_semantics<parallel>], iteration_bounds = array<i64: 2>, scalar_prefetch = 0 : i64, scratch_operands = 0 : i64, tpu.core_type = #tpu.core_type<tc>, window_params = [{transform_indices = @transform_0, window_bounds = array<i64: 1, 64, 256>}, {pipeline_mode = #tpu.pipeline_mode<synchronous>, transform_indices = @transform_1, window_bounds = array<i64: 9, 256, 64>}, {pipeline_mode = #tpu.pipeline_mode<synchronous>, transform_indices = @transform_2, window_bounds = array<i64: 9, 64, 64>}, {pipeline_mode = #tpu.pipeline_mode<synchronous>, transform_indices = @transform_3, window_bounds = array<i64: 64, 1>}, {pipeline_mode = #tpu.pipeline_mode<synchronous>, transform_indices = @transform_4, window_bounds = array<i64: 64, 1>}, {transform_indices = @transform_5, window_bounds = array<i64: 1, 64, 64>}]} {
    %c0 = arith.constant 0 : index
    %c0_0 = arith.constant 0 : index
    %c0_1 = arith.constant 0 : index
    %0 = vector.load %arg1[%c0, %c0_0, %c0_1] : memref<1x64x256xf32, #tpu.memory_space<vmem>>, vector<1x64x256xf32>
    %1 = vector.shape_cast %0 : vector<1x64x256xf32> to vector<64x256xf32>
    %cst = arith.constant 0.000000e+00 : f32
    %2 = vector.broadcast %cst : f32 to vector<64x64xf32>
    %c0_2 = arith.constant 0 : index
    %c0_3 = arith.constant 0 : index
    %c0_4 = arith.constant 0 : index
    %3 = vector.load %arg2[%c0_2, %c0_3, %c0_4] : memref<9x256x64xf32, #tpu.memory_space<vmem>>, vector<1x256x64xf32>
    %4 = vector.shape_cast %3 : vector<1x256x64xf32> to vector<256x64xf32>
    %cst_5 = arith.constant dense<0.000000e+00> : vector<64x64xf32>
    %5 = tpu.matmul %1, %4, %cst_5 {dimension_numbers = #tpu.dot_dimension_numbers<[1], [0], [0], [1], [0, 0, 1, 1], [], []>} : vector<64x256xf32>, vector<256x64xf32>, vector<64x64xf32> -> vector<64x64xf32>
    %c0_6 = arith.constant 0 : index
    %c0_7 = arith.constant 0 : index
    %c0_8 = arith.constant 0 : index
    %6 = vector.load %arg3[%c0_6, %c0_7, %c0_8] : memref<9x64x64xf32, #tpu.memory_space<vmem>>, vector<1x64x64xf32>
    %7 = vector.shape_cast %6 : vector<1x64x64xf32> to vector<64x64xf32>
    %cst_9 = arith.constant dense<0.000000e+00> : vector<64x64xf32>
    %8 = tpu.matmul %7, %5, %cst_9 {dimension_numbers = #tpu.dot_dimension_numbers<[1], [0], [0], [1], [0, 0, 1, 1], [], []>} : vector<64x64xf32>, vector<64x64xf32>, vector<64x64xf32> -> vector<64x64xf32>
    %9 = arith.addf %2, %8 : vector<64x64xf32>
    %c1 = arith.constant 1 : index
    %c0_10 = arith.constant 0 : index
    %c0_11 = arith.constant 0 : index
    %10 = vector.load %arg2[%c1, %c0_10, %c0_11] : memref<9x256x64xf32, #tpu.memory_space<vmem>>, vector<1x256x64xf32>
    %11 = vector.shape_cast %10 : vector<1x256x64xf32> to vector<256x64xf32>
    %cst_12 = arith.constant dense<0.000000e+00> : vector<64x64xf32>
    %12 = tpu.matmul %1, %11, %cst_12 {dimension_numbers = #tpu.dot_dimension_numbers<[1], [0], [0], [1], [0, 0, 1, 1], [], []>} : vector<64x256xf32>, vector<256x64xf32>, vector<64x64xf32> -> vector<64x64xf32>
    %c1_13 = arith.constant 1 : index
    %c0_14 = arith.constant 0 : index
    %c0_15 = arith.constant 0 : index
    %13 = vector.load %arg3[%c1_13, %c0_14, %c0_15] : memref<9x64x64xf32, #tpu.memory_space<vmem>>, vector<1x64x64xf32>
    %14 = vector.shape_cast %13 : vector<1x64x64xf32> to vector<64x64xf32>
    %cst_16 = arith.constant dense<0.000000e+00> : vector<64x64xf32>
    %15 = tpu.matmul %14, %12, %cst_16 {dimension_numbers = #tpu.dot_dimension_numbers<[1], [0], [0], [1], [0, 0, 1, 1], [], []>} : vector<64x64xf32>, vector<64x64xf32>, vector<64x64xf32> -> vector<64x64xf32>
    %16 = arith.addf %9, %15 : vector<64x64xf32>
    %c2 = arith.constant 2 : index
    %c0_17 = arith.constant 0 : index
    %c0_18 = arith.constant 0 : index
    %17 = vector.load %arg2[%c2, %c0_17, %c0_18] : memref<9x256x64xf32, #tpu.memory_space<vmem>>, vector<1x256x64xf32>
    %18 = vector.shape_cast %17 : vector<1x256x64xf32> to vector<256x64xf32>
    %cst_19 = arith.constant dense<0.000000e+00> : vector<64x64xf32>
    %19 = tpu.matmul %1, %18, %cst_19 {dimension_numbers = #tpu.dot_dimension_numbers<[1], [0], [0], [1], [0, 0, 1, 1], [], []>} : vector<64x256xf32>, vector<256x64xf32>, vector<64x64xf32> -> vector<64x64xf32>
    %c2_20 = arith.constant 2 : index
    %c0_21 = arith.constant 0 : index
    %c0_22 = arith.constant 0 : index
    %20 = vector.load %arg3[%c2_20, %c0_21, %c0_22] : memref<9x64x64xf32, #tpu.memory_space<vmem>>, vector<1x64x64xf32>
    %21 = vector.shape_cast %20 : vector<1x64x64xf32> to vector<64x64xf32>
    %cst_23 = arith.constant dense<0.000000e+00> : vector<64x64xf32>
    %22 = tpu.matmul %21, %19, %cst_23 {dimension_numbers = #tpu.dot_dimension_numbers<[1], [0], [0], [1], [0, 0, 1, 1], [], []>} : vector<64x64xf32>, vector<64x64xf32>, vector<64x64xf32> -> vector<64x64xf32>
    %23 = arith.addf %16, %22 : vector<64x64xf32>
    %c3 = arith.constant 3 : index
    %c0_24 = arith.constant 0 : index
    %c0_25 = arith.constant 0 : index
    %24 = vector.load %arg2[%c3, %c0_24, %c0_25] : memref<9x256x64xf32, #tpu.memory_space<vmem>>, vector<1x256x64xf32>
    %25 = vector.shape_cast %24 : vector<1x256x64xf32> to vector<256x64xf32>
    %cst_26 = arith.constant dense<0.000000e+00> : vector<64x64xf32>
    %26 = tpu.matmul %1, %25, %cst_26 {dimension_numbers = #tpu.dot_dimension_numbers<[1], [0], [0], [1], [0, 0, 1, 1], [], []>} : vector<64x256xf32>, vector<256x64xf32>, vector<64x64xf32> -> vector<64x64xf32>
    %c3_27 = arith.constant 3 : index
    %c0_28 = arith.constant 0 : index
    %c0_29 = arith.constant 0 : index
    %27 = vector.load %arg3[%c3_27, %c0_28, %c0_29] : memref<9x64x64xf32, #tpu.memory_space<vmem>>, vector<1x64x64xf32>
    %28 = vector.shape_cast %27 : vector<1x64x64xf32> to vector<64x64xf32>
    %cst_30 = arith.constant dense<0.000000e+00> : vector<64x64xf32>
    %29 = tpu.matmul %28, %26, %cst_30 {dimension_numbers = #tpu.dot_dimension_numbers<[1], [0], [0], [1], [0, 0, 1, 1], [], []>} : vector<64x64xf32>, vector<64x64xf32>, vector<64x64xf32> -> vector<64x64xf32>
    %30 = arith.addf %23, %29 : vector<64x64xf32>
    %c4 = arith.constant 4 : index
    %c0_31 = arith.constant 0 : index
    %c0_32 = arith.constant 0 : index
    %31 = vector.load %arg2[%c4, %c0_31, %c0_32] : memref<9x256x64xf32, #tpu.memory_space<vmem>>, vector<1x256x64xf32>
    %32 = vector.shape_cast %31 : vector<1x256x64xf32> to vector<256x64xf32>
    %cst_33 = arith.constant dense<0.000000e+00> : vector<64x64xf32>
    %33 = tpu.matmul %1, %32, %cst_33 {dimension_numbers = #tpu.dot_dimension_numbers<[1], [0], [0], [1], [0, 0, 1, 1], [], []>} : vector<64x256xf32>, vector<256x64xf32>, vector<64x64xf32> -> vector<64x64xf32>
    %c4_34 = arith.constant 4 : index
    %c0_35 = arith.constant 0 : index
    %c0_36 = arith.constant 0 : index
    %34 = vector.load %arg3[%c4_34, %c0_35, %c0_36] : memref<9x64x64xf32, #tpu.memory_space<vmem>>, vector<1x64x64xf32>
    %35 = vector.shape_cast %34 : vector<1x64x64xf32> to vector<64x64xf32>
    %cst_37 = arith.constant dense<0.000000e+00> : vector<64x64xf32>
    %36 = tpu.matmul %35, %33, %cst_37 {dimension_numbers = #tpu.dot_dimension_numbers<[1], [0], [0], [1], [0, 0, 1, 1], [], []>} : vector<64x64xf32>, vector<64x64xf32>, vector<64x64xf32> -> vector<64x64xf32>
    %37 = arith.addf %30, %36 : vector<64x64xf32>
    %c5 = arith.constant 5 : index
    %c0_38 = arith.constant 0 : index
    %c0_39 = arith.constant 0 : index
    %38 = vector.load %arg2[%c5, %c0_38, %c0_39] : memref<9x256x64xf32, #tpu.memory_space<vmem>>, vector<1x256x64xf32>
    %39 = vector.shape_cast %38 : vector<1x256x64xf32> to vector<256x64xf32>
    %cst_40 = arith.constant dense<0.000000e+00> : vector<64x64xf32>
    %40 = tpu.matmul %1, %39, %cst_40 {dimension_numbers = #tpu.dot_dimension_numbers<[1], [0], [0], [1], [0, 0, 1, 1], [], []>} : vector<64x256xf32>, vector<256x64xf32>, vector<64x64xf32> -> vector<64x64xf32>
    %c5_41 = arith.constant 5 : index
    %c0_42 = arith.constant 0 : index
    %c0_43 = arith.constant 0 : index
    %41 = vector.load %arg3[%c5_41, %c0_42, %c0_43] : memref<9x64x64xf32, #tpu.memory_space<vmem>>, vector<1x64x64xf32>
    %42 = vector.shape_cast %41 : vector<1x64x64xf32> to vector<64x64xf32>
    %cst_44 = arith.constant dense<0.000000e+00> : vector<64x64xf32>
    %43 = tpu.matmul %42, %40, %cst_44 {dimension_numbers = #tpu.dot_dimension_numbers<[1], [0], [0], [1], [0, 0, 1, 1], [], []>} : vector<64x64xf32>, vector<64x64xf32>, vector<64x64xf32> -> vector<64x64xf32>
    %44 = arith.addf %37, %43 : vector<64x64xf32>
    %c6 = arith.constant 6 : index
    %c0_45 = arith.constant 0 : index
    %c0_46 = arith.constant 0 : index
    %45 = vector.load %arg2[%c6, %c0_45, %c0_46] : memref<9x256x64xf32, #tpu.memory_space<vmem>>, vector<1x256x64xf32>
    %46 = vector.shape_cast %45 : vector<1x256x64xf32> to vector<256x64xf32>
    %cst_47 = arith.constant dense<0.000000e+00> : vector<64x64xf32>
    %47 = tpu.matmul %1, %46, %cst_47 {dimension_numbers = #tpu.dot_dimension_numbers<[1], [0], [0], [1], [0, 0, 1, 1], [], []>} : vector<64x256xf32>, vector<256x64xf32>, vector<64x64xf32> -> vector<64x64xf32>
    %c6_48 = arith.constant 6 : index
    %c0_49 = arith.constant 0 : index
    %c0_50 = arith.constant 0 : index
    %48 = vector.load %arg3[%c6_48, %c0_49, %c0_50] : memref<9x64x64xf32, #tpu.memory_space<vmem>>, vector<1x64x64xf32>
    %49 = vector.shape_cast %48 : vector<1x64x64xf32> to vector<64x64xf32>
    %cst_51 = arith.constant dense<0.000000e+00> : vector<64x64xf32>
    %50 = tpu.matmul %49, %47, %cst_51 {dimension_numbers = #tpu.dot_dimension_numbers<[1], [0], [0], [1], [0, 0, 1, 1], [], []>} : vector<64x64xf32>, vector<64x64xf32>, vector<64x64xf32> -> vector<64x64xf32>
    %51 = arith.addf %44, %50 : vector<64x64xf32>
    %c7 = arith.constant 7 : index
    %c0_52 = arith.constant 0 : index
    %c0_53 = arith.constant 0 : index
    %52 = vector.load %arg2[%c7, %c0_52, %c0_53] : memref<9x256x64xf32, #tpu.memory_space<vmem>>, vector<1x256x64xf32>
    %53 = vector.shape_cast %52 : vector<1x256x64xf32> to vector<256x64xf32>
    %cst_54 = arith.constant dense<0.000000e+00> : vector<64x64xf32>
    %54 = tpu.matmul %1, %53, %cst_54 {dimension_numbers = #tpu.dot_dimension_numbers<[1], [0], [0], [1], [0, 0, 1, 1], [], []>} : vector<64x256xf32>, vector<256x64xf32>, vector<64x64xf32> -> vector<64x64xf32>
    %c7_55 = arith.constant 7 : index
    %c0_56 = arith.constant 0 : index
    %c0_57 = arith.constant 0 : index
    %55 = vector.load %arg3[%c7_55, %c0_56, %c0_57] : memref<9x64x64xf32, #tpu.memory_space<vmem>>, vector<1x64x64xf32>
    %56 = vector.shape_cast %55 : vector<1x64x64xf32> to vector<64x64xf32>
    %cst_58 = arith.constant dense<0.000000e+00> : vector<64x64xf32>
    %57 = tpu.matmul %56, %54, %cst_58 {dimension_numbers = #tpu.dot_dimension_numbers<[1], [0], [0], [1], [0, 0, 1, 1], [], []>} : vector<64x64xf32>, vector<64x64xf32>, vector<64x64xf32> -> vector<64x64xf32>
    %58 = arith.addf %51, %57 : vector<64x64xf32>
    %c8 = arith.constant 8 : index
    %c0_59 = arith.constant 0 : index
    %c0_60 = arith.constant 0 : index
    %59 = vector.load %arg2[%c8, %c0_59, %c0_60] : memref<9x256x64xf32, #tpu.memory_space<vmem>>, vector<1x256x64xf32>
    %60 = vector.shape_cast %59 : vector<1x256x64xf32> to vector<256x64xf32>
    %cst_61 = arith.constant dense<0.000000e+00> : vector<64x64xf32>
    %61 = tpu.matmul %1, %60, %cst_61 {dimension_numbers = #tpu.dot_dimension_numbers<[1], [0], [0], [1], [0, 0, 1, 1], [], []>} : vector<64x256xf32>, vector<256x64xf32>, vector<64x64xf32> -> vector<64x64xf32>
    %c8_62 = arith.constant 8 : index
    %c0_63 = arith.constant 0 : index
    %c0_64 = arith.constant 0 : index
    %62 = vector.load %arg3[%c8_62, %c0_63, %c0_64] : memref<9x64x64xf32, #tpu.memory_space<vmem>>, vector<1x64x64xf32>
    %63 = vector.shape_cast %62 : vector<1x64x64xf32> to vector<64x64xf32>
    %cst_65 = arith.constant dense<0.000000e+00> : vector<64x64xf32>
    %64 = tpu.matmul %63, %61, %cst_65 {dimension_numbers = #tpu.dot_dimension_numbers<[1], [0], [0], [1], [0, 0, 1, 1], [], []>} : vector<64x64xf32>, vector<64x64xf32>, vector<64x64xf32> -> vector<64x64xf32>
    %65 = arith.addf %58, %64 : vector<64x64xf32>
    %c0_66 = arith.constant 0 : index
    %c0_67 = arith.constant 0 : index
    %66 = vector.load %arg4[%c0_66, %c0_67] : memref<64x1xf32, #tpu.memory_space<vmem>>, vector<64x1xf32>
    %67 = vector.broadcast %66 : vector<64x1xf32> to vector<64x64xf32>
    %68 = arith.mulf %65, %67 : vector<64x64xf32>
    %c0_68 = arith.constant 0 : index
    %c0_69 = arith.constant 0 : index
    %69 = vector.load %arg5[%c0_68, %c0_69] : memref<64x1xf32, #tpu.memory_space<vmem>>, vector<64x1xf32>
    %70 = vector.broadcast %69 : vector<64x1xf32> to vector<64x64xf32>
    %71 = arith.addf %68, %70 : vector<64x64xf32>
    %c0_70 = arith.constant 0 : index
    %c0_71 = arith.constant 0 : index
    %c0_72 = arith.constant 0 : index
    %72 = vector.load %arg6[%c0_70, %c0_71, %c0_72] : memref<1x64x64xf32, #tpu.memory_space<vmem>>, vector<1x64x64xf32>
    %73 = vector.shape_cast %72 : vector<1x64x64xf32> to vector<64x64xf32>
    %74 = vector.shape_cast %71 : vector<64x64xf32> to vector<1x64x64xf32>
    tpu.vector_store %arg6[%c0_70, %c0_71, %c0_72], %74 {strides = array<i32>} : memref<1x64x64xf32, #tpu.memory_space<vmem>>, vector<1x64x64xf32>,
    return
  }
  func.func @transform_0(%arg0: i32) -> (i32, i32, i32) {
    %c0_i32 = arith.constant 0 : i32
    %c0_i32_0 = arith.constant 0 : i32
    %c0_i32_1 = arith.constant 0 : i32
    return %arg0, %c0_i32, %c0_i32_0 : i32, i32, i32
  }
  func.func @transform_1(%arg0: i32) -> (i32, i32, i32) {
    %c0_i32 = arith.constant 0 : i32
    %c0_i32_0 = arith.constant 0 : i32
    %c0_i32_1 = arith.constant 0 : i32
    %c0_i32_2 = arith.constant 0 : i32
    return %c0_i32, %c0_i32_0, %c0_i32_1 : i32, i32, i32
  }
  func.func @transform_2(%arg0: i32) -> (i32, i32, i32) {
    %c0_i32 = arith.constant 0 : i32
    %c0_i32_0 = arith.constant 0 : i32
    %c0_i32_1 = arith.constant 0 : i32
    %c0_i32_2 = arith.constant 0 : i32
    return %c0_i32, %c0_i32_0, %c0_i32_1 : i32, i32, i32
  }
  func.func @transform_3(%arg0: i32) -> (i32, i32) {
    %c0_i32 = arith.constant 0 : i32
    %c0_i32_0 = arith.constant 0 : i32
    %c0_i32_1 = arith.constant 0 : i32
    return %c0_i32, %c0_i32_0 : i32, i32
  }
  func.func @transform_4(%arg0: i32) -> (i32, i32) {
    %c0_i32 = arith.constant 0 : i32
    %c0_i32_0 = arith.constant 0 : i32
    %c0_i32_1 = arith.constant 0 : i32
    return %c0_i32, %c0_i32_0 : i32, i32
  }
  func.func @transform_5(%arg0: i32) -> (i32, i32, i32) {
    %c0_i32 = arith.constant 0 : i32
    %c0_i32_0 = arith.constant 0 : i32
    %c0_i32_1 = arith.constant 0 : i32
    return %arg0, %c0_i32, %c0_i32_0 : i32, i32, i32
  }
}

</mosaic_0001>

<llo_original>
// kernel: tpu_custom_call.1
$region0: #{tpu_custom_call.1}
  #allocation0 [shape = 'u32[]', space=smem, size = 0x4, offset = 0x4, fixed_abs, tag = 'smem constant byte address 0x4 - core index']
  #allocation1 [shape = 'u32[144,128]{1,0:T(1,128)}', space=vmem, size = 0x12000, scoped, tag = 'internal scratch']
  %s0 = inlined_call_operand.vmem [shape: f32[2,64,256], index: 0, kind: input, shape index: {}]
  %s1 = inlined_call_operand.vmem [shape: f32[9,256,64], index: 1, kind: input, shape index: {}]
  %s2 = inlined_call_operand.vmem [shape: f32[9,64,64], index: 2, kind: input, shape index: {}]
  %s3 = inlined_call_operand.vmem [shape: f32[64,1], index: 3, kind: input, shape index: {}]
  %s4 = inlined_call_operand.vmem [shape: f32[64,1], index: 4, kind: input, shape index: {}]
  %s5 = inlined_call_operand.hbm [shape: f32[2,64,64], index: 5, kind: output, shape index: {}]
  %s6 = sld [smem:[#allocation0]]
  $region53: #{tpu_custom_call.1} parent=0
    _
  %s8 = ssub.s32 1, %s6
  %s9 = scalar_select 0, %s8, %s6
  $region1: #{tpu_custom_call.1} parent=0
    #allocation2 [shape = 'u8[65536]{0}', space=vmem, size = 0x10000, scoped, tag = 'output window, operand 0']
    #allocation3 [shape = 's32[2]{0}', space=sflag, size = 0x8, scoped, tag = 'scoped memory for tpu_custom_call.1']
    %10 = vsyncpa [#allocation3], 0
    %s11 = scalar_lea.sflag [#allocation3], 1
    %12 = vsyncpa %s11, 0
    loop: start=0, step=1, limit=4
    $region2: #{tpu_custom_call.1} parent=1 // loop_pre_header
      _
    $region3: #{tpu_custom_call.1} parent=1 // loop_header
      %s14 = sphi 0, %s18
      %p15 = scmp.ge.s32.totalorder %s14, 4
      %s24 = sphi 0, %s26
      %s27 = sphi 0, %s24
      %s28 = sphi 0, %s27
      %s44 = sphi 0, %s28
      %s48 = sphi 0, %s48
      %s50 = sphi 0, %s48
      %s51 = sphi 0, %s50
      %s65 = sphi 0, %s51
      %s69 = sphi 0, %s69
      %s71 = sphi 0, %s69
      %s72 = sphi 0, %s71
      %s86 = sphi 0, %s72
      %s90 = sphi 0, %s90
      %s92 = sphi 0, %s90
      %s93 = sphi 0, %s92
      %s107 = sphi 0, %s93
      %s111 = sphi 0, %s111
      %s113 = sphi 0, %s111
      %s114 = sphi 0, %s113
      %s128 = sphi 0, %s114
      %s134 = sphi 0, %s136
      %s137 = sphi 0, %s134
      %s138 = sphi 0, %s137
      %s154 = sphi 0, %s138
    $region4: #{tpu_custom_call.1} parent=1 // loop_header_branch
      %17 = sbr.rel (%p15) target = $region8
    $region5: #{tpu_custom_call.1} parent=1 // loop_body
      %s19 = ssub.s32 %s14, 1
      %s20 = ssub.s32 %s14, 2
      %s21 = sadd.s32 %s14, 1
      %s22 = ssub.s32 %s14, %s21
      %p23 = scmp.eq.s32.totalorder %s22, 0
      %s25 = sadd.s32 %s24, 1
      %s26 = scalar_select %p23, %s24, %s25
      %p29 = pneg %p23
      %p30 = scmp.eq.s32.totalorder %s14, 1
      %p31 = por %p29, %p30
      %p32 = scmp.ne.s32.totalorder %s24, %s27
      %p33 = scmp.eq.s32.totalorder %s14, 0
      %p34 = por %p32, %p33
      %p35 = scmp.ne.s32.totalorder %s24, %s27
      %p36 = scmp.eq.s32.totalorder %s19, 1
      %p37 = por %p35, %p36
      %p38 = scmp.ne.s32.totalorder %s27, %s28
      %p39 = scmp.eq.s32.totalorder %s19, 0
      %p40 = por %p38, %p39
      %p41 = scmp.ne.s32.totalorder %s27, %s28
      %p42 = scmp.eq.s32.totalorder %s20, 1
      %p43 = por %p41, %p42
      %p45 = scmp.ne.s32.totalorder %s28, %s44
      %p46 = scmp.eq.s32.totalorder %s20, 0
      %p47 = por %p45, %p46
      %s49 = sadd.s32 %s48, 1
      %p52 = scmp.eq.s32.totalorder %s14, 1
      %p53 = scmp.ne.s32.totalorder %s48, %s50
      %p54 = scmp.eq.s32.totalorder %s14, 0
      %p55 = por %p53, %p54
      %p56 = scmp.ne.s32.totalorder %s48, %s50
      %p57 = scmp.eq.s32.totalorder %s19, 1
      %p58 = por %p56, %p57
      %p59 = scmp.ne.s32.totalorder %s50, %s51
      %p60 = scmp.eq.s32.totalorder %s19, 0
      %p61 = por %p59, %p60
      %p62 = scmp.ne.s32.totalorder %s50, %s51
      %p63 = scmp.eq.s32.totalorder %s20, 1
      %p64 = por %p62, %p63
      %p66 = scmp.ne.s32.totalorder %s51, %s65
      %p67 = scmp.eq.s32.totalorder %s20, 0
      %p68 = por %p66, %p67
      %s70 = sadd.s32 %s69, 1
      %p73 = scmp.eq.s32.totalorder %s14, 1
      %p74 = scmp.ne.s32.totalorder %s69, %s71
      %p75 = scmp.eq.s32.totalorder %s14, 0
      %p76 = por %p74, %p75
      %p77 = scmp.ne.s32.totalorder %s69, %s71
      %p78 = scmp.eq.s32.totalorder %s19, 1
      %p79 = por %p77, %p78
      %p80 = scmp.ne.s32.totalorder %s71, %s72
      %p81 = scmp.eq.s32.totalorder %s19, 0
      %p82 = por %p80, %p81
      %p83 = scmp.ne.s32.totalorder %s71, %s72
      %p84 = scmp.eq.s32.totalorder %s20, 1
      %p85 = por %p83, %p84
      %p87 = scmp.ne.s32.totalorder %s72, %s86
      %p88 = scmp.eq.s32.totalorder %s20, 0
      %p89 = por %p87, %p88
      %s91 = sadd.s32 %s90, 1
      %p94 = scmp.eq.s32.totalorder %s14, 1
      %p95 = scmp.ne.s32.totalorder %s90, %s92
      %p96 = scmp.eq.s32.totalorder %s14, 0
      %p97 = por %p95, %p96
      %p98 = scmp.ne.s32.totalorder %s90, %s92
      %p99 = scmp.eq.s32.totalorder %s19, 1
      %p100 = por %p98, %p99
      %p101 = scmp.ne.s32.totalorder %s92, %s93
      %p102 = scmp.eq.s32.totalorder %s19, 0
      %p103 = por %p101, %p102
      %p104 = scmp.ne.s32.totalorder %s92, %s93
      %p105 = scmp.eq.s32.totalorder %s20, 1
      %p106 = por %p104, %p105
      %p108 = scmp.ne.s32.totalorder %s93, %s107
      %p109 = scmp.eq.s32.totalorder %s20, 0
      %p110 = por %p108, %p109
      %s112 = sadd.s32 %s111, 1
      %p115 = scmp.eq.s32.totalorder %s14, 1
      %p116 = scmp.ne.s32.totalorder %s111, %s113
      %p117 = scmp.eq.s32.totalorder %s14, 0
      %p118 = por %p116, %p117
      %p119 = scmp.ne.s32.totalorder %s111, %s113
      %p120 = scmp.eq.s32.totalorder %s19, 1
      %p121 = por %p119, %p120
      %p122 = scmp.ne.s32.totalorder %s113, %s114
      %p123 = scmp.eq.s32.totalorder %s19, 0
      %p124 = por %p122, %p123
      %p125 = scmp.ne.s32.totalorder %s113, %s114
      %p126 = scmp.eq.s32.totalorder %s20, 1
      %p127 = por %p125, %p126
      %p129 = scmp.ne.s32.totalorder %s114, %s128
      %p130 = scmp.eq.s32.totalorder %s20, 0
      %p131 = por %p129, %p130
      %s132 = ssub.s32 %s14, %s21
      %p133 = scmp.eq.s32.totalorder %s132, 0
      %s135 = sadd.s32 %s134, 1
      %s136 = scalar_select %p133, %s134, %s135
      %p139 = pneg %p133
      %p140 = scmp.eq.s32.totalorder %s14, 1
      %p141 = por %p139, %p140
      %p142 = scmp.ne.s32.totalorder %s134, %s137
      %p143 = scmp.eq.s32.totalorder %s14, 0
      %p144 = por %p142, %p143
      %p145 = scmp.ne.s32.totalorder %s134, %s137
      %p146 = scmp.eq.s32.totalorder %s19, 1
      %p147 = por %p145, %p146
      %p148 = scmp.ne.s32.totalorder %s137, %s138
      %p149 = scmp.eq.s32.totalorder %s19, 0
      %p150 = por %p148, %p149
      %p151 = scmp.ne.s32.totalorder %s137, %s138
      %p152 = scmp.eq.s32.totalorder %s20, 1
      %p153 = por %p151, %p152
      %p155 = scmp.ne.s32.totalorder %s138, %s154
      %p156 = scmp.eq.s32.totalorder %s20, 0
      %p157 = por %p155, %p156
      %p158 = scmp.le.s32.totalorder 1, %s14
      %p159 = scmp.lt.s32.totalorder %s14, 3
      %p160 = pnand %p158, %p159
      %p161 = pneg %p160
      // Predicated region
      $region9: #{tpu_custom_call.1} parent=5 // pred_check
        _
      $region10: #{tpu_custom_call.1} parent=5 // pred_check_branch
        %163 = sbr.rel (%p160) target = $region12
      $region11: #{tpu_custom_call.1} parent=5 // pred_region
        %s164 = ssub.s32 %s14, 1
        // Predicated region
        $region13: #{tpu_custom_call.1} parent=11 // pred_check
          %p165 = pneg %p61
        $region14: #{tpu_custom_call.1} parent=11 // pred_check_branch
          %167 = sbr.rel (%p165) target = $region16
        $region15: #{tpu_custom_call.1} parent=11 // pred_region
          _
        $region16: #{tpu_custom_call.1} parent=11 // pred_fallthru
          _
        // Predicated region
        $region17: #{tpu_custom_call.1} parent=11 // pred_check
          %p168 = pneg %p82
        $region18: #{tpu_custom_call.1} parent=11 // pred_check_branch
          %170 = sbr.rel (%p168) target = $region20
        $region19: #{tpu_custom_call.1} parent=11 // pred_region
          _
        $region20: #{tpu_custom_call.1} parent=11 // pred_fallthru
          _
        // Predicated region
        $region21: #{tpu_custom_call.1} parent=11 // pred_check
          %p171 = pneg %p103
        $region22: #{tpu_custom_call.1} parent=11 // pred_check_branch
          %173 = sbr.rel (%p171) target = $region24
        $region23: #{tpu_custom_call.1} parent=11 // pred_region
          _
        $region24: #{tpu_custom_call.1} parent=11 // pred_fallthru
          _
        // Predicated region
        $region25: #{tpu_custom_call.1} parent=11 // pred_check
          %p174 = pneg %p124
        $region26: #{tpu_custom_call.1} parent=11 // pred_check_branch
          %176 = sbr.rel (%p174) target = $region28
        $region27: #{tpu_custom_call.1} parent=11 // pred_region
          _
        $region28: #{tpu_custom_call.1} parent=11 // pred_fallthru
          _
      $region12: #{tpu_custom_call.1} parent=5 // pred_fallthru
        _
      %p177 = scmp.lt.s32.totalorder %s14, 2
      // Predicated region
      $region29: #{tpu_custom_call.1} parent=5 // pred_check
        %p178 = pneg %p177
      $region30: #{tpu_custom_call.1} parent=5 // pred_check_branch
        %180 = sbr.rel (%p178) target = $region32
      $region31: #{tpu_custom_call.1} parent=5 // pred_region
        // Predicated region
        $region33: #{tpu_custom_call.1} parent=31 // pred_check
          %p181 = pneg %p34
        $region34: #{tpu_custom_call.1} parent=31 // pred_check_branch
          %183 = sbr.rel (%p181) target = $region36
        $region35: #{tpu_custom_call.1} parent=31 // pred_region
          %p184 = scmp.lt.s32.totalorder %s14, 1
          %s185 = scalar_select %p184, %s14, 1
          %s186 = smul.addr %s185, 16
          %s187 = smul.addr %s186, 8
          %s188 = scalar_lea.vmem %s0, %s187
        $region36: #{tpu_custom_call.1} parent=31 // pred_fallthru
          _
      $region32: #{tpu_custom_call.1} parent=5 // pred_fallthru
        _
      %p189 = scmp.le.s32.totalorder 1, %s14
      %p190 = scmp.lt.s32.totalorder %s14, 3
      %p191 = pnand %p189, %p190
      %p192 = pneg %p191
      // Predicated region
      $region37: #{tpu_custom_call.1} parent=5 // pred_check
        _
      $region38: #{tpu_custom_call.1} parent=5 // pred_check_branch
        %194 = sbr.rel (%p191) target = $region40
      $region39: #{tpu_custom_call.1} parent=5 // pred_region
        %s195 = ssub.s32 %s14, 1
        %p196 = scmp.lt.s32.totalorder %s19, 1
        %s197 = scalar_select %p196, %s19, 1
        %s198 = smul.addr %s197, 16
        %s199 = smul.addr %s198, 8
        %s200 = scalar_lea.vmem %s0, %s199
        %p201 = pneg %p40
        %p202 = pneg %p37
        %p203 = pneg %p61
        %p204 = pneg %p58
        %p205 = pneg %p82
        %p206 = pneg %p79
        %p207 = pneg %p103
        %p208 = pneg %p100
        %p209 = pneg %p124
        %p210 = pneg %p121
        %p211 = pneg %p150
        %p212 = pneg %p147
        %s213 = sand.u32 %s137, 1
        %s214 = scalar_lea.sflag [#allocation3], %s213
        %s215 = sand.u32 %s137, 1
        %s216 = smul.addr %s215, 64
        %s217 = scalar_lea.vmem [#allocation2], %s216
        %p218 = scmp.lt.s32.totalorder %s19, 1
        %s219 = scalar_select %p218, %s19, 1
        %s220 = smul.addr %s219, 16
        %s221 = smul.addr %s220, 8
        %s222 = scalar_lea.vmem %s0, %s221
        %v223 = vld [vmem:[%s222] sm:$0xff]
        %v224 = vld [vmem:[%s222 + $0x8] sm:$0xff]
        %v225 = vld [vmem:[%s222 + $0x10] sm:$0xff]
        %v226 = vld [vmem:[%s222 + $0x18] sm:$0xff]
        %v227 = vld [vmem:[%s222 + $0x20] sm:$0xff]
        %v228 = vld [vmem:[%s222 + $0x28] sm:$0xff]
        %v229 = vld [vmem:[%s222 + $0x30] sm:$0xff]
        %v230 = vld [vmem:[%s222 + $0x38] sm:$0xff]
        %v231 = vld [vmem:[%s222 + $0x40] sm:$0xff]
        %v232 = vld [vmem:[%s222 + $0x48] sm:$0xff]
        %v233 = vld [vmem:[%s222 + $0x50] sm:$0xff]
        %v234 = vld [vmem:[%s222 + $0x58] sm:$0xff]
        %v235 = vld [vmem:[%s222 + $0x60] sm:$0xff]
        %v236 = vld [vmem:[%s222 + $0x68] sm:$0xff]
        %v237 = vld [vmem:[%s222 + $0x70] sm:$0xff]
        %v238 = vld [vmem:[%s222 + $0x78] sm:$0xff]
        %v239 = vld [vmem:[%s1] sm:$0xff]
        %v240 = vld [vmem:[%s1 + $0x8] sm:$0xff]
        %v241 = vld [vmem:[%s1 + $0x10] sm:$0xff]
        %v242 = vld [vmem:[%s1 + $0x18] sm:$0xff]
        %v243 = vld [vmem:[%s1 + $0x20] sm:$0xff]
        %v244 = vld [vmem:[%s1 + $0x28] sm:$0xff]
        %v245 = vld [vmem:[%s1 + $0x30] sm:$0xff]
        %v246 = vld [vmem:[%s1 + $0x38] sm:$0xff]
        %v247 = vld [vmem:[%s1 + $0x40] sm:$0xff]
        %v248 = vld [vmem:[%s1 + $0x48] sm:$0xff]
        %v249 = vld [vmem:[%s1 + $0x50] sm:$0xff]
        %v250 = vld [vmem:[%s1 + $0x58] sm:$0xff]
        %v251 = vld [vmem:[%s1 + $0x60] sm:$0xff]
        %v252 = vld [vmem:[%s1 + $0x68] sm:$0xff]
        %v253 = vld [vmem:[%s1 + $0x70] sm:$0xff]
        %v254 = vld [vmem:[%s1 + $0x78] sm:$0xff]
        %v255 = vld [vmem:[%s1 + $0x80] sm:$0xff]
        %v256 = vld [vmem:[%s1 + $0x88] sm:$0xff]
        %v257 = vld [vmem:[%s1 + $0x90] sm:$0xff]
        %v258 = vld [vmem:[%s1 + $0x98] sm:$0xff]
        %v259 = vld [vmem:[%s1 + $0xa0] sm:$0xff]
        %v260 = vld [vmem:[%s1 + $0xa8] sm:$0xff]
        %v261 = vld [vmem:[%s1 + $0xb0] sm:$0xff]
        %v262 = vld [vmem:[%s1 + $0xb8] sm:$0xff]
        %v263 = vld [vmem:[%s1 + $0xc0] sm:$0xff]
        %v264 = vld [vmem:[%s1 + $0xc8] sm:$0xff]
        %v265 = vld [vmem:[%s1 + $0xd0] sm:$0xff]
        %v266 = vld [vmem:[%s1 + $0xd8] sm:$0xff]
        %v267 = vld [vmem:[%s1 + $0xe0] sm:$0xff]
        %v268 = vld [vmem:[%s1 + $0xe8] sm:$0xff]
        %v269 = vld [vmem:[%s1 + $0xf0] sm:$0xff]
        %v270 = vld [vmem:[%s1 + $0xf8] sm:$0xff]
        %271 = vmatprep.subr.mxu0 0.0
        %272 = vmatpush1.msra.mxu0 %v254
        %273 = vmatprep.subr.mxu0 0.0
        %274 = vmatpush1.msra.mxu0 %v253
        %275 = vmatprep.subr.mxu0 0.0
        %276 = vmatpush1.msra.mxu0 %v252
        %277 = vmatprep.subr.mxu0 0.0
        %278 = vmatpush1.msra.mxu0 %v251
        %279 = vmatprep.subr.mxu0 0.0
        %280 = vmatpush1.msra.mxu0 %v250
        %281 = vmatprep.subr.mxu0 0.0
        %282 = vmatpush1.msra.mxu0 %v249
        %283 = vmatprep.subr.mxu0 0.0
        %284 = vmatpush1.msra.mxu0 %v248
        %285 = vmatprep.subr.mxu0 0.0
        %286 = vmatpush1.msra.mxu0 %v247
        %287 = vmatprep.subr.mxu0 0.0
        %288 = vmatpush1.msra.mxu0 %v246
        %289 = vmatprep.subr.mxu0 0.0
        %290 = vmatpush1.msra.mxu0 %v245
        %291 = vmatprep.subr.mxu0 0.0
        %292 = vmatpush1.msra.mxu0 %v244
        %293 = vmatprep.subr.mxu0 0.0
        %294 = vmatpush1.msra.mxu0 %v243
        %295 = vmatprep.subr.mxu0 0.0
        %296 = vmatpush1.msra.mxu0 %v242
        %297 = vmatprep.subr.mxu0 0.0
        %298 = vmatpush1.msra.mxu0 %v241
        %299 = vmatprep.subr.mxu0 0.0
        %300 = vmatpush1.msra.mxu0 %v240
        %301 = vmatprep.subr.mxu0 0.0
        %302 = vmatpush1.msra.mxu0 %v239
        %303 = vmatprep.subr.mxu0 0.0
        %304 = vmatpush2.msra.mxu0 %v270
        %305 = vmatprep.subr.mxu0 0.0
        %306 = vmatpush2.msra.mxu0 %v269
        %307 = vmatprep.subr.mxu0 0.0
        %308 = vmatpush2.msra.mxu0 %v268
        %309 = vmatprep.subr.mxu0 0.0
        %310 = vmatpush2.msra.mxu0 %v267
        %311 = vmatprep.subr.mxu0 0.0
        %312 = vmatpush2.msra.mxu0 %v266
        %313 = vmatprep.subr.mxu0 0.0
        %314 = vmatpush2.msra.mxu0 %v265
        %315 = vmatprep.subr.mxu0 0.0
        %316 = vmatpush2.msra.mxu0 %v264
        %317 = vmatprep.subr.mxu0 0.0
        %318 = vmatpush2.msra.mxu0 %v263
        %319 = vmatprep.subr.mxu0 0.0
        %320 = vmatpush2.msra.mxu0 %v262
        %321 = vmatprep.subr.mxu0 0.0
        %322 = vmatpush2.msra.mxu0 %v261
        %323 = vmatprep.subr.mxu0 0.0
        %324 = vmatpush2.msra.mxu0 %v260
        %325 = vmatprep.subr.mxu0 0.0
        %326 = vmatpush2.msra.mxu0 %v259
        %327 = vmatprep.subr.mxu0 0.0
        %328 = vmatpush2.msra.mxu0 %v258
        %329 = vmatprep.subr.mxu0 0.0
        %330 = vmatpush2.msra.mxu0 %v257
        %331 = vmatprep.subr.mxu0 0.0
        %332 = vmatpush2.msra.mxu0 %v256
        %333 = vmatprep.subr.mxu0 0.0
        %334 = vmatpush2.msra.mxu0 %v255
        %335 = vmatprep.mubr.f32.mxu0 %v224
        %336 = vmatmul.mubr.f32.gmra.mxu0 %v223
        %v337 = vpop.f32.mrf.mxu0
        %v338 = vadd.f32 0.0, %v337
        %v339 = vpop.f32.mrf.mxu0
        %340 = vmatprep.mubr.f32.mxu0 %v226
        %341 = vmatmul.mubr.f32.gmra.mxu0 %v225
        %v342 = vpop.f32.mrf.mxu0
        %v343 = vadd.f32 0.0, %v342
        %v344 = vpop.f32.mrf.mxu0
        %345 = vmatprep.mubr.f32.mxu0 %v228
        %346 = vmatmul.mubr.f32.gmra.mxu0 %v227
        %v347 = vpop.f32.mrf.mxu0
        %v348 = vadd.f32 0.0, %v347
        %v349 = vpop.f32.mrf.mxu0
        %350 = vmatprep.mubr.f32.mxu0 %v230
        %351 = vmatmul.mubr.f32.gmra.mxu0 %v229
        %v352 = vpop.f32.mrf.mxu0
        %v353 = vadd.f32 0.0, %v352
        %v354 = vpop.f32.mrf.mxu0
        %355 = vmatprep.mubr.f32.mxu0 %v232
        %356 = vmatmul.mubr.f32.gmra.mxu0 %v231
        %v357 = vpop.f32.mrf.mxu0
        %v358 = vadd.f32 0.0, %v357
        %v359 = vpop.f32.mrf.mxu0
        %360 = vmatprep.mubr.f32.mxu0 %v234
        %361 = vmatmul.mubr.f32.gmra.mxu0 %v233
        %v362 = vpop.f32.mrf.mxu0
        %v363 = vadd.f32 0.0, %v362
        %v364 = vpop.f32.mrf.mxu0
        %365 = vmatprep.mubr.f32.mxu0 %v236
        %366 = vmatmul.mubr.f32.gmra.mxu0 %v235
        %v367 = vpop.f32.mrf.mxu0
        %v368 = vadd.f32 0.0, %v367
        %v369 = vpop.f32.mrf.mxu0
        %370 = vmatprep.mubr.f32.mxu0 %v238
        %371 = vmatmul.mubr.f32.gmra.mxu0 %v237
        %v372 = vpop.f32.mrf.mxu0
        %v373 = vadd.f32 0.0, %v372
        %v374 = vpop.f32.mrf.mxu0
        %375 = vdwg.mxu0
        %v376 = vld [vmem:[%s2] sm:$0xff]
        %v377 = vld [vmem:[%s2 + $0x8] sm:$0xff]
        %v378 = vld [vmem:[%s2 + $0x10] sm:$0xff]
        %v379 = vld [vmem:[%s2 + $0x18] sm:$0xff]
        %v380 = vld [vmem:[%s2 + $0x20] sm:$0xff]
        %v381 = vld [vmem:[%s2 + $0x28] sm:$0xff]
        %v382 = vld [vmem:[%s2 + $0x30] sm:$0xff]
        %v383 = vld [vmem:[%s2 + $0x38] sm:$0xff]
        %s384 = scalar_lea.vmem %s1, 256
        %v385 = vld [vmem:[%s384] sm:$0xff]
        %v386 = vld [vmem:[%s384 + $0x8] sm:$0xff]
        %v387 = vld [vmem:[%s384 + $0x10] sm:$0xff]
        %v388 = vld [vmem:[%s384 + $0x18] sm:$0xff]
        %v389 = vld [vmem:[%s384 + $0x20] sm:$0xff]
        %v390 = vld [vmem:[%s384 + $0x28] sm:$0xff]
        %v391 = vld [vmem:[%s384 + $0x30] sm:$0xff]
        %v392 = vld [vmem:[%s384 + $0x38] sm:$0xff]
        %v393 = vld [vmem:[%s384 + $0x40] sm:$0xff]
        %v394 = vld [vmem:[%s384 + $0x48] sm:$0xff]
        %v395 = vld [vmem:[%s384 + $0x50] sm:$0xff]
        %v396 = vld [vmem:[%s384 + $0x58] sm:$0xff]
        %v397 = vld [vmem:[%s384 + $0x60] sm:$0xff]
        %v398 = vld [vmem:[%s384 + $0x68] sm:$0xff]
        %v399 = vld [vmem:[%s384 + $0x70] sm:$0xff]
        %v400 = vld [vmem:[%s384 + $0x78] sm:$0xff]
        %v401 = vld [vmem:[%s384 + $0x80] sm:$0xff]
        %v402 = vld [vmem:[%s384 + $0x88] sm:$0xff]
        %v403 = vld [vmem:[%s384 + $0x90] sm:$0xff]
        %v404 = vld [vmem:[%s384 + $0x98] sm:$0xff]
        %v405 = vld [vmem:[%s384 + $0xa0] sm:$0xff]
        %v406 = vld [vmem:[%s384 + $0xa8] sm:$0xff]
        %v407 = vld [vmem:[%s384 + $0xb0] sm:$0xff]
        %v408 = vld [vmem:[%s384 + $0xb8] sm:$0xff]
        %v409 = vld [vmem:[%s384 + $0xc0] sm:$0xff]
        %v410 = vld [vmem:[%s384 + $0xc8] sm:$0xff]
        %v411 = vld [vmem:[%s384 + $0xd0] sm:$0xff]
        %v412 = vld [vmem:[%s384 + $0xd8] sm:$0xff]
        %v413 = vld [vmem:[%s384 + $0xe0] sm:$0xff]
        %v414 = vld [vmem:[%s384 + $0xe8] sm:$0xff]
        %v415 = vld [vmem:[%s384 + $0xf0] sm:$0xff]
        %v416 = vld [vmem:[%s384 + $0xf8] sm:$0xff]
        %417 = vmatprep.subr.mxu0 0.0
        %418 = vmatpush1.msra.mxu0 %v400
        %419 = vmatprep.subr.mxu0 0.0
        %420 = vmatpush1.msra.mxu0 %v399
        %421 = vmatprep.subr.mxu0 0.0
        %422 = vmatpush1.msra.mxu0 %v398
        %423 = vmatprep.subr.mxu0 0.0
        %424 = vmatpush1.msra.mxu0 %v397
        %425 = vmatprep.subr.mxu0 0.0
        %426 = vmatpush1.msra.mxu0 %v396
        %427 = vmatprep.subr.mxu0 0.0
        %428 = vmatpush1.msra.mxu0 %v395
        %429 = vmatprep.subr.mxu0 0.0
        %430 = vmatpush1.msra.mxu0 %v394
        %431 = vmatprep.subr.mxu0 0.0
        %432 = vmatpush1.msra.mxu0 %v393
        %433 = vmatprep.subr.mxu0 0.0
        %434 = vmatpush1.msra.mxu0 %v392
        %435 = vmatprep.subr.mxu0 0.0
        %436 = vmatpush1.msra.mxu0 %v391
        %437 = vmatprep.subr.mxu0 0.0
        %438 = vmatpush1.msra.mxu0 %v390
        %439 = vmatprep.subr.mxu0 0.0
        %440 = vmatpush1.msra.mxu0 %v389
        %441 = vmatprep.subr.mxu0 0.0
        %442 = vmatpush1.msra.mxu0 %v388
        %443 = vmatprep.subr.mxu0 0.0
        %444 = vmatpush1.msra.mxu0 %v387
        %445 = vmatprep.subr.mxu0 0.0
        %446 = vmatpush1.msra.mxu0 %v386
        %447 = vmatprep.subr.mxu0 0.0
        %448 = vmatpush1.msra.mxu0 %v385
        %449 = vmatprep.subr.mxu0 0.0
        %450 = vmatpush2.msra.mxu0 %v416
        %451 = vmatprep.subr.mxu0 0.0
        %452 = vmatpush2.msra.mxu0 %v415
        %453 = vmatprep.subr.mxu0 0.0
        %454 = vmatpush2.msra.mxu0 %v414
        %455 = vmatprep.subr.mxu0 0.0
        %456 = vmatpush2.msra.mxu0 %v413
        %457 = vmatprep.subr.mxu0 0.0
        %458 = vmatpush2.msra.mxu0 %v412
        %459 = vmatprep.subr.mxu0 0.0
        %460 = vmatpush2.msra.mxu0 %v411
        %461 = vmatprep.subr.mxu0 0.0
        %462 = vmatpush2.msra.mxu0 %v410
        %463 = vmatprep.subr.mxu0 0.0
        %464 = vmatpush2.msra.mxu0 %v409
        %465 = vmatprep.subr.mxu0 0.0
        %466 = vmatpush2.msra.mxu0 %v408
        %467 = vmatprep.subr.mxu0 0.0
        %468 = vmatpush2.msra.mxu0 %v407
        %469 = vmatprep.subr.mxu0 0.0
        %470 = vmatpush2.msra.mxu0 %v406
        %471 = vmatprep.subr.mxu0 0.0
        %472 = vmatpush2.msra.mxu0 %v405
        %473 = vmatprep.subr.mxu0 0.0
        %474 = vmatpush2.msra.mxu0 %v404
        %475 = vmatprep.subr.mxu0 0.0
        %476 = vmatpush2.msra.mxu0 %v403
        %477 = vmatprep.subr.mxu0 0.0
        %478 = vmatpush2.msra.mxu0 %v402
        %479 = vmatprep.subr.mxu0 0.0
        %480 = vmatpush2.msra.mxu0 %v401
        %481 = vmatprep.mubr.f32.mxu0 %v224
        %482 = vmatmul.mubr.f32.gmra.mxu0 %v223
        %v483 = vpop.f32.mrf.mxu0
        %v484 = vadd.f32 0.0, %v483
        %v485 = vpop.f32.mrf.mxu0
        %486 = vmatprep.mubr.f32.mxu0 %v226
        %487 = vmatmul.mubr.f32.gmra.mxu0 %v225
        %v488 = vpop.f32.mrf.mxu0
        %v489 = vadd.f32 0.0, %v488
        %v490 = vpop.f32.mrf.mxu0
        %491 = vmatprep.mubr.f32.mxu0 %v228
        %492 = vmatmul.mubr.f32.gmra.mxu0 %v227
        %v493 = vpop.f32.mrf.mxu0
        %v494 = vadd.f32 0.0, %v493
        %v495 = vpop.f32.mrf.mxu0
        %496 = vmatprep.mubr.f32.mxu0 %v230
        %497 = vmatmul.mubr.f32.gmra.mxu0 %v229
        %v498 = vpop.f32.mrf.mxu0
        %v499 = vadd.f32 0.0, %v498
        %v500 = vpop.f32.mrf.mxu0
        %501 = vmatprep.mubr.f32.mxu0 %v232
        %502 = vmatmul.mubr.f32.gmra.mxu0 %v231
        %v503 = vpop.f32.mrf.mxu0
        %v504 = vadd.f32 0.0, %v503
        %v505 = vpop.f32.mrf.mxu0
        %506 = vmatprep.mubr.f32.mxu0 %v234
        %507 = vmatmul.mubr.f32.gmra.mxu0 %v233
        %v508 = vpop.f32.mrf.mxu0
        %v509 = vadd.f32 0.0, %v508
        %v510 = vpop.f32.mrf.mxu0
        %511 = vmatprep.mubr.f32.mxu0 %v236
        %512 = vmatmul.mubr.f32.gmra.mxu0 %v235
        %v513 = vpop.f32.mrf.mxu0
        %v514 = vadd.f32 0.0, %v513
        %v515 = vpop.f32.mrf.mxu0
        %516 = vmatprep.mubr.f32.mxu0 %v238
        %517 = vmatmul.mubr.f32.gmra.mxu0 %v237
        %v518 = vpop.f32.mrf.mxu0
        %v519 = vadd.f32 0.0, %v518
        %v520 = vpop.f32.mrf.mxu0
        %521 = vdwg.mxu0
        %s522 = scalar_lea.vmem %s2, 64
        %v523 = vld [vmem:[%s522] sm:$0xff]
        %v524 = vld [vmem:[%s522 + $0x8] sm:$0xff]
        %v525 = vld [vmem:[%s522 + $0x10] sm:$0xff]
        %v526 = vld [vmem:[%s522 + $0x18] sm:$0xff]
        %v527 = vld [vmem:[%s522 + $0x20] sm:$0xff]
        %v528 = vld [vmem:[%s522 + $0x28] sm:$0xff]
        %v529 = vld [vmem:[%s522 + $0x30] sm:$0xff]
        %v530 = vld [vmem:[%s522 + $0x38] sm:$0xff]
        %vm531 = vcmask 523264
        %v533 = vsel %vm531, %v523, 0
        %v536 = vsel %vm531, %v524, 0
        %v539 = vsel %vm531, %v525, 0
        %v542 = vsel %vm531, %v526, 0
        %v545 = vsel %vm531, %v527, 0
        %v548 = vsel %vm531, %v528, 0
        %v551 = vsel %vm531, %v529, 0
        %v554 = vsel %vm531, %v530, 0
        %556 = vmatprep.subr.mxu0 0.0
        %557 = vmatpush1.msra.mxu0 0.0
        %558 = vmatprep.subr.mxu0 0.0
        %559 = vmatpush1.msra.mxu0 0.0
        %560 = vmatprep.subr.mxu0 0.0
        %561 = vmatpush1.msra.mxu0 0.0
        %562 = vmatprep.subr.mxu0 0.0
        %563 = vmatpush1.msra.mxu0 0.0
        %564 = vmatprep.subr.mxu0 0.0
        %565 = vmatpush1.msra.mxu0 0.0
        %566 = vmatprep.subr.mxu0 0.0
        %567 = vmatpush1.msra.mxu0 0.0
        %568 = vmatprep.subr.mxu0 0.0
        %569 = vmatpush1.msra.mxu0 0.0
        %570 = vmatprep.subr.mxu0 0.0
        %571 = vmatpush1.msra.mxu0 0.0
        %572 = vmatprep.subr.mxu0 0.0
        %573 = vmatpush1.msra.mxu0 %v519
        %574 = vmatprep.subr.mxu0 0.0
        %575 = vmatpush1.msra.mxu0 %v514
        %576 = vmatprep.subr.mxu0 0.0
        %577 = vmatpush1.msra.mxu0 %v509
        %578 = vmatprep.subr.mxu0 0.0
        %579 = vmatpush1.msra.mxu0 %v504
        %580 = vmatprep.subr.mxu0 0.0
        %581 = vmatpush1.msra.mxu0 %v499
        %582 = vmatprep.subr.mxu0 0.0
        %583 = vmatpush1.msra.mxu0 %v494
        %584 = vmatprep.subr.mxu0 0.0
        %585 = vmatpush1.msra.mxu0 %v489
        %586 = vmatprep.subr.mxu0 0.0
        %587 = vmatpush1.msra.mxu0 %v484
        %588 = vmatprep.subr.mxu0 0.0
        %589 = vmatpush2.msra.mxu0 0.0
        %590 = vmatprep.subr.mxu0 0.0
        %591 = vmatpush2.msra.mxu0 0.0
        %592 = vmatprep.subr.mxu0 0.0
        %593 = vmatpush2.msra.mxu0 0.0
        %594 = vmatprep.subr.mxu0 0.0
        %595 = vmatpush2.msra.mxu0 0.0
        %596 = vmatprep.subr.mxu0 0.0
        %597 = vmatpush2.msra.mxu0 0.0
        %598 = vmatprep.subr.mxu0 0.0
        %599 = vmatpush2.msra.mxu0 0.0
        %600 = vmatprep.subr.mxu0 0.0
        %601 = vmatpush2.msra.mxu0 0.0
        %602 = vmatprep.subr.mxu0 0.0
        %603 = vmatpush2.msra.mxu0 0.0
        %604 = vmatprep.subr.mxu0 0.0
        %605 = vmatpush2.msra.mxu0 0.0
        %606 = vmatprep.subr.mxu0 0.0
        %607 = vmatpush2.msra.mxu0 0.0
        %608 = vmatprep.subr.mxu0 0.0
        %609 = vmatpush2.msra.mxu0 0.0
        %610 = vmatprep.subr.mxu0 0.0
        %611 = vmatpush2.msra.mxu0 0.0
        %612 = vmatprep.subr.mxu0 0.0
        %613 = vmatpush2.msra.mxu0 0.0
        %614 = vmatprep.subr.mxu0 0.0
        %615 = vmatpush2.msra.mxu0 0.0
        %616 = vmatprep.subr.mxu0 0.0
        %617 = vmatpush2.msra.mxu0 0.0
        %618 = vmatprep.subr.mxu0 0.0
        %619 = vmatpush2.msra.mxu0 0.0
        %620 = vmatprep.mubr.f32.mxu0 0.0
        %621 = vmatmul.mubr.f32.gmra.mxu0 %v533
        %v622 = vpop.f32.mrf.mxu0
        %v623 = vadd.f32 0.0, %v622
        %v624 = vpop.f32.mrf.mxu0
        %625 = vmatprep.mubr.f32.mxu0 0.0
        %626 = vmatmul.mubr.f32.gmra.mxu0 %v536
        %v627 = vpop.f32.mrf.mxu0
        %v628 = vadd.f32 0.0, %v627
        %v629 = vpop.f32.mrf.mxu0
        %630 = vmatprep.mubr.f32.mxu0 0.0
        %631 = vmatmul.mubr.f32.gmra.mxu0 %v539
        %v632 = vpop.f32.mrf.mxu0
        %v633 = vadd.f32 0.0, %v632
        %v634 = vpop.f32.mrf.mxu0
        %635 = vmatprep.mubr.f32.mxu0 0.0
        %636 = vmatmul.mubr.f32.gmra.mxu0 %v542
        %v637 = vpop.f32.mrf.mxu0
        %v638 = vadd.f32 0.0, %v637
        %v639 = vpop.f32.mrf.mxu0
        %640 = vmatprep.mubr.f32.mxu0 0.0
        %641 = vmatmul.mubr.f32.gmra.mxu0 %v545
        %v642 = vpop.f32.mrf.mxu0
        %v643 = vadd.f32 0.0, %v642
        %v644 = vpop.f32.mrf.mxu0
        %645 = vmatprep.mubr.f32.mxu0 0.0
        %646 = vmatmul.mubr.f32.gmra.mxu0 %v548
        %v647 = vpop.f32.mrf.mxu0
        %v648 = vadd.f32 0.0, %v647
        %v649 = vpop.f32.mrf.mxu0
        %650 = vmatprep.mubr.f32.mxu0 0.0
        %651 = vmatmul.mubr.f32.gmra.mxu0 %v551
        %v652 = vpop.f32.mrf.mxu0
        %v653 = vadd.f32 0.0, %v652
        %v654 = vpop.f32.mrf.mxu0
        %655 = vmatprep.mubr.f32.mxu0 0.0
        %656 = vmatmul.mubr.f32.gmra.mxu0 %v554
        %v657 = vpop.f32.mrf.mxu0
        %v658 = vadd.f32 0.0, %v657
        %v659 = vpop.f32.mrf.mxu0
        %660 = vdwg.mxu0
        %v662 = vsel %vm531, %v376, 0
        %v665 = vsel %vm531, %v377, 0
        %v668 = vsel %vm531, %v378, 0
        %v671 = vsel %vm531, %v379, 0
        %v674 = vsel %vm531, %v380, 0
        %v677 = vsel %vm531, %v381, 0
        %v680 = vsel %vm531, %v382, 0
        %v683 = vsel %vm531, %v383, 0
        %685 = vmatprep.subr.mxu0 0.0
        %686 = vmatpush1.msra.mxu0 0.0
        %687 = vmatprep.subr.mxu0 0.0
        %688 = vmatpush1.msra.mxu0 0.0
        %689 = vmatprep.subr.mxu0 0.0
        %690 = vmatpush1.msra.mxu0 0.0
        %691 = vmatprep.subr.mxu0 0.0
        %692 = vmatpush1.msra.mxu0 0.0
        %693 = vmatprep.subr.mxu0 0.0
        %694 = vmatpush1.msra.mxu0 0.0
        %695 = vmatprep.subr.mxu0 0.0
        %696 = vmatpush1.msra.mxu0 0.0
        %697 = vmatprep.subr.mxu0 0.0
        %698 = vmatpush1.msra.mxu0 0.0
        %699 = vmatprep.subr.mxu0 0.0
        %700 = vmatpush1.msra.mxu0 0.0
        %701 = vmatprep.subr.mxu0 0.0
        %702 = vmatpush1.msra.mxu0 %v373
        %703 = vmatprep.subr.mxu0 0.0
        %704 = vmatpush1.msra.mxu0 %v368
        %705 = vmatprep.subr.mxu0 0.0
        %706 = vmatpush1.msra.mxu0 %v363
        %707 = vmatprep.subr.mxu0 0.0
        %708 = vmatpush1.msra.mxu0 %v358
        %709 = vmatprep.subr.mxu0 0.0
        %710 = vmatpush1.msra.mxu0 %v353
        %711 = vmatprep.subr.mxu0 0.0
        %712 = vmatpush1.msra.mxu0 %v348
        %713 = vmatprep.subr.mxu0 0.0
        %714 = vmatpush1.msra.mxu0 %v343
        %715 = vmatprep.subr.mxu0 0.0
        %716 = vmatpush1.msra.mxu0 %v338
        %717 = vmatprep.subr.mxu0 0.0
        %718 = vmatpush2.msra.mxu0 0.0
        %719 = vmatprep.subr.mxu0 0.0
        %720 = vmatpush2.msra.mxu0 0.0
        %721 = vmatprep.subr.mxu0 0.0
        %722 = vmatpush2.msra.mxu0 0.0
        %723 = vmatprep.subr.mxu0 0.0
        %724 = vmatpush2.msra.mxu0 0.0
        %725 = vmatprep.subr.mxu0 0.0
        %726 = vmatpush2.msra.mxu0 0.0
        %727 = vmatprep.subr.mxu0 0.0
        %728 = vmatpush2.msra.mxu0 0.0
        %729 = vmatprep.subr.mxu0 0.0
        %730 = vmatpush2.msra.mxu0 0.0
        %731 = vmatprep.subr.mxu0 0.0
        %732 = vmatpush2.msra.mxu0 0.0
        %733 = vmatprep.subr.mxu0 0.0
        %734 = vmatpush2.msra.mxu0 0.0
        %735 = vmatprep.subr.mxu0 0.0
        %736 = vmatpush2.msra.mxu0 0.0
        %737 = vmatprep.subr.mxu0 0.0
        %738 = vmatpush2.msra.mxu0 0.0
        %739 = vmatprep.subr.mxu0 0.0
        %740 = vmatpush2.msra.mxu0 0.0
        %741 = vmatprep.subr.mxu0 0.0
        %742 = vmatpush2.msra.mxu0 0.0
        %743 = vmatprep.subr.mxu0 0.0
        %744 = vmatpush2.msra.mxu0 0.0
        %745 = vmatprep.subr.mxu0 0.0
        %746 = vmatpush2.msra.mxu0 0.0
        %747 = vmatprep.subr.mxu0 0.0
        %748 = vmatpush2.msra.mxu0 0.0
        %749 = vmatprep.mubr.f32.mxu0 0.0
        %750 = vmatmul.mubr.f32.gmra.mxu0 %v662
        %v751 = vpop.f32.mrf.mxu0
        %v752 = vadd.f32 %v623, %v751
        %v753 = vpop.f32.mrf.mxu0
        %754 = vmatprep.mubr.f32.mxu0 0.0
        %755 = vmatmul.mubr.f32.gmra.mxu0 %v665
        %v756 = vpop.f32.mrf.mxu0
        %v757 = vadd.f32 %v628, %v756
        %v758 = vpop.f32.mrf.mxu0
        %759 = vmatprep.mubr.f32.mxu0 0.0
        %760 = vmatmul.mubr.f32.gmra.mxu0 %v668
        %v761 = vpop.f32.mrf.mxu0
        %v762 = vadd.f32 %v633, %v761
        %v763 = vpop.f32.mrf.mxu0
        %764 = vmatprep.mubr.f32.mxu0 0.0
        %765 = vmatmul.mubr.f32.gmra.mxu0 %v671
        %v766 = vpop.f32.mrf.mxu0
        %v767 = vadd.f32 %v638, %v766
        %v768 = vpop.f32.mrf.mxu0
        %769 = vmatprep.mubr.f32.mxu0 0.0
        %770 = vmatmul.mubr.f32.gmra.mxu0 %v674
        %v771 = vpop.f32.mrf.mxu0
        %v772 = vadd.f32 %v643, %v771
        %v773 = vpop.f32.mrf.mxu0
        %774 = vmatprep.mubr.f32.mxu0 0.0
        %775 = vmatmul.mubr.f32.gmra.mxu0 %v677
        %v776 = vpop.f32.mrf.mxu0
        %v777 = vadd.f32 %v648, %v776
        %v778 = vpop.f32.mrf.mxu0
        %779 = vmatprep.mubr.f32.mxu0 0.0
        %780 = vmatmul.mubr.f32.gmra.mxu0 %v680
        %v781 = vpop.f32.mrf.mxu0
        %v782 = vadd.f32 %v653, %v781
        %v783 = vpop.f32.mrf.mxu0
        %784 = vmatprep.mubr.f32.mxu0 0.0
        %785 = vmatmul.mubr.f32.gmra.mxu0 %v683
        %v786 = vpop.f32.mrf.mxu0
        %v787 = vadd.f32 %v658, %v786
        %v788 = vpop.f32.mrf.mxu0
        %789 = vdwg.mxu0
        %s790 = scalar_lea.vmem %s1, 512
        %v791 = vld [vmem:[%s790] sm:$0xff]
        %v792 = vld [vmem:[%s790 + $0x8] sm:$0xff]
        %v793 = vld [vmem:[%s790 + $0x10] sm:$0xff]
        %v794 = vld [vmem:[%s790 + $0x18] sm:$0xff]
        %v795 = vld [vmem:[%s790 + $0x20] sm:$0xff]
        %v796 = vld [vmem:[%s790 + $0x28] sm:$0xff]
        %v797 = vld [vmem:[%s790 + $0x30] sm:$0xff]
        %v798 = vld [vmem:[%s790 + $0x38] sm:$0xff]
        %v799 = vld [vmem:[%s790 + $0x40] sm:$0xff]
        %v800 = vld [vmem:[%s790 + $0x48] sm:$0xff]
        %v801 = vld [vmem:[%s790 + $0x50] sm:$0xff]
        %v802 = vld [vmem:[%s790 + $0x58] sm:$0xff]
        %v803 = vld [vmem:[%s790 + $0x60] sm:$0xff]
        %v804 = vld [vmem:[%s790 + $0x68] sm:$0xff]
        %v805 = vld [vmem:[%s790 + $0x70] sm:$0xff]
        %v806 = vld [vmem:[%s790 + $0x78] sm:$0xff]
        %v807 = vld [vmem:[%s790 + $0x80] sm:$0xff]
        %v808 = vld [vmem:[%s790 + $0x88] sm:$0xff]
        %v809 = vld [vmem:[%s790 + $0x90] sm:$0xff]
        %v810 = vld [vmem:[%s790 + $0x98] sm:$0xff]
        %v811 = vld [vmem:[%s790 + $0xa0] sm:$0xff]
        %v812 = vld [vmem:[%s790 + $0xa8] sm:$0xff]
        %v813 = vld [vmem:[%s790 + $0xb0] sm:$0xff]
        %v814 = vld [vmem:[%s790 + $0xb8] sm:$0xff]
        %v815 = vld [vmem:[%s790 + $0xc0] sm:$0xff]
        %v816 = vld [vmem:[%s790 + $0xc8] sm:$0xff]
        %v817 = vld [vmem:[%s790 + $0xd0] sm:$0xff]
        %v818 = vld [vmem:[%s790 + $0xd8] sm:$0xff]
        %v819 = vld [vmem:[%s790 + $0xe0] sm:$0xff]
        %v820 = vld [vmem:[%s790 + $0xe8] sm:$0xff]
        %v821 = vld [vmem:[%s790 + $0xf0] sm:$0xff]
        %v822 = vld [vmem:[%s790 + $0xf8] sm:$0xff]
        %823 = vmatprep.subr.mxu0 0.0
        %824 = vmatpush1.msra.mxu0 %v806
        %825 = vmatprep.subr.mxu0 0.0
        %826 = vmatpush1.msra.mxu0 %v805
        %827 = vmatprep.subr.mxu0 0.0
        %828 = vmatpush1.msra.mxu0 %v804
        %829 = vmatprep.subr.mxu0 0.0
        %830 = vmatpush1.msra.mxu0 %v803
        %831 = vmatprep.subr.mxu0 0.0
        %832 = vmatpush1.msra.mxu0 %v802
        %833 = vmatprep.subr.mxu0 0.0
        %834 = vmatpush1.msra.mxu0 %v801
        %835 = vmatprep.subr.mxu0 0.0
        %836 = vmatpush1.msra.mxu0 %v800
        %837 = vmatprep.subr.mxu0 0.0
        %838 = vmatpush1.msra.mxu0 %v799
        %839 = vmatprep.subr.mxu0 0.0
        %840 = vmatpush1.msra.mxu0 %v798
        %841 = vmatprep.subr.mxu0 0.0
        %842 = vmatpush1.msra.mxu0 %v797
        %843 = vmatprep.subr.mxu0 0.0
        %844 = vmatpush1.msra.mxu0 %v796
        %845 = vmatprep.subr.mxu0 0.0
        %846 = vmatpush1.msra.mxu0 %v795
        %847 = vmatprep.subr.mxu0 0.0
        %848 = vmatpush1.msra.mxu0 %v794
        %849 = vmatprep.subr.mxu0 0.0
        %850 = vmatpush1.msra.mxu0 %v793
        %851 = vmatprep.subr.mxu0 0.0
        %852 = vmatpush1.msra.mxu0 %v792
        %853 = vmatprep.subr.mxu0 0.0
        %854 = vmatpush1.msra.mxu0 %v791
        %855 = vmatprep.subr.mxu0 0.0
        %856 = vmatpush2.msra.mxu0 %v822
        %857 = vmatprep.subr.mxu0 0.0
        %858 = vmatpush2.msra.mxu0 %v821
        %859 = vmatprep.subr.mxu0 0.0
        %860 = vmatpush2.msra.mxu0 %v820
        %861 = vmatprep.subr.mxu0 0.0
        %862 = vmatpush2.msra.mxu0 %v819
        %863 = vmatprep.subr.mxu0 0.0
        %864 = vmatpush2.msra.mxu0 %v818
        %865 = vmatprep.subr.mxu0 0.0
        %866 = vmatpush2.msra.mxu0 %v817
        %867 = vmatprep.subr.mxu0 0.0
        %868 = vmatpush2.msra.mxu0 %v816
        %869 = vmatprep.subr.mxu0 0.0
        %870 = vmatpush2.msra.mxu0 %v815
        %871 = vmatprep.subr.mxu0 0.0
        %872 = vmatpush2.msra.mxu0 %v814
        %873 = vmatprep.subr.mxu0 0.0
        %874 = vmatpush2.msra.mxu0 %v813
        %875 = vmatprep.subr.mxu0 0.0
        %876 = vmatpush2.msra.mxu0 %v812
        %877 = vmatprep.subr.mxu0 0.0
        %878 = vmatpush2.msra.mxu0 %v811
        %879 = vmatprep.subr.mxu0 0.0
        %880 = vmatpush2.msra.mxu0 %v810
        %881 = vmatprep.subr.mxu0 0.0
        %882 = vmatpush2.msra.mxu0 %v809
        %883 = vmatprep.subr.mxu0 0.0
        %884 = vmatpush2.msra.mxu0 %v808
        %885 = vmatprep.subr.mxu0 0.0
        %886 = vmatpush2.msra.mxu0 %v807
        %887 = vmatprep.mubr.f32.mxu0 %v224
        %888 = vmatmul.mubr.f32.gmra.mxu0 %v223
        %v889 = vpop.f32.mrf.mxu0
        %v890 = vadd.f32 0.0, %v889
        %v891 = vpop.f32.mrf.mxu0
        %892 = vmatprep.mubr.f32.mxu0 %v226
        %893 = vmatmul.mubr.f32.gmra.mxu0 %v225
        %v894 = vpop.f32.mrf.mxu0
        %v895 = vadd.f32 0.0, %v894
        %v896 = vpop.f32.mrf.mxu0
        %897 = vmatprep.mubr.f32.mxu0 %v228
        %898 = vmatmul.mubr.f32.gmra.mxu0 %v227
        %v899 = vpop.f32.mrf.mxu0
        %v900 = vadd.f32 0.0, %v899
        %v901 = vpop.f32.mrf.mxu0
        %902 = vmatprep.mubr.f32.mxu0 %v230
        %903 = vmatmul.mubr.f32.gmra.mxu0 %v229
        %v904 = vpop.f32.mrf.mxu0
        %v905 = vadd.f32 0.0, %v904
        %v906 = vpop.f32.mrf.mxu0
        %907 = vmatprep.mubr.f32.mxu0 %v232
        %908 = vmatmul.mubr.f32.gmra.mxu0 %v231
        %v909 = vpop.f32.mrf.mxu0
        %v910 = vadd.f32 0.0, %v909
        %v911 = vpop.f32.mrf.mxu0
        %912 = vmatprep.mubr.f32.mxu0 %v234
        %913 = vmatmul.mubr.f32.gmra.mxu0 %v233
        %v914 = vpop.f32.mrf.mxu0
        %v915 = vadd.f32 0.0, %v914
        %v916 = vpop.f32.mrf.mxu0
        %917 = vmatprep.mubr.f32.mxu0 %v236
        %918 = vmatmul.mubr.f32.gmra.mxu0 %v235
        %v919 = vpop.f32.mrf.mxu0
        %v920 = vadd.f32 0.0, %v919
        %v921 = vpop.f32.mrf.mxu0
        %922 = vmatprep.mubr.f32.mxu0 %v238
        %923 = vmatmul.mubr.f32.gmra.mxu0 %v237
        %v924 = vpop.f32.mrf.mxu0
        %v925 = vadd.f32 0.0, %v924
        %v926 = vpop.f32.mrf.mxu0
        %927 = vdwg.mxu0
        %s928 = scalar_lea.vmem %s2, 128
        %v929 = vld [vmem:[%s928] sm:$0xff]
        %v930 = vld [vmem:[%s928 + $0x8] sm:$0xff]
        %v931 = vld [vmem:[%s928 + $0x10] sm:$0xff]
        %v932 = vld [vmem:[%s928 + $0x18] sm:$0xff]
        %v933 = vld [vmem:[%s928 + $0x20] sm:$0xff]
        %v934 = vld [vmem:[%s928 + $0x28] sm:$0xff]
        %v935 = vld [vmem:[%s928 + $0x30] sm:$0xff]
        %v936 = vld [vmem:[%s928 + $0x38] sm:$0xff]
        %v938 = vsel %vm531, %v929, 0
        %v941 = vsel %vm531, %v930, 0
        %v944 = vsel %vm531, %v931, 0
        %v947 = vsel %vm531, %v932, 0
        %v950 = vsel %vm531, %v933, 0
        %v953 = vsel %vm531, %v934, 0
        %v956 = vsel %vm531, %v935, 0
        %v959 = vsel %vm531, %v936, 0
        %961 = vmatprep.subr.mxu0 0.0
        %962 = vmatpush1.msra.mxu0 0.0
        %963 = vmatprep.subr.mxu0 0.0
        %964 = vmatpush1.msra.mxu0 0.0
        %965 = vmatprep.subr.mxu0 0.0
        %966 = vmatpush1.msra.mxu0 0.0
        %967 = vmatprep.subr.mxu0 0.0
        %968 = vmatpush1.msra.mxu0 0.0
        %969 = vmatprep.subr.mxu0 0.0
        %970 = vmatpush1.msra.mxu0 0.0
        %971 = vmatprep.subr.mxu0 0.0
        %972 = vmatpush1.msra.mxu0 0.0
        %973 = vmatprep.subr.mxu0 0.0
        %974 = vmatpush1.msra.mxu0 0.0
        %975 = vmatprep.subr.mxu0 0.0
        %976 = vmatpush1.msra.mxu0 0.0
        %977 = vmatprep.subr.mxu0 0.0
        %978 = vmatpush1.msra.mxu0 %v925
        %979 = vmatprep.subr.mxu0 0.0
        %980 = vmatpush1.msra.mxu0 %v920
        %981 = vmatprep.subr.mxu0 0.0
        %982 = vmatpush1.msra.mxu0 %v915
        %983 = vmatprep.subr.mxu0 0.0
        %984 = vmatpush1.msra.mxu0 %v910
        %985 = vmatprep.subr.mxu0 0.0
        %986 = vmatpush1.msra.mxu0 %v905
        %987 = vmatprep.subr.mxu0 0.0
        %988 = vmatpush1.msra.mxu0 %v900
        %989 = vmatprep.subr.mxu0 0.0
        %990 = vmatpush1.msra.mxu0 %v895
        %991 = vmatprep.subr.mxu0 0.0
        %992 = vmatpush1.msra.mxu0 %v890
        %993 = vmatprep.subr.mxu0 0.0
        %994 = vmatpush2.msra.mxu0 0.0
        %995 = vmatprep.subr.mxu0 0.0
        %996 = vmatpush2.msra.mxu0 0.0
        %997 = vmatprep.subr.mxu0 0.0
        %998 = vmatpush2.msra.mxu0 0.0
        %999 = vmatprep.subr.mxu0 0.0
        %1000 = vmatpush2.msra.mxu0 0.0
        %1001 = vmatprep.subr.mxu0 0.0
        %1002 = vmatpush2.msra.mxu0 0.0
        %1003 = vmatprep.subr.mxu0 0.0
        %1004 = vmatpush2.msra.mxu0 0.0
        %1005 = vmatprep.subr.mxu0 0.0
        %1006 = vmatpush2.msra.mxu0 0.0
        %1007 = vmatprep.subr.mxu0 0.0
        %1008 = vmatpush2.msra.mxu0 0.0
        %1009 = vmatprep.subr.mxu0 0.0
        %1010 = vmatpush2.msra.mxu0 0.0
        %1011 = vmatprep.subr.mxu0 0.0
        %1012 = vmatpush2.msra.mxu0 0.0
        %1013 = vmatprep.subr.mxu0 0.0
        %1014 = vmatpush2.msra.mxu0 0.0
        %1015 = vmatprep.subr.mxu0 0.0
        %1016 = vmatpush2.msra.mxu0 0.0
        %1017 = vmatprep.subr.mxu0 0.0
        %1018 = vmatpush2.msra.mxu0 0.0
        %1019 = vmatprep.subr.mxu0 0.0
        %1020 = vmatpush2.msra.mxu0 0.0
        %1021 = vmatprep.subr.mxu0 0.0
        %1022 = vmatpush2.msra.mxu0 0.0
        %1023 = vmatprep.subr.mxu0 0.0
        %1024 = vmatpush2.msra.mxu0 0.0
        %1025 = vmatprep.mubr.f32.mxu0 0.0
        %1026 = vmatmul.mubr.f32.gmra.mxu0 %v938
        %v1027 = vpop.f32.mrf.mxu0
        %v1028 = vadd.f32 0.0, %v1027
        %v1029 = vpop.f32.mrf.mxu0
        %1030 = vmatprep.mubr.f32.mxu0 0.0
        %1031 = vmatmul.mubr.f32.gmra.mxu0 %v941
        %v1032 = vpop.f32.mrf.mxu0
        %v1033 = vadd.f32 0.0, %v1032
        %v1034 = vpop.f32.mrf.mxu0
        %1035 = vmatprep.mubr.f32.mxu0 0.0
        %1036 = vmatmul.mubr.f32.gmra.mxu0 %v944
        %v1037 = vpop.f32.mrf.mxu0
        %v1038 = vadd.f32 0.0, %v1037
        %v1039 = vpop.f32.mrf.mxu0
        %1040 = vmatprep.mubr.f32.mxu0 0.0
        %1041 = vmatmul.mubr.f32.gmra.mxu0 %v947
        %v1042 = vpop.f32.mrf.mxu0
        %v1043 = vadd.f32 0.0, %v1042
        %v1044 = vpop.f32.mrf.mxu0
        %1045 = vmatprep.mubr.f32.mxu0 0.0
        %1046 = vmatmul.mubr.f32.gmra.mxu0 %v950
        %v1047 = vpop.f32.mrf.mxu0
        %v1048 = vadd.f32 0.0, %v1047
        %v1049 = vpop.f32.mrf.mxu0
        %1050 = vmatprep.mubr.f32.mxu0 0.0
        %1051 = vmatmul.mubr.f32.gmra.mxu0 %v953
        %v1052 = vpop.f32.mrf.mxu0
        %v1053 = vadd.f32 0.0, %v1052
        %v1054 = vpop.f32.mrf.mxu0
        %1055 = vmatprep.mubr.f32.mxu0 0.0
        %1056 = vmatmul.mubr.f32.gmra.mxu0 %v956
        %v1057 = vpop.f32.mrf.mxu0
        %v1058 = vadd.f32 0.0, %v1057
        %v1059 = vpop.f32.mrf.mxu0
        %1060 = vmatprep.mubr.f32.mxu0 0.0
        %1061 = vmatmul.mubr.f32.gmra.mxu0 %v959
        %v1062 = vpop.f32.mrf.mxu0
        %v1063 = vadd.f32 0.0, %v1062
        %v1064 = vpop.f32.mrf.mxu0
        %1065 = vdwg.mxu0
        %v1066 = vadd.f32 %v752, %v1028
        %v1067 = vadd.f32 %v757, %v1033
        %v1068 = vadd.f32 %v762, %v1038
        %v1069 = vadd.f32 %v767, %v1043
        %v1070 = vadd.f32 %v772, %v1048
        %v1071 = vadd.f32 %v777, %v1053
        %v1072 = vadd.f32 %v782, %v1058
        %v1073 = vadd.f32 %v787, %v1063
        %s1074 = scalar_lea.vmem %s1, 768
        %v1075 = vld [vmem:[%s1074] sm:$0xff]
        %v1076 = vld [vmem:[%s1074 + $0x8] sm:$0xff]
        %v1077 = vld [vmem:[%s1074 + $0x10] sm:$0xff]
        %v1078 = vld [vmem:[%s1074 + $0x18] sm:$0xff]
        %v1079 = vld [vmem:[%s1074 + $0x20] sm:$0xff]
        %v1080 = vld [vmem:[%s1074 + $0x28] sm:$0xff]
        %v1081 = vld [vmem:[%s1074 + $0x30] sm:$0xff]
        %v1082 = vld [vmem:[%s1074 + $0x38] sm:$0xff]
        %v1083 = vld [vmem:[%s1074 + $0x40] sm:$0xff]
        %v1084 = vld [vmem:[%s1074 + $0x48] sm:$0xff]
        %v1085 = vld [vmem:[%s1074 + $0x50] sm:$0xff]
        %v1086 = vld [vmem:[%s1074 + $0x58] sm:$0xff]
        %v1087 = vld [vmem:[%s1074 + $0x60] sm:$0xff]
        %v1088 = vld [vmem:[%s1074 + $0x68] sm:$0xff]
        %v1089 = vld [vmem:[%s1074 + $0x70] sm:$0xff]
        %v1090 = vld [vmem:[%s1074 + $0x78] sm:$0xff]
        %v1091 = vld [vmem:[%s1074 + $0x80] sm:$0xff]
        %v1092 = vld [vmem:[%s1074 + $0x88] sm:$0xff]
        %v1093 = vld [vmem:[%s1074 + $0x90] sm:$0xff]
        %v1094 = vld [vmem:[%s1074 + $0x98] sm:$0xff]
        %v1095 = vld [vmem:[%s1074 + $0xa0] sm:$0xff]
        %v1096 = vld [vmem:[%s1074 + $0xa8] sm:$0xff]
        %v1097 = vld [vmem:[%s1074 + $0xb0] sm:$0xff]
        %v1098 = vld [vmem:[%s1074 + $0xb8] sm:$0xff]
        %v1099 = vld [vmem:[%s1074 + $0xc0] sm:$0xff]
        %v1100 = vld [vmem:[%s1074 + $0xc8] sm:$0xff]
        %v1101 = vld [vmem:[%s1074 + $0xd0] sm:$0xff]
        %v1102 = vld [vmem:[%s1074 + $0xd8] sm:$0xff]
        %v1103 = vld [vmem:[%s1074 + $0xe0] sm:$0xff]
        %v1104 = vld [vmem:[%s1074 + $0xe8] sm:$0xff]
        %v1105 = vld [vmem:[%s1074 + $0xf0] sm:$0xff]
        %v1106 = vld [vmem:[%s1074 + $0xf8] sm:$0xff]
        %1107 = vmatprep.subr.mxu0 0.0
        %1108 = vmatpush1.msra.mxu0 %v1090
        %1109 = vmatprep.subr.mxu0 0.0
        %1110 = vmatpush1.msra.mxu0 %v1089
        %1111 = vmatprep.subr.mxu0 0.0
        %1112 = vmatpush1.msra.mxu0 %v1088
        %1113 = vmatprep.subr.mxu0 0.0
        %1114 = vmatpush1.msra.mxu0 %v1087
        %1115 = vmatprep.subr.mxu0 0.0
        %1116 = vmatpush1.msra.mxu0 %v1086
        %1117 = vmatprep.subr.mxu0 0.0
        %1118 = vmatpush1.msra.mxu0 %v1085
        %1119 = vmatprep.subr.mxu0 0.0
        %1120 = vmatpush1.msra.mxu0 %v1084
        %1121 = vmatprep.subr.mxu0 0.0
        %1122 = vmatpush1.msra.mxu0 %v1083
        %1123 = vmatprep.subr.mxu0 0.0
        %1124 = vmatpush1.msra.mxu0 %v1082
        %1125 = vmatprep.subr.mxu0 0.0
        %1126 = vmatpush1.msra.mxu0 %v1081
        %1127 = vmatprep.subr.mxu0 0.0
        %1128 = vmatpush1.msra.mxu0 %v1080
        %1129 = vmatprep.subr.mxu0 0.0
        %1130 = vmatpush1.msra.mxu0 %v1079
        %1131 = vmatprep.subr.mxu0 0.0
        %1132 = vmatpush1.msra.mxu0 %v1078
        %1133 = vmatprep.subr.mxu0 0.0
        %1134 = vmatpush1.msra.mxu0 %v1077
        %1135 = vmatprep.subr.mxu0 0.0
        %1136 = vmatpush1.msra.mxu0 %v1076
        %1137 = vmatprep.subr.mxu0 0.0
        %1138 = vmatpush1.msra.mxu0 %v1075
        %1139 = vmatprep.subr.mxu0 0.0
        %1140 = vmatpush2.msra.mxu0 %v1106
        %1141 = vmatprep.subr.mxu0 0.0
        %1142 = vmatpush2.msra.mxu0 %v1105
        %1143 = vmatprep.subr.mxu0 0.0
        %1144 = vmatpush2.msra.mxu0 %v1104
        %1145 = vmatprep.subr.mxu0 0.0
        %1146 = vmatpush2.msra.mxu0 %v1103
        %1147 = vmatprep.subr.mxu0 0.0
        %1148 = vmatpush2.msra.mxu0 %v1102
        %1149 = vmatprep.subr.mxu0 0.0
        %1150 = vmatpush2.msra.mxu0 %v1101
        %1151 = vmatprep.subr.mxu0 0.0
        %1152 = vmatpush2.msra.mxu0 %v1100
        %1153 = vmatprep.subr.mxu0 0.0
        %1154 = vmatpush2.msra.mxu0 %v1099
        %1155 = vmatprep.subr.mxu0 0.0
        %1156 = vmatpush2.msra.mxu0 %v1098
        %1157 = vmatprep.subr.mxu0 0.0
        %1158 = vmatpush2.msra.mxu0 %v1097
        %1159 = vmatprep.subr.mxu0 0.0
        %1160 = vmatpush2.msra.mxu0 %v1096
        %1161 = vmatprep.subr.mxu0 0.0
        %1162 = vmatpush2.msra.mxu0 %v1095
        %1163 = vmatprep.subr.mxu0 0.0
        %1164 = vmatpush2.msra.mxu0 %v1094
        %1165 = vmatprep.subr.mxu0 0.0
        %1166 = vmatpush2.msra.mxu0 %v1093
        %1167 = vmatprep.subr.mxu0 0.0
        %1168 = vmatpush2.msra.mxu0 %v1092
        %1169 = vmatprep.subr.mxu0 0.0
        %1170 = vmatpush2.msra.mxu0 %v1091
        %1171 = vmatprep.mubr.f32.mxu0 %v224
        %1172 = vmatmul.mubr.f32.gmra.mxu0 %v223
        %v1173 = vpop.f32.mrf.mxu0
        %v1174 = vadd.f32 0.0, %v1173
        %v1175 = vpop.f32.mrf.mxu0
        %1176 = vmatprep.mubr.f32.mxu0 %v226
        %1177 = vmatmul.mubr.f32.gmra.mxu0 %v225
        %v1178 = vpop.f32.mrf.mxu0
        %v1179 = vadd.f32 0.0, %v1178
        %v1180 = vpop.f32.mrf.mxu0
        %1181 = vmatprep.mubr.f32.mxu0 %v228
        %1182 = vmatmul.mubr.f32.gmra.mxu0 %v227
        %v1183 = vpop.f32.mrf.mxu0
        %v1184 = vadd.f32 0.0, %v1183
        %v1185 = vpop.f32.mrf.mxu0
        %1186 = vmatprep.mubr.f32.mxu0 %v230
        %1187 = vmatmul.mubr.f32.gmra.mxu0 %v229
        %v1188 = vpop.f32.mrf.mxu0
        %v1189 = vadd.f32 0.0, %v1188
        %v1190 = vpop.f32.mrf.mxu0
        %1191 = vmatprep.mubr.f32.mxu0 %v232
        %1192 = vmatmul.mubr.f32.gmra.mxu0 %v231
        %v1193 = vpop.f32.mrf.mxu0
        %v1194 = vadd.f32 0.0, %v1193
        %v1195 = vpop.f32.mrf.mxu0
        %1196 = vmatprep.mubr.f32.mxu0 %v234
        %1197 = vmatmul.mubr.f32.gmra.mxu0 %v233
        %v1198 = vpop.f32.mrf.mxu0
        %v1199 = vadd.f32 0.0, %v1198
        %v1200 = vpop.f32.mrf.mxu0
        %1201 = vmatprep.mubr.f32.mxu0 %v236
        %1202 = vmatmul.mubr.f32.gmra.mxu0 %v235
        %v1203 = vpop.f32.mrf.mxu0
        %v1204 = vadd.f32 0.0, %v1203
        %v1205 = vpop.f32.mrf.mxu0
        %1206 = vmatprep.mubr.f32.mxu0 %v238
        %1207 = vmatmul.mubr.f32.gmra.mxu0 %v237
        %v1208 = vpop.f32.mrf.mxu0
        %v1209 = vadd.f32 0.0, %v1208
        %v1210 = vpop.f32.mrf.mxu0
        %1211 = vdwg.mxu0
        %s1212 = scalar_lea.vmem %s2, 192
        %v1213 = vld [vmem:[%s1212] sm:$0xff]
        %v1214 = vld [vmem:[%s1212 + $0x8] sm:$0xff]
        %v1215 = vld [vmem:[%s1212 + $0x10] sm:$0xff]
        %v1216 = vld [vmem:[%s1212 + $0x18] sm:$0xff]
        %v1217 = vld [vmem:[%s1212 + $0x20] sm:$0xff]
        %v1218 = vld [vmem:[%s1212 + $0x28] sm:$0xff]
        %v1219 = vld [vmem:[%s1212 + $0x30] sm:$0xff]
        %v1220 = vld [vmem:[%s1212 + $0x38] sm:$0xff]
        %v1222 = vsel %vm531, %v1213, 0
        %v1225 = vsel %vm531, %v1214, 0
        %v1228 = vsel %vm531, %v1215, 0
        %v1231 = vsel %vm531, %v1216, 0
        %v1234 = vsel %vm531, %v1217, 0
        %v1237 = vsel %vm531, %v1218, 0
        %v1240 = vsel %vm531, %v1219, 0
        %v1243 = vsel %vm531, %v1220, 0
        %1245 = vmatprep.subr.mxu0 0.0
        %1246 = vmatpush1.msra.mxu0 0.0
        %1247 = vmatprep.subr.mxu0 0.0
        %1248 = vmatpush1.msra.mxu0 0.0
        %1249 = vmatprep.subr.mxu0 0.0
        %1250 = vmatpush1.msra.mxu0 0.0
        %1251 = vmatprep.subr.mxu0 0.0
        %1252 = vmatpush1.msra.mxu0 0.0
        %1253 = vmatprep.subr.mxu0 0.0
        %1254 = vmatpush1.msra.mxu0 0.0
        %1255 = vmatprep.subr.mxu0 0.0
        %1256 = vmatpush1.msra.mxu0 0.0
        %1257 = vmatprep.subr.mxu0 0.0
        %1258 = vmatpush1.msra.mxu0 0.0
        %1259 = vmatprep.subr.mxu0 0.0
        %1260 = vmatpush1.msra.mxu0 0.0
        %1261 = vmatprep.subr.mxu0 0.0
        %1262 = vmatpush1.msra.mxu0 %v1209
        %1263 = vmatprep.subr.mxu0 0.0
        %1264 = vmatpush1.msra.mxu0 %v1204
        %1265 = vmatprep.subr.mxu0 0.0
        %1266 = vmatpush1.msra.mxu0 %v1199
        %1267 = vmatprep.subr.mxu0 0.0
        %1268 = vmatpush1.msra.mxu0 %v1194
        %1269 = vmatprep.subr.mxu0 0.0
        %1270 = vmatpush1.msra.mxu0 %v1189
        %1271 = vmatprep.subr.mxu0 0.0
        %1272 = vmatpush1.msra.mxu0 %v1184
        %1273 = vmatprep.subr.mxu0 0.0
        %1274 = vmatpush1.msra.mxu0 %v1179
        %1275 = vmatprep.subr.mxu0 0.0
        %1276 = vmatpush1.msra.mxu0 %v1174
        %1277 = vmatprep.subr.mxu0 0.0
        %1278 = vmatpush2.msra.mxu0 0.0
        %1279 = vmatprep.subr.mxu0 0.0
        %1280 = vmatpush2.msra.mxu0 0.0
        %1281 = vmatprep.subr.mxu0 0.0
        %1282 = vmatpush2.msra.mxu0 0.0
        %1283 = vmatprep.subr.mxu0 0.0
        %1284 = vmatpush2.msra.mxu0 0.0
        %1285 = vmatprep.subr.mxu0 0.0
        %1286 = vmatpush2.msra.mxu0 0.0
        %1287 = vmatprep.subr.mxu0 0.0
        %1288 = vmatpush2.msra.mxu0 0.0
        %1289 = vmatprep.subr.mxu0 0.0
        %1290 = vmatpush2.msra.mxu0 0.0
        %1291 = vmatprep.subr.mxu0 0.0
        %1292 = vmatpush2.msra.mxu0 0.0
        %1293 = vmatprep.subr.mxu0 0.0
        %1294 = vmatpush2.msra.mxu0 0.0
        %1295 = vmatprep.subr.mxu0 0.0
        %1296 = vmatpush2.msra.mxu0 0.0
        %1297 = vmatprep.subr.mxu0 0.0
        %1298 = vmatpush2.msra.mxu0 0.0
        %1299 = vmatprep.subr.mxu0 0.0
        %1300 = vmatpush2.msra.mxu0 0.0
        %1301 = vmatprep.subr.mxu0 0.0
        %1302 = vmatpush2.msra.mxu0 0.0
        %1303 = vmatprep.subr.mxu0 0.0
        %1304 = vmatpush2.msra.mxu0 0.0
        %1305 = vmatprep.subr.mxu0 0.0
        %1306 = vmatpush2.msra.mxu0 0.0
        %1307 = vmatprep.subr.mxu0 0.0
        %1308 = vmatpush2.msra.mxu0 0.0
        %1309 = vmatprep.mubr.f32.mxu0 0.0
        %1310 = vmatmul.mubr.f32.gmra.mxu0 %v1222
        %v1311 = vpop.f32.mrf.mxu0
        %v1312 = vadd.f32 0.0, %v1311
        %v1313 = vpop.f32.mrf.mxu0
        %1314 = vmatprep.mubr.f32.mxu0 0.0
        %1315 = vmatmul.mubr.f32.gmra.mxu0 %v1225
        %v1316 = vpop.f32.mrf.mxu0
        %v1317 = vadd.f32 0.0, %v1316
        %v1318 = vpop.f32.mrf.mxu0
        %1319 = vmatprep.mubr.f32.mxu0 0.0
        %1320 = vmatmul.mubr.f32.gmra.mxu0 %v1228
        %v1321 = vpop.f32.mrf.mxu0
        %v1322 = vadd.f32 0.0, %v1321
        %v1323 = vpop.f32.mrf.mxu0
        %1324 = vmatprep.mubr.f32.mxu0 0.0
        %1325 = vmatmul.mubr.f32.gmra.mxu0 %v1231
        %v1326 = vpop.f32.mrf.mxu0
        %v1327 = vadd.f32 0.0, %v1326
        %v1328 = vpop.f32.mrf.mxu0
        %1329 = vmatprep.mubr.f32.mxu0 0.0
        %1330 = vmatmul.mubr.f32.gmra.mxu0 %v1234
        %v1331 = vpop.f32.mrf.mxu0
        %v1332 = vadd.f32 0.0, %v1331
        %v1333 = vpop.f32.mrf.mxu0
        %1334 = vmatprep.mubr.f32.mxu0 0.0
        %1335 = vmatmul.mubr.f32.gmra.mxu0 %v1237
        %v1336 = vpop.f32.mrf.mxu0
        %v1337 = vadd.f32 0.0, %v1336
        %v1338 = vpop.f32.mrf.mxu0
        %1339 = vmatprep.mubr.f32.mxu0 0.0
        %1340 = vmatmul.mubr.f32.gmra.mxu0 %v1240
        %v1341 = vpop.f32.mrf.mxu0
        %v1342 = vadd.f32 0.0, %v1341
        %v1343 = vpop.f32.mrf.mxu0
        %1344 = vmatprep.mubr.f32.mxu0 0.0
        %1345 = vmatmul.mubr.f32.gmra.mxu0 %v1243
        %v1346 = vpop.f32.mrf.mxu0
        %v1347 = vadd.f32 0.0, %v1346
        %v1348 = vpop.f32.mrf.mxu0
        %1349 = vdwg.mxu0
        %v1350 = vadd.f32 %v1066, %v1312
        %v1351 = vadd.f32 %v1067, %v1317
        %v1352 = vadd.f32 %v1068, %v1322
        %v1353 = vadd.f32 %v1069, %v1327
        %v1354 = vadd.f32 %v1070, %v1332
        %v1355 = vadd.f32 %v1071, %v1337
        %v1356 = vadd.f32 %v1072, %v1342
        %v1357 = vadd.f32 %v1073, %v1347
        %s1358 = scalar_lea.vmem %s1, 1024
        %v1359 = vld [vmem:[%s1358] sm:$0xff]
        %v1360 = vld [vmem:[%s1358 + $0x8] sm:$0xff]
        %v1361 = vld [vmem:[%s1358 + $0x10] sm:$0xff]
        %v1362 = vld [vmem:[%s1358 + $0x18] sm:$0xff]
        %v1363 = vld [vmem:[%s1358 + $0x20] sm:$0xff]
        %v1364 = vld [vmem:[%s1358 + $0x28] sm:$0xff]
        %v1365 = vld [vmem:[%s1358 + $0x30] sm:$0xff]
        %v1366 = vld [vmem:[%s1358 + $0x38] sm:$0xff]
        %v1367 = vld [vmem:[%s1358 + $0x40] sm:$0xff]
        %v1368 = vld [vmem:[%s1358 + $0x48] sm:$0xff]
        %v1369 = vld [vmem:[%s1358 + $0x50] sm:$0xff]
        %v1370 = vld [vmem:[%s1358 + $0x58] sm:$0xff]
        %v1371 = vld [vmem:[%s1358 + $0x60] sm:$0xff]
        %v1372 = vld [vmem:[%s1358 + $0x68] sm:$0xff]
        %v1373 = vld [vmem:[%s1358 + $0x70] sm:$0xff]
        %v1374 = vld [vmem:[%s1358 + $0x78] sm:$0xff]
        %v1375 = vld [vmem:[%s1358 + $0x80] sm:$0xff]
        %v1376 = vld [vmem:[%s1358 + $0x88] sm:$0xff]
        %v1377 = vld [vmem:[%s1358 + $0x90] sm:$0xff]
        %v1378 = vld [vmem:[%s1358 + $0x98] sm:$0xff]
        %v1379 = vld [vmem:[%s1358 + $0xa0] sm:$0xff]
        %v1380 = vld [vmem:[%s1358 + $0xa8] sm:$0xff]
        %v1381 = vld [vmem:[%s1358 + $0xb0] sm:$0xff]
        %v1382 = vld [vmem:[%s1358 + $0xb8] sm:$0xff]
        %v1383 = vld [vmem:[%s1358 + $0xc0] sm:$0xff]
        %v1384 = vld [vmem:[%s1358 + $0xc8] sm:$0xff]
        %v1385 = vld [vmem:[%s1358 + $0xd0] sm:$0xff]
        %v1386 = vld [vmem:[%s1358 + $0xd8] sm:$0xff]
        %v1387 = vld [vmem:[%s1358 + $0xe0] sm:$0xff]
        %v1388 = vld [vmem:[%s1358 + $0xe8] sm:$0xff]
        %v1389 = vld [vmem:[%s1358 + $0xf0] sm:$0xff]
        %v1390 = vld [vmem:[%s1358 + $0xf8] sm:$0xff]
        %1391 = vmatprep.subr.mxu0 0.0
        %1392 = vmatpush1.msra.mxu0 %v1374
        %1393 = vmatprep.subr.mxu0 0.0
        %1394 = vmatpush1.msra.mxu0 %v1373
        %1395 = vmatprep.subr.mxu0 0.0
        %1396 = vmatpush1.msra.mxu0 %v1372
        %1397 = vmatprep.subr.mxu0 0.0
        %1398 = vmatpush1.msra.mxu0 %v1371
        %1399 = vmatprep.subr.mxu0 0.0
        %1400 = vmatpush1.msra.mxu0 %v1370
        %1401 = vmatprep.subr.mxu0 0.0
        %1402 = vmatpush1.msra.mxu0 %v1369
        %1403 = vmatprep.subr.mxu0 0.0
        %1404 = vmatpush1.msra.mxu0 %v1368
        %1405 = vmatprep.subr.mxu0 0.0
        %1406 = vmatpush1.msra.mxu0 %v1367
        %1407 = vmatprep.subr.mxu0 0.0
        %1408 = vmatpush1.msra.mxu0 %v1366
        %1409 = vmatprep.subr.mxu0 0.0
        %1410 = vmatpush1.msra.mxu0 %v1365
        %1411 = vmatprep.subr.mxu0 0.0
        %1412 = vmatpush1.msra.mxu0 %v1364
        %1413 = vmatprep.subr.mxu0 0.0
        %1414 = vmatpush1.msra.mxu0 %v1363
        %1415 = vmatprep.subr.mxu0 0.0
        %1416 = vmatpush1.msra.mxu0 %v1362
        %1417 = vmatprep.subr.mxu0 0.0
        %1418 = vmatpush1.msra.mxu0 %v1361
        %1419 = vmatprep.subr.mxu0 0.0
        %1420 = vmatpush1.msra.mxu0 %v1360
        %1421 = vmatprep.subr.mxu0 0.0
        %1422 = vmatpush1.msra.mxu0 %v1359
        %1423 = vmatprep.subr.mxu0 0.0
        %1424 = vmatpush2.msra.mxu0 %v1390
        %1425 = vmatprep.subr.mxu0 0.0
        %1426 = vmatpush2.msra.mxu0 %v1389
        %1427 = vmatprep.subr.mxu0 0.0
        %1428 = vmatpush2.msra.mxu0 %v1388
        %1429 = vmatprep.subr.mxu0 0.0
        %1430 = vmatpush2.msra.mxu0 %v1387
        %1431 = vmatprep.subr.mxu0 0.0
        %1432 = vmatpush2.msra.mxu0 %v1386
        %1433 = vmatprep.subr.mxu0 0.0
        %1434 = vmatpush2.msra.mxu0 %v1385
        %1435 = vmatprep.subr.mxu0 0.0
        %1436 = vmatpush2.msra.mxu0 %v1384
        %1437 = vmatprep.subr.mxu0 0.0
        %1438 = vmatpush2.msra.mxu0 %v1383
        %1439 = vmatprep.subr.mxu0 0.0
        %1440 = vmatpush2.msra.mxu0 %v1382
        %1441 = vmatprep.subr.mxu0 0.0
        %1442 = vmatpush2.msra.mxu0 %v1381
        %1443 = vmatprep.subr.mxu0 0.0
        %1444 = vmatpush2.msra.mxu0 %v1380
        %1445 = vmatprep.subr.mxu0 0.0
        %1446 = vmatpush2.msra.mxu0 %v1379
        %1447 = vmatprep.subr.mxu0 0.0
        %1448 = vmatpush2.msra.mxu0 %v1378
        %1449 = vmatprep.subr.mxu0 0.0
        %1450 = vmatpush2.msra.mxu0 %v1377
        %1451 = vmatprep.subr.mxu0 0.0
        %1452 = vmatpush2.msra.mxu0 %v1376
        %1453 = vmatprep.subr.mxu0 0.0
        %1454 = vmatpush2.msra.mxu0 %v1375
        %1455 = vmatprep.mubr.f32.mxu0 %v224
        %1456 = vmatmul.mubr.f32.gmra.mxu0 %v223
        %v1457 = vpop.f32.mrf.mxu0
        %v1458 = vadd.f32 0.0, %v1457
        %v1459 = vpop.f32.mrf.mxu0
        %1460 = vmatprep.mubr.f32.mxu0 %v226
        %1461 = vmatmul.mubr.f32.gmra.mxu0 %v225
        %v1462 = vpop.f32.mrf.mxu0
        %v1463 = vadd.f32 0.0, %v1462
        %v1464 = vpop.f32.mrf.mxu0
        %1465 = vmatprep.mubr.f32.mxu0 %v228
        %1466 = vmatmul.mubr.f32.gmra.mxu0 %v227
        %v1467 = vpop.f32.mrf.mxu0
        %v1468 = vadd.f32 0.0, %v1467
        %v1469 = vpop.f32.mrf.mxu0
        %1470 = vmatprep.mubr.f32.mxu0 %v230
        %1471 = vmatmul.mubr.f32.gmra.mxu0 %v229
        %v1472 = vpop.f32.mrf.mxu0
        %v1473 = vadd.f32 0.0, %v1472
        %v1474 = vpop.f32.mrf.mxu0
        %1475 = vmatprep.mubr.f32.mxu0 %v232
        %1476 = vmatmul.mubr.f32.gmra.mxu0 %v231
        %v1477 = vpop.f32.mrf.mxu0
        %v1478 = vadd.f32 0.0, %v1477
        %v1479 = vpop.f32.mrf.mxu0
        %1480 = vmatprep.mubr.f32.mxu0 %v234
        %1481 = vmatmul.mubr.f32.gmra.mxu0 %v233
        %v1482 = vpop.f32.mrf.mxu0
        %v1483 = vadd.f32 0.0, %v1482
        %v1484 = vpop.f32.mrf.mxu0
        %1485 = vmatprep.mubr.f32.mxu0 %v236
        %1486 = vmatmul.mubr.f32.gmra.mxu0 %v235
        %v1487 = vpop.f32.mrf.mxu0
        %v1488 = vadd.f32 0.0, %v1487
        %v1489 = vpop.f32.mrf.mxu0
        %1490 = vmatprep.mubr.f32.mxu0 %v238
        %1491 = vmatmul.mubr.f32.gmra.mxu0 %v237
        %v1492 = vpop.f32.mrf.mxu0
        %v1493 = vadd.f32 0.0, %v1492
        %v1494 = vpop.f32.mrf.mxu0
        %1495 = vdwg.mxu0
        %s1496 = scalar_lea.vmem %s2, 256
        %v1497 = vld [vmem:[%s1496] sm:$0xff]
        %v1498 = vld [vmem:[%s1496 + $0x8] sm:$0xff]
        %v1499 = vld [vmem:[%s1496 + $0x10] sm:$0xff]
        %v1500 = vld [vmem:[%s1496 + $0x18] sm:$0xff]
        %v1501 = vld [vmem:[%s1496 + $0x20] sm:$0xff]
        %v1502 = vld [vmem:[%s1496 + $0x28] sm:$0xff]
        %v1503 = vld [vmem:[%s1496 + $0x30] sm:$0xff]
        %v1504 = vld [vmem:[%s1496 + $0x38] sm:$0xff]
        %v1506 = vsel %vm531, %v1497, 0
        %v1509 = vsel %vm531, %v1498, 0
        %v1512 = vsel %vm531, %v1499, 0
        %v1515 = vsel %vm531, %v1500, 0
        %v1518 = vsel %vm531, %v1501, 0
        %v1521 = vsel %vm531, %v1502, 0
        %v1524 = vsel %vm531, %v1503, 0
        %v1527 = vsel %vm531, %v1504, 0
        %1529 = vmatprep.subr.mxu0 0.0
        %1530 = vmatpush1.msra.mxu0 0.0
        %1531 = vmatprep.subr.mxu0 0.0
        %1532 = vmatpush1.msra.mxu0 0.0
        %1533 = vmatprep.subr.mxu0 0.0
        %1534 = vmatpush1.msra.mxu0 0.0
        %1535 = vmatprep.subr.mxu0 0.0
        %1536 = vmatpush1.msra.mxu0 0.0
        %1537 = vmatprep.subr.mxu0 0.0
        %1538 = vmatpush1.msra.mxu0 0.0
        %1539 = vmatprep.subr.mxu0 0.0
        %1540 = vmatpush1.msra.mxu0 0.0
        %1541 = vmatprep.subr.mxu0 0.0
        %1542 = vmatpush1.msra.mxu0 0.0
        %1543 = vmatprep.subr.mxu0 0.0
        %1544 = vmatpush1.msra.mxu0 0.0
        %1545 = vmatprep.subr.mxu0 0.0
        %1546 = vmatpush1.msra.mxu0 %v1493
        %1547 = vmatprep.subr.mxu0 0.0
        %1548 = vmatpush1.msra.mxu0 %v1488
        %1549 = vmatprep.subr.mxu0 0.0
        %1550 = vmatpush1.msra.mxu0 %v1483
        %1551 = vmatprep.subr.mxu0 0.0
        %1552 = vmatpush1.msra.mxu0 %v1478
        %1553 = vmatprep.subr.mxu0 0.0
        %1554 = vmatpush1.msra.mxu0 %v1473
        %1555 = vmatprep.subr.mxu0 0.0
        %1556 = vmatpush1.msra.mxu0 %v1468
        %1557 = vmatprep.subr.mxu0 0.0
        %1558 = vmatpush1.msra.mxu0 %v1463
        %1559 = vmatprep.subr.mxu0 0.0
        %1560 = vmatpush1.msra.mxu0 %v1458
        %1561 = vmatprep.subr.mxu0 0.0
        %1562 = vmatpush2.msra.mxu0 0.0
        %1563 = vmatprep.subr.mxu0 0.0
        %1564 = vmatpush2.msra.mxu0 0.0
        %1565 = vmatprep.subr.mxu0 0.0
        %1566 = vmatpush2.msra.mxu0 0.0
        %1567 = vmatprep.subr.mxu0 0.0
        %1568 = vmatpush2.msra.mxu0 0.0
        %1569 = vmatprep.subr.mxu0 0.0
        %1570 = vmatpush2.msra.mxu0 0.0
        %1571 = vmatprep.subr.mxu0 0.0
        %1572 = vmatpush2.msra.mxu0 0.0
        %1573 = vmatprep.subr.mxu0 0.0
        %1574 = vmatpush2.msra.mxu0 0.0
        %1575 = vmatprep.subr.mxu0 0.0
        %1576 = vmatpush2.msra.mxu0 0.0
        %1577 = vmatprep.subr.mxu0 0.0
        %1578 = vmatpush2.msra.mxu0 0.0
        %1579 = vmatprep.subr.mxu0 0.0
        %1580 = vmatpush2.msra.mxu0 0.0
        %1581 = vmatprep.subr.mxu0 0.0
        %1582 = vmatpush2.msra.mxu0 0.0
        %1583 = vmatprep.subr.mxu0 0.0
        %1584 = vmatpush2.msra.mxu0 0.0
        %1585 = vmatprep.subr.mxu0 0.0
        %1586 = vmatpush2.msra.mxu0 0.0
        %1587 = vmatprep.subr.mxu0 0.0
        %1588 = vmatpush2.msra.mxu0 0.0
        %1589 = vmatprep.subr.mxu0 0.0
        %1590 = vmatpush2.msra.mxu0 0.0
        %1591 = vmatprep.subr.mxu0 0.0
        %1592 = vmatpush2.msra.mxu0 0.0
        %1593 = vmatprep.mubr.f32.mxu0 0.0
        %1594 = vmatmul.mubr.f32.gmra.mxu0 %v1506
        %v1595 = vpop.f32.mrf.mxu0
        %v1596 = vadd.f32 0.0, %v1595
        %v1597 = vpop.f32.mrf.mxu0
        %1598 = vmatprep.mubr.f32.mxu0 0.0
        %1599 = vmatmul.mubr.f32.gmra.mxu0 %v1509
        %v1600 = vpop.f32.mrf.mxu0
        %v1601 = vadd.f32 0.0, %v1600
        %v1602 = vpop.f32.mrf.mxu0
        %1603 = vmatprep.mubr.f32.mxu0 0.0
        %1604 = vmatmul.mubr.f32.gmra.mxu0 %v1512
        %v1605 = vpop.f32.mrf.mxu0
        %v1606 = vadd.f32 0.0, %v1605
        %v1607 = vpop.f32.mrf.mxu0
        %1608 = vmatprep.mubr.f32.mxu0 0.0
        %1609 = vmatmul.mubr.f32.gmra.mxu0 %v1515
        %v1610 = vpop.f32.mrf.mxu0
        %v1611 = vadd.f32 0.0, %v1610
        %v1612 = vpop.f32.mrf.mxu0
        %1613 = vmatprep.mubr.f32.mxu0 0.0
        %1614 = vmatmul.mubr.f32.gmra.mxu0 %v1518
        %v1615 = vpop.f32.mrf.mxu0
        %v1616 = vadd.f32 0.0, %v1615
        %v1617 = vpop.f32.mrf.mxu0
        %1618 = vmatprep.mubr.f32.mxu0 0.0
        %1619 = vmatmul.mubr.f32.gmra.mxu0 %v1521
        %v1620 = vpop.f32.mrf.mxu0
        %v1621 = vadd.f32 0.0, %v1620
        %v1622 = vpop.f32.mrf.mxu0
        %1623 = vmatprep.mubr.f32.mxu0 0.0
        %1624 = vmatmul.mubr.f32.gmra.mxu0 %v1524
        %v1625 = vpop.f32.mrf.mxu0
        %v1626 = vadd.f32 0.0, %v1625
        %v1627 = vpop.f32.mrf.mxu0
        %1628 = vmatprep.mubr.f32.mxu0 0.0
        %1629 = vmatmul.mubr.f32.gmra.mxu0 %v1527
        %v1630 = vpop.f32.mrf.mxu0
        %v1631 = vadd.f32 0.0, %v1630
        %v1632 = vpop.f32.mrf.mxu0
        %1633 = vdwg.mxu0
        %v1634 = vadd.f32 %v1350, %v1596
        %v1635 = vadd.f32 %v1351, %v1601
        %v1636 = vadd.f32 %v1352, %v1606
        %v1637 = vadd.f32 %v1353, %v1611
        %v1638 = vadd.f32 %v1354, %v1616
        %v1639 = vadd.f32 %v1355, %v1621
        %v1640 = vadd.f32 %v1356, %v1626
        %v1641 = vadd.f32 %v1357, %v1631
        %s1642 = scalar_lea.vmem %s1, 1280
        %v1643 = vld [vmem:[%s1642] sm:$0xff]
        %v1644 = vld [vmem:[%s1642 + $0x8] sm:$0xff]
        %v1645 = vld [vmem:[%s1642 + $0x10] sm:$0xff]
        %v1646 = vld [vmem:[%s1642 + $0x18] sm:$0xff]
        %v1647 = vld [vmem:[%s1642 + $0x20] sm:$0xff]
        %v1648 = vld [vmem:[%s1642 + $0x28] sm:$0xff]
        %v1649 = vld [vmem:[%s1642 + $0x30] sm:$0xff]
        %v1650 = vld [vmem:[%s1642 + $0x38] sm:$0xff]
        %v1651 = vld [vmem:[%s1642 + $0x40] sm:$0xff]
        %v1652 = vld [vmem:[%s1642 + $0x48] sm:$0xff]
        %v1653 = vld [vmem:[%s1642 + $0x50] sm:$0xff]
        %v1654 = vld [vmem:[%s1642 + $0x58] sm:$0xff]
        %v1655 = vld [vmem:[%s1642 + $0x60] sm:$0xff]
        %v1656 = vld [vmem:[%s1642 + $0x68] sm:$0xff]
        %v1657 = vld [vmem:[%s1642 + $0x70] sm:$0xff]
        %v1658 = vld [vmem:[%s1642 + $0x78] sm:$0xff]
        %v1659 = vld [vmem:[%s1642 + $0x80] sm:$0xff]
        %v1660 = vld [vmem:[%s1642 + $0x88] sm:$0xff]
        %v1661 = vld [vmem:[%s1642 + $0x90] sm:$0xff]
        %v1662 = vld [vmem:[%s1642 + $0x98] sm:$0xff]
        %v1663 = vld [vmem:[%s1642 + $0xa0] sm:$0xff]
        %v1664 = vld [vmem:[%s1642 + $0xa8] sm:$0xff]
        %v1665 = vld [vmem:[%s1642 + $0xb0] sm:$0xff]
        %v1666 = vld [vmem:[%s1642 + $0xb8] sm:$0xff]
        %v1667 = vld [vmem:[%s1642 + $0xc0] sm:$0xff]
        %v1668 = vld [vmem:[%s1642 + $0xc8] sm:$0xff]
        %v1669 = vld [vmem:[%s1642 + $0xd0] sm:$0xff]
        %v1670 = vld [vmem:[%s1642 + $0xd8] sm:$0xff]
        %v1671 = vld [vmem:[%s1642 + $0xe0] sm:$0xff]
        %v1672 = vld [vmem:[%s1642 + $0xe8] sm:$0xff]
        %v1673 = vld [vmem:[%s1642 + $0xf0] sm:$0xff]
        %v1674 = vld [vmem:[%s1642 + $0xf8] sm:$0xff]
        %1675 = vmatprep.subr.mxu0 0.0
        %1676 = vmatpush1.msra.mxu0 %v1658
        %1677 = vmatprep.subr.mxu0 0.0
        %1678 = vmatpush1.msra.mxu0 %v1657
        %1679 = vmatprep.subr.mxu0 0.0
        %1680 = vmatpush1.msra.mxu0 %v1656
        %1681 = vmatprep.subr.mxu0 0.0
        %1682 = vmatpush1.msra.mxu0 %v1655
        %1683 = vmatprep.subr.mxu0 0.0
        %1684 = vmatpush1.msra.mxu0 %v1654
        %1685 = vmatprep.subr.mxu0 0.0
        %1686 = vmatpush1.msra.mxu0 %v1653
        %1687 = vmatprep.subr.mxu0 0.0
        %1688 = vmatpush1.msra.mxu0 %v1652
        %1689 = vmatprep.subr.mxu0 0.0
        %1690 = vmatpush1.msra.mxu0 %v1651
        %1691 = vmatprep.subr.mxu0 0.0
        %1692 = vmatpush1.msra.mxu0 %v1650
        %1693 = vmatprep.subr.mxu0 0.0
        %1694 = vmatpush1.msra.mxu0 %v1649
        %1695 = vmatprep.subr.mxu0 0.0
        %1696 = vmatpush1.msra.mxu0 %v1648
        %1697 = vmatprep.subr.mxu0 0.0
        %1698 = vmatpush1.msra.mxu0 %v1647
        %1699 = vmatprep.subr.mxu0 0.0
        %1700 = vmatpush1.msra.mxu0 %v1646
        %1701 = vmatprep.subr.mxu0 0.0
        %1702 = vmatpush1.msra.mxu0 %v1645
        %1703 = vmatprep.subr.mxu0 0.0
        %1704 = vmatpush1.msra.mxu0 %v1644
        %1705 = vmatprep.subr.mxu0 0.0
        %1706 = vmatpush1.msra.mxu0 %v1643
        %1707 = vmatprep.subr.mxu0 0.0
        %1708 = vmatpush2.msra.mxu0 %v1674
        %1709 = vmatprep.subr.mxu0 0.0
        %1710 = vmatpush2.msra.mxu0 %v1673
        %1711 = vmatprep.subr.mxu0 0.0
        %1712 = vmatpush2.msra.mxu0 %v1672
        %1713 = vmatprep.subr.mxu0 0.0
        %1714 = vmatpush2.msra.mxu0 %v1671
        %1715 = vmatprep.subr.mxu0 0.0
        %1716 = vmatpush2.msra.mxu0 %v1670
        %1717 = vmatprep.subr.mxu0 0.0
        %1718 = vmatpush2.msra.mxu0 %v1669
        %1719 = vmatprep.subr.mxu0 0.0
        %1720 = vmatpush2.msra.mxu0 %v1668
        %1721 = vmatprep.subr.mxu0 0.0
        %1722 = vmatpush2.msra.mxu0 %v1667
        %1723 = vmatprep.subr.mxu0 0.0
        %1724 = vmatpush2.msra.mxu0 %v1666
        %1725 = vmatprep.subr.mxu0 0.0
        %1726 = vmatpush2.msra.mxu0 %v1665
        %1727 = vmatprep.subr.mxu0 0.0
        %1728 = vmatpush2.msra.mxu0 %v1664
        %1729 = vmatprep.subr.mxu0 0.0
        %1730 = vmatpush2.msra.mxu0 %v1663
        %1731 = vmatprep.subr.mxu0 0.0
        %1732 = vmatpush2.msra.mxu0 %v1662
        %1733 = vmatprep.subr.mxu0 0.0
        %1734 = vmatpush2.msra.mxu0 %v1661
        %1735 = vmatprep.subr.mxu0 0.0
        %1736 = vmatpush2.msra.mxu0 %v1660
        %1737 = vmatprep.subr.mxu0 0.0
        %1738 = vmatpush2.msra.mxu0 %v1659
        %1739 = vmatprep.mubr.f32.mxu0 %v224
        %1740 = vmatmul.mubr.f32.gmra.mxu0 %v223
        %v1741 = vpop.f32.mrf.mxu0
        %v1742 = vadd.f32 0.0, %v1741
        %v1743 = vpop.f32.mrf.mxu0
        %1744 = vmatprep.mubr.f32.mxu0 %v226
        %1745 = vmatmul.mubr.f32.gmra.mxu0 %v225
        %v1746 = vpop.f32.mrf.mxu0
        %v1747 = vadd.f32 0.0, %v1746
        %v1748 = vpop.f32.mrf.mxu0
        %1749 = vmatprep.mubr.f32.mxu0 %v228
        %1750 = vmatmul.mubr.f32.gmra.mxu0 %v227
        %v1751 = vpop.f32.mrf.mxu0
        %v1752 = vadd.f32 0.0, %v1751
        %v1753 = vpop.f32.mrf.mxu0
        %1754 = vmatprep.mubr.f32.mxu0 %v230
        %1755 = vmatmul.mubr.f32.gmra.mxu0 %v229
        %v1756 = vpop.f32.mrf.mxu0
        %v1757 = vadd.f32 0.0, %v1756
        %v1758 = vpop.f32.mrf.mxu0
        %1759 = vmatprep.mubr.f32.mxu0 %v232
        %1760 = vmatmul.mubr.f32.gmra.mxu0 %v231
        %v1761 = vpop.f32.mrf.mxu0
        %v1762 = vadd.f32 0.0, %v1761
        %v1763 = vpop.f32.mrf.mxu0
        %1764 = vmatprep.mubr.f32.mxu0 %v234
        %1765 = vmatmul.mubr.f32.gmra.mxu0 %v233
        %v1766 = vpop.f32.mrf.mxu0
        %v1767 = vadd.f32 0.0, %v1766
        %v1768 = vpop.f32.mrf.mxu0
        %1769 = vmatprep.mubr.f32.mxu0 %v236
        %1770 = vmatmul.mubr.f32.gmra.mxu0 %v235
        %v1771 = vpop.f32.mrf.mxu0
        %v1772 = vadd.f32 0.0, %v1771
        %v1773 = vpop.f32.mrf.mxu0
        %1774 = vmatprep.mubr.f32.mxu0 %v238
        %1775 = vmatmul.mubr.f32.gmra.mxu0 %v237
        %v1776 = vpop.f32.mrf.mxu0
        %v1777 = vadd.f32 0.0, %v1776
        %v1778 = vpop.f32.mrf.mxu0
        %1779 = vdwg.mxu0
        %s1780 = scalar_lea.vmem %s2, 320
        %v1781 = vld [vmem:[%s1780] sm:$0xff]
        %v1782 = vld [vmem:[%s1780 + $0x8] sm:$0xff]
        %v1783 = vld [vmem:[%s1780 + $0x10] sm:$0xff]
        %v1784 = vld [vmem:[%s1780 + $0x18] sm:$0xff]
        %v1785 = vld [vmem:[%s1780 + $0x20] sm:$0xff]
        %v1786 = vld [vmem:[%s1780 + $0x28] sm:$0xff]
        %v1787 = vld [vmem:[%s1780 + $0x30] sm:$0xff]
        %v1788 = vld [vmem:[%s1780 + $0x38] sm:$0xff]
        %v1790 = vsel %vm531, %v1781, 0
        %v1793 = vsel %vm531, %v1782, 0
        %v1796 = vsel %vm531, %v1783, 0
        %v1799 = vsel %vm531, %v1784, 0
        %v1802 = vsel %vm531, %v1785, 0
        %v1805 = vsel %vm531, %v1786, 0
        %v1808 = vsel %vm531, %v1787, 0
        %v1811 = vsel %vm531, %v1788, 0
        %1813 = vmatprep.subr.mxu0 0.0
        %1814 = vmatpush1.msra.mxu0 0.0
        %1815 = vmatprep.subr.mxu0 0.0
        %1816 = vmatpush1.msra.mxu0 0.0
        %1817 = vmatprep.subr.mxu0 0.0
        %1818 = vmatpush1.msra.mxu0 0.0
        %1819 = vmatprep.subr.mxu0 0.0
        %1820 = vmatpush1.msra.mxu0 0.0
        %1821 = vmatprep.subr.mxu0 0.0
        %1822 = vmatpush1.msra.mxu0 0.0
        %1823 = vmatprep.subr.mxu0 0.0
        %1824 = vmatpush1.msra.mxu0 0.0
        %1825 = vmatprep.subr.mxu0 0.0
        %1826 = vmatpush1.msra.mxu0 0.0
        %1827 = vmatprep.subr.mxu0 0.0
        %1828 = vmatpush1.msra.mxu0 0.0
        %1829 = vmatprep.subr.mxu0 0.0
        %1830 = vmatpush1.msra.mxu0 %v1777
        %1831 = vmatprep.subr.mxu0 0.0
        %1832 = vmatpush1.msra.mxu0 %v1772
        %1833 = vmatprep.subr.mxu0 0.0
        %1834 = vmatpush1.msra.mxu0 %v1767
        %1835 = vmatprep.subr.mxu0 0.0
        %1836 = vmatpush1.msra.mxu0 %v1762
        %1837 = vmatprep.subr.mxu0 0.0
        %1838 = vmatpush1.msra.mxu0 %v1757
        %1839 = vmatprep.subr.mxu0 0.0
        %1840 = vmatpush1.msra.mxu0 %v1752
        %1841 = vmatprep.subr.mxu0 0.0
        %1842 = vmatpush1.msra.mxu0 %v1747
        %1843 = vmatprep.subr.mxu0 0.0
        %1844 = vmatpush1.msra.mxu0 %v1742
        %1845 = vmatprep.subr.mxu0 0.0
        %1846 = vmatpush2.msra.mxu0 0.0
        %1847 = vmatprep.subr.mxu0 0.0
        %1848 = vmatpush2.msra.mxu0 0.0
        %1849 = vmatprep.subr.mxu0 0.0
        %1850 = vmatpush2.msra.mxu0 0.0
        %1851 = vmatprep.subr.mxu0 0.0
        %1852 = vmatpush2.msra.mxu0 0.0
        %1853 = vmatprep.subr.mxu0 0.0
        %1854 = vmatpush2.msra.mxu0 0.0
        %1855 = vmatprep.subr.mxu0 0.0
        %1856 = vmatpush2.msra.mxu0 0.0
        %1857 = vmatprep.subr.mxu0 0.0
        %1858 = vmatpush2.msra.mxu0 0.0
        %1859 = vmatprep.subr.mxu0 0.0
        %1860 = vmatpush2.msra.mxu0 0.0
        %1861 = vmatprep.subr.mxu0 0.0
        %1862 = vmatpush2.msra.mxu0 0.0
        %1863 = vmatprep.subr.mxu0 0.0
        %1864 = vmatpush2.msra.mxu0 0.0
        %1865 = vmatprep.subr.mxu0 0.0
        %1866 = vmatpush2.msra.mxu0 0.0
        %1867 = vmatprep.subr.mxu0 0.0
        %1868 = vmatpush2.msra.mxu0 0.0
        %1869 = vmatprep.subr.mxu0 0.0
        %1870 = vmatpush2.msra.mxu0 0.0
        %1871 = vmatprep.subr.mxu0 0.0
        %1872 = vmatpush2.msra.mxu0 0.0
        %1873 = vmatprep.subr.mxu0 0.0
        %1874 = vmatpush2.msra.mxu0 0.0
        %1875 = vmatprep.subr.mxu0 0.0
        %1876 = vmatpush2.msra.mxu0 0.0
        %1877 = vmatprep.mubr.f32.mxu0 0.0
        %1878 = vmatmul.mubr.f32.gmra.mxu0 %v1790
        %v1879 = vpop.f32.mrf.mxu0
        %v1880 = vadd.f32 0.0, %v1879
        %v1881 = vpop.f32.mrf.mxu0
        %1882 = vmatprep.mubr.f32.mxu0 0.0
        %1883 = vmatmul.mubr.f32.gmra.mxu0 %v1793
        %v1884 = vpop.f32.mrf.mxu0
        %v1885 = vadd.f32 0.0, %v1884
        %v1886 = vpop.f32.mrf.mxu0
        %1887 = vmatprep.mubr.f32.mxu0 0.0
        %1888 = vmatmul.mubr.f32.gmra.mxu0 %v1796
        %v1889 = vpop.f32.mrf.mxu0
        %v1890 = vadd.f32 0.0, %v1889
        %v1891 = vpop.f32.mrf.mxu0
        %1892 = vmatprep.mubr.f32.mxu0 0.0
        %1893 = vmatmul.mubr.f32.gmra.mxu0 %v1799
        %v1894 = vpop.f32.mrf.mxu0
        %v1895 = vadd.f32 0.0, %v1894
        %v1896 = vpop.f32.mrf.mxu0
        %1897 = vmatprep.mubr.f32.mxu0 0.0
        %1898 = vmatmul.mubr.f32.gmra.mxu0 %v1802
        %v1899 = vpop.f32.mrf.mxu0
        %v1900 = vadd.f32 0.0, %v1899
        %v1901 = vpop.f32.mrf.mxu0
        %1902 = vmatprep.mubr.f32.mxu0 0.0
        %1903 = vmatmul.mubr.f32.gmra.mxu0 %v1805
        %v1904 = vpop.f32.mrf.mxu0
        %v1905 = vadd.f32 0.0, %v1904
        %v1906 = vpop.f32.mrf.mxu0
        %1907 = vmatprep.mubr.f32.mxu0 0.0
        %1908 = vmatmul.mubr.f32.gmra.mxu0 %v1808
        %v1909 = vpop.f32.mrf.mxu0
        %v1910 = vadd.f32 0.0, %v1909
        %v1911 = vpop.f32.mrf.mxu0
        %1912 = vmatprep.mubr.f32.mxu0 0.0
        %1913 = vmatmul.mubr.f32.gmra.mxu0 %v1811
        %v1914 = vpop.f32.mrf.mxu0
        %v1915 = vadd.f32 0.0, %v1914
        %v1916 = vpop.f32.mrf.mxu0
        %1917 = vdwg.mxu0
        %v1918 = vadd.f32 %v1634, %v1880
        %v1919 = vadd.f32 %v1635, %v1885
        %v1920 = vadd.f32 %v1636, %v1890
        %v1921 = vadd.f32 %v1637, %v1895
        %v1922 = vadd.f32 %v1638, %v1900
        %v1923 = vadd.f32 %v1639, %v1905
        %v1924 = vadd.f32 %v1640, %v1910
        %v1925 = vadd.f32 %v1641, %v1915
        %s1926 = scalar_lea.vmem %s1, 1536
        %v1927 = vld [vmem:[%s1926] sm:$0xff]
        %v1928 = vld [vmem:[%s1926 + $0x8] sm:$0xff]
        %v1929 = vld [vmem:[%s1926 + $0x10] sm:$0xff]
        %v1930 = vld [vmem:[%s1926 + $0x18] sm:$0xff]
        %v1931 = vld [vmem:[%s1926 + $0x20] sm:$0xff]
        %v1932 = vld [vmem:[%s1926 + $0x28] sm:$0xff]
        %v1933 = vld [vmem:[%s1926 + $0x30] sm:$0xff]
        %v1934 = vld [vmem:[%s1926 + $0x38] sm:$0xff]
        %v1935 = vld [vmem:[%s1926 + $0x40] sm:$0xff]
        %v1936 = vld [vmem:[%s1926 + $0x48] sm:$0xff]
        %v1937 = vld [vmem:[%s1926 + $0x50] sm:$0xff]
        %v1938 = vld [vmem:[%s1926 + $0x58] sm:$0xff]
        %v1939 = vld [vmem:[%s1926 + $0x60] sm:$0xff]
        %v1940 = vld [vmem:[%s1926 + $0x68] sm:$0xff]
        %v1941 = vld [vmem:[%s1926 + $0x70] sm:$0xff]
        %v1942 = vld [vmem:[%s1926 + $0x78] sm:$0xff]
        %v1943 = vld [vmem:[%s1926 + $0x80] sm:$0xff]
        %v1944 = vld [vmem:[%s1926 + $0x88] sm:$0xff]
        %v1945 = vld [vmem:[%s1926 + $0x90] sm:$0xff]
        %v1946 = vld [vmem:[%s1926 + $0x98] sm:$0xff]
        %v1947 = vld [vmem:[%s1926 + $0xa0] sm:$0xff]
        %v1948 = vld [vmem:[%s1926 + $0xa8] sm:$0xff]
        %v1949 = vld [vmem:[%s1926 + $0xb0] sm:$0xff]
        %v1950 = vld [vmem:[%s1926 + $0xb8] sm:$0xff]
        %v1951 = vld [vmem:[%s1926 + $0xc0] sm:$0xff]
        %v1952 = vld [vmem:[%s1926 + $0xc8] sm:$0xff]
        %v1953 = vld [vmem:[%s1926 + $0xd0] sm:$0xff]
        %v1954 = vld [vmem:[%s1926 + $0xd8] sm:$0xff]
        %v1955 = vld [vmem:[%s1926 + $0xe0] sm:$0xff]
        %v1956 = vld [vmem:[%s1926 + $0xe8] sm:$0xff]
        %v1957 = vld [vmem:[%s1926 + $0xf0] sm:$0xff]
        %v1958 = vld [vmem:[%s1926 + $0xf8] sm:$0xff]
        %1959 = vmatprep.subr.mxu0 0.0
        %1960 = vmatpush1.msra.mxu0 %v1942
        %1961 = vmatprep.subr.mxu0 0.0
        %1962 = vmatpush1.msra.mxu0 %v1941
        %1963 = vmatprep.subr.mxu0 0.0
        %1964 = vmatpush1.msra.mxu0 %v1940
        %1965 = vmatprep.subr.mxu0 0.0
        %1966 = vmatpush1.msra.mxu0 %v1939
        %1967 = vmatprep.subr.mxu0 0.0
        %1968 = vmatpush1.msra.mxu0 %v1938
        %1969 = vmatprep.subr.mxu0 0.0
        %1970 = vmatpush1.msra.mxu0 %v1937
        %1971 = vmatprep.subr.mxu0 0.0
        %1972 = vmatpush1.msra.mxu0 %v1936
        %1973 = vmatprep.subr.mxu0 0.0
        %1974 = vmatpush1.msra.mxu0 %v1935
        %1975 = vmatprep.subr.mxu0 0.0
        %1976 = vmatpush1.msra.mxu0 %v1934
        %1977 = vmatprep.subr.mxu0 0.0
        %1978 = vmatpush1.msra.mxu0 %v1933
        %1979 = vmatprep.subr.mxu0 0.0
        %1980 = vmatpush1.msra.mxu0 %v1932
        %1981 = vmatprep.subr.mxu0 0.0
        %1982 = vmatpush1.msra.mxu0 %v1931
        %1983 = vmatprep.subr.mxu0 0.0
        %1984 = vmatpush1.msra.mxu0 %v1930
        %1985 = vmatprep.subr.mxu0 0.0
        %1986 = vmatpush1.msra.mxu0 %v1929
        %1987 = vmatprep.subr.mxu0 0.0
        %1988 = vmatpush1.msra.mxu0 %v1928
        %1989 = vmatprep.subr.mxu0 0.0
        %1990 = vmatpush1.msra.mxu0 %v1927
        %1991 = vmatprep.subr.mxu0 0.0
        %1992 = vmatpush2.msra.mxu0 %v1958
        %1993 = vmatprep.subr.mxu0 0.0
        %1994 = vmatpush2.msra.mxu0 %v1957
        %1995 = vmatprep.subr.mxu0 0.0
        %1996 = vmatpush2.msra.mxu0 %v1956
        %1997 = vmatprep.subr.mxu0 0.0
        %1998 = vmatpush2.msra.mxu0 %v1955
        %1999 = vmatprep.subr.mxu0 0.0
        %2000 = vmatpush2.msra.mxu0 %v1954
        %2001 = vmatprep.subr.mxu0 0.0
        %2002 = vmatpush2.msra.mxu0 %v1953
        %2003 = vmatprep.subr.mxu0 0.0
        %2004 = vmatpush2.msra.mxu0 %v1952
        %2005 = vmatprep.subr.mxu0 0.0
        %2006 = vmatpush2.msra.mxu0 %v1951
        %2007 = vmatprep.subr.mxu0 0.0
        %2008 = vmatpush2.msra.mxu0 %v1950
        %2009 = vmatprep.subr.mxu0 0.0
        %2010 = vmatpush2.msra.mxu0 %v1949
        %2011 = vmatprep.subr.mxu0 0.0
        %2012 = vmatpush2.msra.mxu0 %v1948
        %2013 = vmatprep.subr.mxu0 0.0
        %2014 = vmatpush2.msra.mxu0 %v1947
        %2015 = vmatprep.subr.mxu0 0.0
        %2016 = vmatpush2.msra.mxu0 %v1946
        %2017 = vmatprep.subr.mxu0 0.0
        %2018 = vmatpush2.msra.mxu0 %v1945
        %2019 = vmatprep.subr.mxu0 0.0
        %2020 = vmatpush2.msra.mxu0 %v1944
        %2021 = vmatprep.subr.mxu0 0.0
        %2022 = vmatpush2.msra.mxu0 %v1943
        %2023 = vmatprep.mubr.f32.mxu0 %v224
        %2024 = vmatmul.mubr.f32.gmra.mxu0 %v223
        %v2025 = vpop.f32.mrf.mxu0
        %v2026 = vadd.f32 0.0, %v2025
        %v2027 = vpop.f32.mrf.mxu0
        %2028 = vmatprep.mubr.f32.mxu0 %v226
        %2029 = vmatmul.mubr.f32.gmra.mxu0 %v225
        %v2030 = vpop.f32.mrf.mxu0
        %v2031 = vadd.f32 0.0, %v2030
        %v2032 = vpop.f32.mrf.mxu0
        %2033 = vmatprep.mubr.f32.mxu0 %v228
        %2034 = vmatmul.mubr.f32.gmra.mxu0 %v227
        %v2035 = vpop.f32.mrf.mxu0
        %v2036 = vadd.f32 0.0, %v2035
        %v2037 = vpop.f32.mrf.mxu0
        %2038 = vmatprep.mubr.f32.mxu0 %v230
        %2039 = vmatmul.mubr.f32.gmra.mxu0 %v229
        %v2040 = vpop.f32.mrf.mxu0
        %v2041 = vadd.f32 0.0, %v2040
        %v2042 = vpop.f32.mrf.mxu0
        %2043 = vmatprep.mubr.f32.mxu0 %v232
        %2044 = vmatmul.mubr.f32.gmra.mxu0 %v231
        %v2045 = vpop.f32.mrf.mxu0
        %v2046 = vadd.f32 0.0, %v2045
        %v2047 = vpop.f32.mrf.mxu0
        %2048 = vmatprep.mubr.f32.mxu0 %v234
        %2049 = vmatmul.mubr.f32.gmra.mxu0 %v233
        %v2050 = vpop.f32.mrf.mxu0
        %v2051 = vadd.f32 0.0, %v2050
        %v2052 = vpop.f32.mrf.mxu0
        %2053 = vmatprep.mubr.f32.mxu0 %v236
        %2054 = vmatmul.mubr.f32.gmra.mxu0 %v235
        %v2055 = vpop.f32.mrf.mxu0
        %v2056 = vadd.f32 0.0, %v2055
        %v2057 = vpop.f32.mrf.mxu0
        %2058 = vmatprep.mubr.f32.mxu0 %v238
        %2059 = vmatmul.mubr.f32.gmra.mxu0 %v237
        %v2060 = vpop.f32.mrf.mxu0
        %v2061 = vadd.f32 0.0, %v2060
        %v2062 = vpop.f32.mrf.mxu0
        %2063 = vdwg.mxu0
        %s2064 = scalar_lea.vmem %s2, 384
        %v2065 = vld [vmem:[%s2064] sm:$0xff]
        %v2066 = vld [vmem:[%s2064 + $0x8] sm:$0xff]
        %v2067 = vld [vmem:[%s2064 + $0x10] sm:$0xff]
        %v2068 = vld [vmem:[%s2064 + $0x18] sm:$0xff]
        %v2069 = vld [vmem:[%s2064 + $0x20] sm:$0xff]
        %v2070 = vld [vmem:[%s2064 + $0x28] sm:$0xff]
        %v2071 = vld [vmem:[%s2064 + $0x30] sm:$0xff]
        %v2072 = vld [vmem:[%s2064 + $0x38] sm:$0xff]
        %v2074 = vsel %vm531, %v2065, 0
        %v2077 = vsel %vm531, %v2066, 0
        %v2080 = vsel %vm531, %v2067, 0
        %v2083 = vsel %vm531, %v2068, 0
        %v2086 = vsel %vm531, %v2069, 0
        %v2089 = vsel %vm531, %v2070, 0
        %v2092 = vsel %vm531, %v2071, 0
        %v2095 = vsel %vm531, %v2072, 0
        %2097 = vmatprep.subr.mxu0 0.0
        %2098 = vmatpush1.msra.mxu0 0.0
        %2099 = vmatprep.subr.mxu0 0.0
        %2100 = vmatpush1.msra.mxu0 0.0
        %2101 = vmatprep.subr.mxu0 0.0
        %2102 = vmatpush1.msra.mxu0 0.0
        %2103 = vmatprep.subr.mxu0 0.0
        %2104 = vmatpush1.msra.mxu0 0.0
        %2105 = vmatprep.subr.mxu0 0.0
        %2106 = vmatpush1.msra.mxu0 0.0
        %2107 = vmatprep.subr.mxu0 0.0
        %2108 = vmatpush1.msra.mxu0 0.0
        %2109 = vmatprep.subr.mxu0 0.0
        %2110 = vmatpush1.msra.mxu0 0.0
        %2111 = vmatprep.subr.mxu0 0.0
        %2112 = vmatpush1.msra.mxu0 0.0
        %2113 = vmatprep.subr.mxu0 0.0
        %2114 = vmatpush1.msra.mxu0 %v2061
        %2115 = vmatprep.subr.mxu0 0.0
        %2116 = vmatpush1.msra.mxu0 %v2056
        %2117 = vmatprep.subr.mxu0 0.0
        %2118 = vmatpush1.msra.mxu0 %v2051
        %2119 = vmatprep.subr.mxu0 0.0
        %2120 = vmatpush1.msra.mxu0 %v2046
        %2121 = vmatprep.subr.mxu0 0.0
        %2122 = vmatpush1.msra.mxu0 %v2041
        %2123 = vmatprep.subr.mxu0 0.0
        %2124 = vmatpush1.msra.mxu0 %v2036
        %2125 = vmatprep.subr.mxu0 0.0
        %2126 = vmatpush1.msra.mxu0 %v2031
        %2127 = vmatprep.subr.mxu0 0.0
        %2128 = vmatpush1.msra.mxu0 %v2026
        %2129 = vmatprep.subr.mxu0 0.0
        %2130 = vmatpush2.msra.mxu0 0.0
        %2131 = vmatprep.subr.mxu0 0.0
        %2132 = vmatpush2.msra.mxu0 0.0
        %2133 = vmatprep.subr.mxu0 0.0
        %2134 = vmatpush2.msra.mxu0 0.0
        %2135 = vmatprep.subr.mxu0 0.0
        %2136 = vmatpush2.msra.mxu0 0.0
        %2137 = vmatprep.subr.mxu0 0.0
        %2138 = vmatpush2.msra.mxu0 0.0
        %2139 = vmatprep.subr.mxu0 0.0
        %2140 = vmatpush2.msra.mxu0 0.0
        %2141 = vmatprep.subr.mxu0 0.0
        %2142 = vmatpush2.msra.mxu0 0.0
        %2143 = vmatprep.subr.mxu0 0.0
        %2144 = vmatpush2.msra.mxu0 0.0
        %2145 = vmatprep.subr.mxu0 0.0
        %2146 = vmatpush2.msra.mxu0 0.0
        %2147 = vmatprep.subr.mxu0 0.0
        %2148 = vmatpush2.msra.mxu0 0.0
        %2149 = vmatprep.subr.mxu0 0.0
        %2150 = vmatpush2.msra.mxu0 0.0
        %2151 = vmatprep.subr.mxu0 0.0
        %2152 = vmatpush2.msra.mxu0 0.0
        %2153 = vmatprep.subr.mxu0 0.0
        %2154 = vmatpush2.msra.mxu0 0.0
        %2155 = vmatprep.subr.mxu0 0.0
        %2156 = vmatpush2.msra.mxu0 0.0
        %2157 = vmatprep.subr.mxu0 0.0
        %2158 = vmatpush2.msra.mxu0 0.0
        %2159 = vmatprep.subr.mxu0 0.0
        %2160 = vmatpush2.msra.mxu0 0.0
        %2161 = vmatprep.mubr.f32.mxu0 0.0
        %2162 = vmatmul.mubr.f32.gmra.mxu0 %v2074
        %v2163 = vpop.f32.mrf.mxu0
        %v2164 = vadd.f32 0.0, %v2163
        %v2165 = vpop.f32.mrf.mxu0
        %2166 = vmatprep.mubr.f32.mxu0 0.0
        %2167 = vmatmul.mubr.f32.gmra.mxu0 %v2077
        %v2168 = vpop.f32.mrf.mxu0
        %v2169 = vadd.f32 0.0, %v2168
        %v2170 = vpop.f32.mrf.mxu0
        %2171 = vmatprep.mubr.f32.mxu0 0.0
        %2172 = vmatmul.mubr.f32.gmra.mxu0 %v2080
        %v2173 = vpop.f32.mrf.mxu0
        %v2174 = vadd.f32 0.0, %v2173
        %v2175 = vpop.f32.mrf.mxu0
        %2176 = vmatprep.mubr.f32.mxu0 0.0
        %2177 = vmatmul.mubr.f32.gmra.mxu0 %v2083
        %v2178 = vpop.f32.mrf.mxu0
        %v2179 = vadd.f32 0.0, %v2178
        %v2180 = vpop.f32.mrf.mxu0
        %2181 = vmatprep.mubr.f32.mxu0 0.0
        %2182 = vmatmul.mubr.f32.gmra.mxu0 %v2086
        %v2183 = vpop.f32.mrf.mxu0
        %v2184 = vadd.f32 0.0, %v2183
        %v2185 = vpop.f32.mrf.mxu0
        %2186 = vmatprep.mubr.f32.mxu0 0.0
        %2187 = vmatmul.mubr.f32.gmra.mxu0 %v2089
        %v2188 = vpop.f32.mrf.mxu0
        %v2189 = vadd.f32 0.0, %v2188
        %v2190 = vpop.f32.mrf.mxu0
        %2191 = vmatprep.mubr.f32.mxu0 0.0
        %2192 = vmatmul.mubr.f32.gmra.mxu0 %v2092
        %v2193 = vpop.f32.mrf.mxu0
        %v2194 = vadd.f32 0.0, %v2193
        %v2195 = vpop.f32.mrf.mxu0
        %2196 = vmatprep.mubr.f32.mxu0 0.0
        %2197 = vmatmul.mubr.f32.gmra.mxu0 %v2095
        %v2198 = vpop.f32.mrf.mxu0
        %v2199 = vadd.f32 0.0, %v2198
        %v2200 = vpop.f32.mrf.mxu0
        %2201 = vdwg.mxu0
        %v2202 = vadd.f32 %v1918, %v2164
        %v2203 = vadd.f32 %v1919, %v2169
        %v2204 = vadd.f32 %v1920, %v2174
        %v2205 = vadd.f32 %v1921, %v2179
        %v2206 = vadd.f32 %v1922, %v2184
        %v2207 = vadd.f32 %v1923, %v2189
        %v2208 = vadd.f32 %v1924, %v2194
        %v2209 = vadd.f32 %v1925, %v2199
        %s2210 = scalar_lea.vmem %s1, 1792
        %v2211 = vld [vmem:[%s2210] sm:$0xff]
        %v2212 = vld [vmem:[%s2210 + $0x8] sm:$0xff]
        %v2213 = vld [vmem:[%s2210 + $0x10] sm:$0xff]
        %v2214 = vld [vmem:[%s2210 + $0x18] sm:$0xff]
        %v2215 = vld [vmem:[%s2210 + $0x20] sm:$0xff]
        %v2216 = vld [vmem:[%s2210 + $0x28] sm:$0xff]
        %v2217 = vld [vmem:[%s2210 + $0x30] sm:$0xff]
        %v2218 = vld [vmem:[%s2210 + $0x38] sm:$0xff]
        %v2219 = vld [vmem:[%s2210 + $0x40] sm:$0xff]
        %v2220 = vld [vmem:[%s2210 + $0x48] sm:$0xff]
        %v2221 = vld [vmem:[%s2210 + $0x50] sm:$0xff]
        %v2222 = vld [vmem:[%s2210 + $0x58] sm:$0xff]
        %v2223 = vld [vmem:[%s2210 + $0x60] sm:$0xff]
        %v2224 = vld [vmem:[%s2210 + $0x68] sm:$0xff]
        %v2225 = vld [vmem:[%s2210 + $0x70] sm:$0xff]
        %v2226 = vld [vmem:[%s2210 + $0x78] sm:$0xff]
        %v2227 = vld [vmem:[%s2210 + $0x80] sm:$0xff]
        %v2228 = vld [vmem:[%s2210 + $0x88] sm:$0xff]
        %v2229 = vld [vmem:[%s2210 + $0x90] sm:$0xff]
        %v2230 = vld [vmem:[%s2210 + $0x98] sm:$0xff]
        %v2231 = vld [vmem:[%s2210 + $0xa0] sm:$0xff]
        %v2232 = vld [vmem:[%s2210 + $0xa8] sm:$0xff]
        %v2233 = vld [vmem:[%s2210 + $0xb0] sm:$0xff]
        %v2234 = vld [vmem:[%s2210 + $0xb8] sm:$0xff]
        %v2235 = vld [vmem:[%s2210 + $0xc0] sm:$0xff]
        %v2236 = vld [vmem:[%s2210 + $0xc8] sm:$0xff]
        %v2237 = vld [vmem:[%s2210 + $0xd0] sm:$0xff]
        %v2238 = vld [vmem:[%s2210 + $0xd8] sm:$0xff]
        %v2239 = vld [vmem:[%s2210 + $0xe0] sm:$0xff]
        %v2240 = vld [vmem:[%s2210 + $0xe8] sm:$0xff]
        %v2241 = vld [vmem:[%s2210 + $0xf0] sm:$0xff]
        %v2242 = vld [vmem:[%s2210 + $0xf8] sm:$0xff]
        %2243 = vmatprep.subr.mxu0 0.0
        %2244 = vmatpush1.msra.mxu0 %v2226
        %2245 = vmatprep.subr.mxu0 0.0
        %2246 = vmatpush1.msra.mxu0 %v2225
        %2247 = vmatprep.subr.mxu0 0.0
        %2248 = vmatpush1.msra.mxu0 %v2224
        %2249 = vmatprep.subr.mxu0 0.0
        %2250 = vmatpush1.msra.mxu0 %v2223
        %2251 = vmatprep.subr.mxu0 0.0
        %2252 = vmatpush1.msra.mxu0 %v2222
        %2253 = vmatprep.subr.mxu0 0.0
        %2254 = vmatpush1.msra.mxu0 %v2221
        %2255 = vmatprep.subr.mxu0 0.0
        %2256 = vmatpush1.msra.mxu0 %v2220
        %2257 = vmatprep.subr.mxu0 0.0
        %2258 = vmatpush1.msra.mxu0 %v2219
        %2259 = vmatprep.subr.mxu0 0.0
        %2260 = vmatpush1.msra.mxu0 %v2218
        %2261 = vmatprep.subr.mxu0 0.0
        %2262 = vmatpush1.msra.mxu0 %v2217
        %2263 = vmatprep.subr.mxu0 0.0
        %2264 = vmatpush1.msra.mxu0 %v2216
        %2265 = vmatprep.subr.mxu0 0.0
        %2266 = vmatpush1.msra.mxu0 %v2215
        %2267 = vmatprep.subr.mxu0 0.0
        %2268 = vmatpush1.msra.mxu0 %v2214
        %2269 = vmatprep.subr.mxu0 0.0
        %2270 = vmatpush1.msra.mxu0 %v2213
        %2271 = vmatprep.subr.mxu0 0.0
        %2272 = vmatpush1.msra.mxu0 %v2212
        %2273 = vmatprep.subr.mxu0 0.0
        %2274 = vmatpush1.msra.mxu0 %v2211
        %2275 = vmatprep.subr.mxu0 0.0
        %2276 = vmatpush2.msra.mxu0 %v2242
        %2277 = vmatprep.subr.mxu0 0.0
        %2278 = vmatpush2.msra.mxu0 %v2241
        %2279 = vmatprep.subr.mxu0 0.0
        %2280 = vmatpush2.msra.mxu0 %v2240
        %2281 = vmatprep.subr.mxu0 0.0
        %2282 = vmatpush2.msra.mxu0 %v2239
        %2283 = vmatprep.subr.mxu0 0.0
        %2284 = vmatpush2.msra.mxu0 %v2238
        %2285 = vmatprep.subr.mxu0 0.0
        %2286 = vmatpush2.msra.mxu0 %v2237
        %2287 = vmatprep.subr.mxu0 0.0
        %2288 = vmatpush2.msra.mxu0 %v2236
        %2289 = vmatprep.subr.mxu0 0.0
        %2290 = vmatpush2.msra.mxu0 %v2235
        %2291 = vmatprep.subr.mxu0 0.0
        %2292 = vmatpush2.msra.mxu0 %v2234
        %2293 = vmatprep.subr.mxu0 0.0
        %2294 = vmatpush2.msra.mxu0 %v2233
        %2295 = vmatprep.subr.mxu0 0.0
        %2296 = vmatpush2.msra.mxu0 %v2232
        %2297 = vmatprep.subr.mxu0 0.0
        %2298 = vmatpush2.msra.mxu0 %v2231
        %2299 = vmatprep.subr.mxu0 0.0
        %2300 = vmatpush2.msra.mxu0 %v2230
        %2301 = vmatprep.subr.mxu0 0.0
        %2302 = vmatpush2.msra.mxu0 %v2229
        %2303 = vmatprep.subr.mxu0 0.0
        %2304 = vmatpush2.msra.mxu0 %v2228
        %2305 = vmatprep.subr.mxu0 0.0
        %2306 = vmatpush2.msra.mxu0 %v2227
        %2307 = vmatprep.mubr.f32.mxu0 %v224
        %2308 = vmatmul.mubr.f32.gmra.mxu0 %v223
        %v2309 = vpop.f32.mrf.mxu0
        %v2310 = vadd.f32 0.0, %v2309
        %v2311 = vpop.f32.mrf.mxu0
        %2312 = vmatprep.mubr.f32.mxu0 %v226
        %2313 = vmatmul.mubr.f32.gmra.mxu0 %v225
        %v2314 = vpop.f32.mrf.mxu0
        %v2315 = vadd.f32 0.0, %v2314
        %v2316 = vpop.f32.mrf.mxu0
        %2317 = vmatprep.mubr.f32.mxu0 %v228
        %2318 = vmatmul.mubr.f32.gmra.mxu0 %v227
        %v2319 = vpop.f32.mrf.mxu0
        %v2320 = vadd.f32 0.0, %v2319
        %v2321 = vpop.f32.mrf.mxu0
        %2322 = vmatprep.mubr.f32.mxu0 %v230
        %2323 = vmatmul.mubr.f32.gmra.mxu0 %v229
        %v2324 = vpop.f32.mrf.mxu0
        %v2325 = vadd.f32 0.0, %v2324
        %v2326 = vpop.f32.mrf.mxu0
        %2327 = vmatprep.mubr.f32.mxu0 %v232
        %2328 = vmatmul.mubr.f32.gmra.mxu0 %v231
        %v2329 = vpop.f32.mrf.mxu0
        %v2330 = vadd.f32 0.0, %v2329
        %v2331 = vpop.f32.mrf.mxu0
        %2332 = vmatprep.mubr.f32.mxu0 %v234
        %2333 = vmatmul.mubr.f32.gmra.mxu0 %v233
        %v2334 = vpop.f32.mrf.mxu0
        %v2335 = vadd.f32 0.0, %v2334
        %v2336 = vpop.f32.mrf.mxu0
        %2337 = vmatprep.mubr.f32.mxu0 %v236
        %2338 = vmatmul.mubr.f32.gmra.mxu0 %v235
        %v2339 = vpop.f32.mrf.mxu0
        %v2340 = vadd.f32 0.0, %v2339
        %v2341 = vpop.f32.mrf.mxu0
        %2342 = vmatprep.mubr.f32.mxu0 %v238
        %2343 = vmatmul.mubr.f32.gmra.mxu0 %v237
        %v2344 = vpop.f32.mrf.mxu0
        %v2345 = vadd.f32 0.0, %v2344
        %v2346 = vpop.f32.mrf.mxu0
        %2347 = vdwg.mxu0
        %s2348 = scalar_lea.vmem %s2, 448
        %v2349 = vld [vmem:[%s2348] sm:$0xff]
        %v2350 = vld [vmem:[%s2348 + $0x8] sm:$0xff]
        %v2351 = vld [vmem:[%s2348 + $0x10] sm:$0xff]
        %v2352 = vld [vmem:[%s2348 + $0x18] sm:$0xff]
        %v2353 = vld [vmem:[%s2348 + $0x20] sm:$0xff]
        %v2354 = vld [vmem:[%s2348 + $0x28] sm:$0xff]
        %v2355 = vld [vmem:[%s2348 + $0x30] sm:$0xff]
        %v2356 = vld [vmem:[%s2348 + $0x38] sm:$0xff]
        %v2358 = vsel %vm531, %v2349, 0
        %v2361 = vsel %vm531, %v2350, 0
        %v2364 = vsel %vm531, %v2351, 0
        %v2367 = vsel %vm531, %v2352, 0
        %v2370 = vsel %vm531, %v2353, 0
        %v2373 = vsel %vm531, %v2354, 0
        %v2376 = vsel %vm531, %v2355, 0
        %v2379 = vsel %vm531, %v2356, 0
        %2381 = vmatprep.subr.mxu0 0.0
        %2382 = vmatpush1.msra.mxu0 0.0
        %2383 = vmatprep.subr.mxu0 0.0
        %2384 = vmatpush1.msra.mxu0 0.0
        %2385 = vmatprep.subr.mxu0 0.0
        %2386 = vmatpush1.msra.mxu0 0.0
        %2387 = vmatprep.subr.mxu0 0.0
        %2388 = vmatpush1.msra.mxu0 0.0
        %2389 = vmatprep.subr.mxu0 0.0
        %2390 = vmatpush1.msra.mxu0 0.0
        %2391 = vmatprep.subr.mxu0 0.0
        %2392 = vmatpush1.msra.mxu0 0.0
        %2393 = vmatprep.subr.mxu0 0.0
        %2394 = vmatpush1.msra.mxu0 0.0
        %2395 = vmatprep.subr.mxu0 0.0
        %2396 = vmatpush1.msra.mxu0 0.0
        %2397 = vmatprep.subr.mxu0 0.0
        %2398 = vmatpush1.msra.mxu0 %v2345
        %2399 = vmatprep.subr.mxu0 0.0
        %2400 = vmatpush1.msra.mxu0 %v2340
        %2401 = vmatprep.subr.mxu0 0.0
        %2402 = vmatpush1.msra.mxu0 %v2335
        %2403 = vmatprep.subr.mxu0 0.0
        %2404 = vmatpush1.msra.mxu0 %v2330
        %2405 = vmatprep.subr.mxu0 0.0
        %2406 = vmatpush1.msra.mxu0 %v2325
        %2407 = vmatprep.subr.mxu0 0.0
        %2408 = vmatpush1.msra.mxu0 %v2320
        %2409 = vmatprep.subr.mxu0 0.0
        %2410 = vmatpush1.msra.mxu0 %v2315
        %2411 = vmatprep.subr.mxu0 0.0
        %2412 = vmatpush1.msra.mxu0 %v2310
        %2413 = vmatprep.subr.mxu0 0.0
        %2414 = vmatpush2.msra.mxu0 0.0
        %2415 = vmatprep.subr.mxu0 0.0
        %2416 = vmatpush2.msra.mxu0 0.0
        %2417 = vmatprep.subr.mxu0 0.0
        %2418 = vmatpush2.msra.mxu0 0.0
        %2419 = vmatprep.subr.mxu0 0.0
        %2420 = vmatpush2.msra.mxu0 0.0
        %2421 = vmatprep.subr.mxu0 0.0
        %2422 = vmatpush2.msra.mxu0 0.0
        %2423 = vmatprep.subr.mxu0 0.0
        %2424 = vmatpush2.msra.mxu0 0.0
        %2425 = vmatprep.subr.mxu0 0.0
        %2426 = vmatpush2.msra.mxu0 0.0
        %2427 = vmatprep.subr.mxu0 0.0
        %2428 = vmatpush2.msra.mxu0 0.0
        %2429 = vmatprep.subr.mxu0 0.0
        %2430 = vmatpush2.msra.mxu0 0.0
        %2431 = vmatprep.subr.mxu0 0.0
        %2432 = vmatpush2.msra.mxu0 0.0
        %2433 = vmatprep.subr.mxu0 0.0
        %2434 = vmatpush2.msra.mxu0 0.0
        %2435 = vmatprep.subr.mxu0 0.0
        %2436 = vmatpush2.msra.mxu0 0.0
        %2437 = vmatprep.subr.mxu0 0.0
        %2438 = vmatpush2.msra.mxu0 0.0
        %2439 = vmatprep.subr.mxu0 0.0
        %2440 = vmatpush2.msra.mxu0 0.0
        %2441 = vmatprep.subr.mxu0 0.0
        %2442 = vmatpush2.msra.mxu0 0.0
        %2443 = vmatprep.subr.mxu0 0.0
        %2444 = vmatpush2.msra.mxu0 0.0
        %2445 = vmatprep.mubr.f32.mxu0 0.0
        %2446 = vmatmul.mubr.f32.gmra.mxu0 %v2358
        %v2447 = vpop.f32.mrf.mxu0
        %v2448 = vadd.f32 0.0, %v2447
        %v2449 = vpop.f32.mrf.mxu0
        %2450 = vmatprep.mubr.f32.mxu0 0.0
        %2451 = vmatmul.mubr.f32.gmra.mxu0 %v2361
        %v2452 = vpop.f32.mrf.mxu0
        %v2453 = vadd.f32 0.0, %v2452
        %v2454 = vpop.f32.mrf.mxu0
        %2455 = vmatprep.mubr.f32.mxu0 0.0
        %2456 = vmatmul.mubr.f32.gmra.mxu0 %v2364
        %v2457 = vpop.f32.mrf.mxu0
        %v2458 = vadd.f32 0.0, %v2457
        %v2459 = vpop.f32.mrf.mxu0
        %2460 = vmatprep.mubr.f32.mxu0 0.0
        %2461 = vmatmul.mubr.f32.gmra.mxu0 %v2367
        %v2462 = vpop.f32.mrf.mxu0
        %v2463 = vadd.f32 0.0, %v2462
        %v2464 = vpop.f32.mrf.mxu0
        %2465 = vmatprep.mubr.f32.mxu0 0.0
        %2466 = vmatmul.mubr.f32.gmra.mxu0 %v2370
        %v2467 = vpop.f32.mrf.mxu0
        %v2468 = vadd.f32 0.0, %v2467
        %v2469 = vpop.f32.mrf.mxu0
        %2470 = vmatprep.mubr.f32.mxu0 0.0
        %2471 = vmatmul.mubr.f32.gmra.mxu0 %v2373
        %v2472 = vpop.f32.mrf.mxu0
        %v2473 = vadd.f32 0.0, %v2472
        %v2474 = vpop.f32.mrf.mxu0
        %2475 = vmatprep.mubr.f32.mxu0 0.0
        %2476 = vmatmul.mubr.f32.gmra.mxu0 %v2376
        %v2477 = vpop.f32.mrf.mxu0
        %v2478 = vadd.f32 0.0, %v2477
        %v2479 = vpop.f32.mrf.mxu0
        %2480 = vmatprep.mubr.f32.mxu0 0.0
        %2481 = vmatmul.mubr.f32.gmra.mxu0 %v2379
        %v2482 = vpop.f32.mrf.mxu0
        %v2483 = vadd.f32 0.0, %v2482
        %v2484 = vpop.f32.mrf.mxu0
        %2485 = vdwg.mxu0
        %v2486 = vadd.f32 %v2202, %v2448
        %v2487 = vadd.f32 %v2203, %v2453
        %v2488 = vadd.f32 %v2204, %v2458
        %v2489 = vadd.f32 %v2205, %v2463
        %v2490 = vadd.f32 %v2206, %v2468
        %v2491 = vadd.f32 %v2207, %v2473
        %v2492 = vadd.f32 %v2208, %v2478
        %v2493 = vadd.f32 %v2209, %v2483
        %s2494 = scalar_lea.vmem %s1, 2048
        %v2495 = vld [vmem:[%s2494] sm:$0xff]
        %v2496 = vld [vmem:[%s2494 + $0x8] sm:$0xff]
        %v2497 = vld [vmem:[%s2494 + $0x10] sm:$0xff]
        %v2498 = vld [vmem:[%s2494 + $0x18] sm:$0xff]
        %v2499 = vld [vmem:[%s2494 + $0x20] sm:$0xff]
        %v2500 = vld [vmem:[%s2494 + $0x28] sm:$0xff]
        %v2501 = vld [vmem:[%s2494 + $0x30] sm:$0xff]
        %v2502 = vld [vmem:[%s2494 + $0x38] sm:$0xff]
        %v2503 = vld [vmem:[%s2494 + $0x40] sm:$0xff]
        %v2504 = vld [vmem:[%s2494 + $0x48] sm:$0xff]
        %v2505 = vld [vmem:[%s2494 + $0x50] sm:$0xff]
        %v2506 = vld [vmem:[%s2494 + $0x58] sm:$0xff]
        %v2507 = vld [vmem:[%s2494 + $0x60] sm:$0xff]
        %v2508 = vld [vmem:[%s2494 + $0x68] sm:$0xff]
        %v2509 = vld [vmem:[%s2494 + $0x70] sm:$0xff]
        %v2510 = vld [vmem:[%s2494 + $0x78] sm:$0xff]
        %v2511 = vld [vmem:[%s2494 + $0x80] sm:$0xff]
        %v2512 = vld [vmem:[%s2494 + $0x88] sm:$0xff]
        %v2513 = vld [vmem:[%s2494 + $0x90] sm:$0xff]
        %v2514 = vld [vmem:[%s2494 + $0x98] sm:$0xff]
        %v2515 = vld [vmem:[%s2494 + $0xa0] sm:$0xff]
        %v2516 = vld [vmem:[%s2494 + $0xa8] sm:$0xff]
        %v2517 = vld [vmem:[%s2494 + $0xb0] sm:$0xff]
        %v2518 = vld [vmem:[%s2494 + $0xb8] sm:$0xff]
        %v2519 = vld [vmem:[%s2494 + $0xc0] sm:$0xff]
        %v2520 = vld [vmem:[%s2494 + $0xc8] sm:$0xff]
        %v2521 = vld [vmem:[%s2494 + $0xd0] sm:$0xff]
        %v2522 = vld [vmem:[%s2494 + $0xd8] sm:$0xff]
        %v2523 = vld [vmem:[%s2494 + $0xe0] sm:$0xff]
        %v2524 = vld [vmem:[%s2494 + $0xe8] sm:$0xff]
        %v2525 = vld [vmem:[%s2494 + $0xf0] sm:$0xff]
        %v2526 = vld [vmem:[%s2494 + $0xf8] sm:$0xff]
        %2527 = vmatprep.subr.mxu0 0.0
        %2528 = vmatpush1.msra.mxu0 %v2510
        %2529 = vmatprep.subr.mxu0 0.0
        %2530 = vmatpush1.msra.mxu0 %v2509
        %2531 = vmatprep.subr.mxu0 0.0
        %2532 = vmatpush1.msra.mxu0 %v2508
        %2533 = vmatprep.subr.mxu0 0.0
        %2534 = vmatpush1.msra.mxu0 %v2507
        %2535 = vmatprep.subr.mxu0 0.0
        %2536 = vmatpush1.msra.mxu0 %v2506
        %2537 = vmatprep.subr.mxu0 0.0
        %2538 = vmatpush1.msra.mxu0 %v2505
        %2539 = vmatprep.subr.mxu0 0.0
        %2540 = vmatpush1.msra.mxu0 %v2504
        %2541 = vmatprep.subr.mxu0 0.0
        %2542 = vmatpush1.msra.mxu0 %v2503
        %2543 = vmatprep.subr.mxu0 0.0
        %2544 = vmatpush1.msra.mxu0 %v2502
        %2545 = vmatprep.subr.mxu0 0.0
        %2546 = vmatpush1.msra.mxu0 %v2501
        %2547 = vmatprep.subr.mxu0 0.0
        %2548 = vmatpush1.msra.mxu0 %v2500
        %2549 = vmatprep.subr.mxu0 0.0
        %2550 = vmatpush1.msra.mxu0 %v2499
        %2551 = vmatprep.subr.mxu0 0.0
        %2552 = vmatpush1.msra.mxu0 %v2498
        %2553 = vmatprep.subr.mxu0 0.0
        %2554 = vmatpush1.msra.mxu0 %v2497
        %2555 = vmatprep.subr.mxu0 0.0
        %2556 = vmatpush1.msra.mxu0 %v2496
        %2557 = vmatprep.subr.mxu0 0.0
        %2558 = vmatpush1.msra.mxu0 %v2495
        %2559 = vmatprep.subr.mxu0 0.0
        %2560 = vmatpush2.msra.mxu0 %v2526
        %2561 = vmatprep.subr.mxu0 0.0
        %2562 = vmatpush2.msra.mxu0 %v2525
        %2563 = vmatprep.subr.mxu0 0.0
        %2564 = vmatpush2.msra.mxu0 %v2524
        %2565 = vmatprep.subr.mxu0 0.0
        %2566 = vmatpush2.msra.mxu0 %v2523
        %2567 = vmatprep.subr.mxu0 0.0
        %2568 = vmatpush2.msra.mxu0 %v2522
        %2569 = vmatprep.subr.mxu0 0.0
        %2570 = vmatpush2.msra.mxu0 %v2521
        %2571 = vmatprep.subr.mxu0 0.0
        %2572 = vmatpush2.msra.mxu0 %v2520
        %2573 = vmatprep.subr.mxu0 0.0
        %2574 = vmatpush2.msra.mxu0 %v2519
        %2575 = vmatprep.subr.mxu0 0.0
        %2576 = vmatpush2.msra.mxu0 %v2518
        %2577 = vmatprep.subr.mxu0 0.0
        %2578 = vmatpush2.msra.mxu0 %v2517
        %2579 = vmatprep.subr.mxu0 0.0
        %2580 = vmatpush2.msra.mxu0 %v2516
        %2581 = vmatprep.subr.mxu0 0.0
        %2582 = vmatpush2.msra.mxu0 %v2515
        %2583 = vmatprep.subr.mxu0 0.0
        %2584 = vmatpush2.msra.mxu0 %v2514
        %2585 = vmatprep.subr.mxu0 0.0
        %2586 = vmatpush2.msra.mxu0 %v2513
        %2587 = vmatprep.subr.mxu0 0.0
        %2588 = vmatpush2.msra.mxu0 %v2512
        %2589 = vmatprep.subr.mxu0 0.0
        %2590 = vmatpush2.msra.mxu0 %v2511
        %2591 = vmatprep.mubr.f32.mxu0 %v224
        %2592 = vmatmul.mubr.f32.gmra.mxu0 %v223
        %v2593 = vpop.f32.mrf.mxu0
        %v2594 = vadd.f32 0.0, %v2593
        %v2595 = vpop.f32.mrf.mxu0
        %2596 = vmatprep.mubr.f32.mxu0 %v226
        %2597 = vmatmul.mubr.f32.gmra.mxu0 %v225
        %v2598 = vpop.f32.mrf.mxu0
        %v2599 = vadd.f32 0.0, %v2598
        %v2600 = vpop.f32.mrf.mxu0
        %2601 = vmatprep.mubr.f32.mxu0 %v228
        %2602 = vmatmul.mubr.f32.gmra.mxu0 %v227
        %v2603 = vpop.f32.mrf.mxu0
        %v2604 = vadd.f32 0.0, %v2603
        %v2605 = vpop.f32.mrf.mxu0
        %2606 = vmatprep.mubr.f32.mxu0 %v230
        %2607 = vmatmul.mubr.f32.gmra.mxu0 %v229
        %v2608 = vpop.f32.mrf.mxu0
        %v2609 = vadd.f32 0.0, %v2608
        %v2610 = vpop.f32.mrf.mxu0
        %2611 = vmatprep.mubr.f32.mxu0 %v232
        %2612 = vmatmul.mubr.f32.gmra.mxu0 %v231
        %v2613 = vpop.f32.mrf.mxu0
        %v2614 = vadd.f32 0.0, %v2613
        %v2615 = vpop.f32.mrf.mxu0
        %2616 = vmatprep.mubr.f32.mxu0 %v234
        %2617 = vmatmul.mubr.f32.gmra.mxu0 %v233
        %v2618 = vpop.f32.mrf.mxu0
        %v2619 = vadd.f32 0.0, %v2618
        %v2620 = vpop.f32.mrf.mxu0
        %2621 = vmatprep.mubr.f32.mxu0 %v236
        %2622 = vmatmul.mubr.f32.gmra.mxu0 %v235
        %v2623 = vpop.f32.mrf.mxu0
        %v2624 = vadd.f32 0.0, %v2623
        %v2625 = vpop.f32.mrf.mxu0
        %2626 = vmatprep.mubr.f32.mxu0 %v238
        %2627 = vmatmul.mubr.f32.gmra.mxu0 %v237
        %v2628 = vpop.f32.mrf.mxu0
        %v2629 = vadd.f32 0.0, %v2628
        %v2630 = vpop.f32.mrf.mxu0
        %2631 = vdwg.mxu0
        %s2632 = scalar_lea.vmem %s2, 512
        %v2633 = vld [vmem:[%s2632] sm:$0xff]
        %v2634 = vld [vmem:[%s2632 + $0x8] sm:$0xff]
        %v2635 = vld [vmem:[%s2632 + $0x10] sm:$0xff]
        %v2636 = vld [vmem:[%s2632 + $0x18] sm:$0xff]
        %v2637 = vld [vmem:[%s2632 + $0x20] sm:$0xff]
        %v2638 = vld [vmem:[%s2632 + $0x28] sm:$0xff]
        %v2639 = vld [vmem:[%s2632 + $0x30] sm:$0xff]
        %v2640 = vld [vmem:[%s2632 + $0x38] sm:$0xff]
        %v2642 = vsel %vm531, %v2633, 0
        %v2645 = vsel %vm531, %v2634, 0
        %v2648 = vsel %vm531, %v2635, 0
        %v2651 = vsel %vm531, %v2636, 0
        %v2654 = vsel %vm531, %v2637, 0
        %v2657 = vsel %vm531, %v2638, 0
        %v2660 = vsel %vm531, %v2639, 0
        %v2663 = vsel %vm531, %v2640, 0
        %2665 = vmatprep.subr.mxu0 0.0
        %2666 = vmatpush1.msra.mxu0 0.0
        %2667 = vmatprep.subr.mxu0 0.0
        %2668 = vmatpush1.msra.mxu0 0.0
        %2669 = vmatprep.subr.mxu0 0.0
        %2670 = vmatpush1.msra.mxu0 0.0
        %2671 = vmatprep.subr.mxu0 0.0
        %2672 = vmatpush1.msra.mxu0 0.0
        %2673 = vmatprep.subr.mxu0 0.0
        %2674 = vmatpush1.msra.mxu0 0.0
        %2675 = vmatprep.subr.mxu0 0.0
        %2676 = vmatpush1.msra.mxu0 0.0
        %2677 = vmatprep.subr.mxu0 0.0
        %2678 = vmatpush1.msra.mxu0 0.0
        %2679 = vmatprep.subr.mxu0 0.0
        %2680 = vmatpush1.msra.mxu0 0.0
        %2681 = vmatprep.subr.mxu0 0.0
        %2682 = vmatpush1.msra.mxu0 %v2629
        %2683 = vmatprep.subr.mxu0 0.0
        %2684 = vmatpush1.msra.mxu0 %v2624
        %2685 = vmatprep.subr.mxu0 0.0
        %2686 = vmatpush1.msra.mxu0 %v2619
        %2687 = vmatprep.subr.mxu0 0.0
        %2688 = vmatpush1.msra.mxu0 %v2614
        %2689 = vmatprep.subr.mxu0 0.0
        %2690 = vmatpush1.msra.mxu0 %v2609
        %2691 = vmatprep.subr.mxu0 0.0
        %2692 = vmatpush1.msra.mxu0 %v2604
        %2693 = vmatprep.subr.mxu0 0.0
        %2694 = vmatpush1.msra.mxu0 %v2599
        %2695 = vmatprep.subr.mxu0 0.0
        %2696 = vmatpush1.msra.mxu0 %v2594
        %2697 = vmatprep.subr.mxu0 0.0
        %2698 = vmatpush2.msra.mxu0 0.0
        %2699 = vmatprep.subr.mxu0 0.0
        %2700 = vmatpush2.msra.mxu0 0.0
        %2701 = vmatprep.subr.mxu0 0.0
        %2702 = vmatpush2.msra.mxu0 0.0
        %2703 = vmatprep.subr.mxu0 0.0
        %2704 = vmatpush2.msra.mxu0 0.0
        %2705 = vmatprep.subr.mxu0 0.0
        %2706 = vmatpush2.msra.mxu0 0.0
        %2707 = vmatprep.subr.mxu0 0.0
        %2708 = vmatpush2.msra.mxu0 0.0
        %2709 = vmatprep.subr.mxu0 0.0
        %2710 = vmatpush2.msra.mxu0 0.0
        %2711 = vmatprep.subr.mxu0 0.0
        %2712 = vmatpush2.msra.mxu0 0.0
        %2713 = vmatprep.subr.mxu0 0.0
        %2714 = vmatpush2.msra.mxu0 0.0
        %2715 = vmatprep.subr.mxu0 0.0
        %2716 = vmatpush2.msra.mxu0 0.0
        %2717 = vmatprep.subr.mxu0 0.0
        %2718 = vmatpush2.msra.mxu0 0.0
        %2719 = vmatprep.subr.mxu0 0.0
        %2720 = vmatpush2.msra.mxu0 0.0
        %2721 = vmatprep.subr.mxu0 0.0
        %2722 = vmatpush2.msra.mxu0 0.0
        %2723 = vmatprep.subr.mxu0 0.0
        %2724 = vmatpush2.msra.mxu0 0.0
        %2725 = vmatprep.subr.mxu0 0.0
        %2726 = vmatpush2.msra.mxu0 0.0
        %2727 = vmatprep.subr.mxu0 0.0
        %2728 = vmatpush2.msra.mxu0 0.0
        %2729 = vmatprep.mubr.f32.mxu0 0.0
        %2730 = vmatmul.mubr.f32.gmra.mxu0 %v2642
        %v2731 = vpop.f32.mrf.mxu0
        %v2732 = vadd.f32 0.0, %v2731
        %v2733 = vpop.f32.mrf.mxu0
        %2734 = vmatprep.mubr.f32.mxu0 0.0
        %2735 = vmatmul.mubr.f32.gmra.mxu0 %v2645
        %v2736 = vpop.f32.mrf.mxu0
        %v2737 = vadd.f32 0.0, %v2736
        %v2738 = vpop.f32.mrf.mxu0
        %2739 = vmatprep.mubr.f32.mxu0 0.0
        %2740 = vmatmul.mubr.f32.gmra.mxu0 %v2648
        %v2741 = vpop.f32.mrf.mxu0
        %v2742 = vadd.f32 0.0, %v2741
        %v2743 = vpop.f32.mrf.mxu0
        %2744 = vmatprep.mubr.f32.mxu0 0.0
        %2745 = vmatmul.mubr.f32.gmra.mxu0 %v2651
        %v2746 = vpop.f32.mrf.mxu0
        %v2747 = vadd.f32 0.0, %v2746
        %v2748 = vpop.f32.mrf.mxu0
        %2749 = vmatprep.mubr.f32.mxu0 0.0
        %2750 = vmatmul.mubr.f32.gmra.mxu0 %v2654
        %v2751 = vpop.f32.mrf.mxu0
        %v2752 = vadd.f32 0.0, %v2751
        %v2753 = vpop.f32.mrf.mxu0
        %2754 = vmatprep.mubr.f32.mxu0 0.0
        %2755 = vmatmul.mubr.f32.gmra.mxu0 %v2657
        %v2756 = vpop.f32.mrf.mxu0
        %v2757 = vadd.f32 0.0, %v2756
        %v2758 = vpop.f32.mrf.mxu0
        %2759 = vmatprep.mubr.f32.mxu0 0.0
        %2760 = vmatmul.mubr.f32.gmra.mxu0 %v2660
        %v2761 = vpop.f32.mrf.mxu0
        %v2762 = vadd.f32 0.0, %v2761
        %v2763 = vpop.f32.mrf.mxu0
        %2764 = vmatprep.mubr.f32.mxu0 0.0
        %2765 = vmatmul.mubr.f32.gmra.mxu0 %v2663
        %v2766 = vpop.f32.mrf.mxu0
        %v2767 = vadd.f32 0.0, %v2766
        %v2768 = vpop.f32.mrf.mxu0
        %2769 = vdwg.mxu0
        %v2770 = vadd.f32 %v2486, %v2732
        %v2771 = vadd.f32 %v2487, %v2737
        %v2772 = vadd.f32 %v2488, %v2742
        %v2773 = vadd.f32 %v2489, %v2747
        %v2774 = vadd.f32 %v2490, %v2752
        %v2775 = vadd.f32 %v2491, %v2757
        %v2776 = vadd.f32 %v2492, %v2762
        %v2777 = vadd.f32 %v2493, %v2767
        %v2778 = vld [vmem:[%s3] sm:$0xff]
        %v2779 = vld [vmem:[%s3 + $0x8] sm:$0xff]
        %v2780 = vld [vmem:[%s3 + $0x10] sm:$0xff]
        %v2781 = vld [vmem:[%s3 + $0x18] sm:$0xff]
        %v2782 = vld [vmem:[%s3 + $0x20] sm:$0xff]
        %v2783 = vld [vmem:[%s3 + $0x28] sm:$0xff]
        %v2784 = vld [vmem:[%s3 + $0x30] sm:$0xff]
        %v2785 = vld [vmem:[%s3 + $0x38] sm:$0xff]
        %2787 = vset.pattern.permute.xlu0 0
        %2788 = vperm.xlu0 %2787, %v2778
        %v2789 = vpop.permute.xlu0 %2788
        %2792 = vset.pattern.permute.xlu0 0
        %2793 = vperm.xlu0 %2792, %v2779
        %v2794 = vpop.permute.xlu0 %2793
        %2797 = vset.pattern.permute.xlu0 0
        %2798 = vperm.xlu0 %2797, %v2780
        %v2799 = vpop.permute.xlu0 %2798
        %2802 = vset.pattern.permute.xlu0 0
        %2803 = vperm.xlu0 %2802, %v2781
        %v2804 = vpop.permute.xlu0 %2803
        %2807 = vset.pattern.permute.xlu0 0
        %2808 = vperm.xlu0 %2807, %v2782
        %v2809 = vpop.permute.xlu0 %2808
        %2812 = vset.pattern.permute.xlu0 0
        %2813 = vperm.xlu0 %2812, %v2783
        %v2814 = vpop.permute.xlu0 %2813
        %2817 = vset.pattern.permute.xlu0 0
        %2818 = vperm.xlu0 %2817, %v2784
        %v2819 = vpop.permute.xlu0 %2818
        %2822 = vset.pattern.permute.xlu0 0
        %2823 = vperm.xlu0 %2822, %v2785
        %v2824 = vpop.permute.xlu0 %2823
        %v2826 = vmul.f32 %v2770, %v2789
        %v2827 = vmul.f32 %v2771, %v2794
        %v2828 = vmul.f32 %v2772, %v2799
        %v2829 = vmul.f32 %v2773, %v2804
        %v2830 = vmul.f32 %v2774, %v2809
        %v2831 = vmul.f32 %v2775, %v2814
        %v2832 = vmul.f32 %v2776, %v2819
        %v2833 = vmul.f32 %v2777, %v2824
        %v2834 = vld [vmem:[%s4] sm:$0xff]
        %v2835 = vld [vmem:[%s4 + $0x8] sm:$0xff]
        %v2836 = vld [vmem:[%s4 + $0x10] sm:$0xff]
        %v2837 = vld [vmem:[%s4 + $0x18] sm:$0xff]
        %v2838 = vld [vmem:[%s4 + $0x20] sm:$0xff]
        %v2839 = vld [vmem:[%s4 + $0x28] sm:$0xff]
        %v2840 = vld [vmem:[%s4 + $0x30] sm:$0xff]
        %v2841 = vld [vmem:[%s4 + $0x38] sm:$0xff]
        %2843 = vset.pattern.permute.xlu0 0
        %2844 = vperm.xlu0 %2843, %v2834
        %v2845 = vpop.permute.xlu0 %2844
        %2848 = vset.pattern.permute.xlu0 0
        %2849 = vperm.xlu0 %2848, %v2835
        %v2850 = vpop.permute.xlu0 %2849
        %2853 = vset.pattern.permute.xlu0 0
        %2854 = vperm.xlu0 %2853, %v2836
        %v2855 = vpop.permute.xlu0 %2854
        %2858 = vset.pattern.permute.xlu0 0
        %2859 = vperm.xlu0 %2858, %v2837
        %v2860 = vpop.permute.xlu0 %2859
        %2863 = vset.pattern.permute.xlu0 0
        %2864 = vperm.xlu0 %2863, %v2838
        %v2865 = vpop.permute.xlu0 %2864
        %2868 = vset.pattern.permute.xlu0 0
        %2869 = vperm.xlu0 %2868, %v2839
        %v2870 = vpop.permute.xlu0 %2869
        %2873 = vset.pattern.permute.xlu0 0
        %2874 = vperm.xlu0 %2873, %v2840
        %v2875 = vpop.permute.xlu0 %2874
        %2878 = vset.pattern.permute.xlu0 0
        %2879 = vperm.xlu0 %2878, %v2841
        %v2880 = vpop.permute.xlu0 %2879
        %v2882 = vadd.f32 %v2826, %v2845
        %v2883 = vadd.f32 %v2827, %v2850
        %v2884 = vadd.f32 %v2828, %v2855
        %v2885 = vadd.f32 %v2829, %v2860
        %v2886 = vadd.f32 %v2830, %v2865
        %v2887 = vadd.f32 %v2831, %v2870
        %v2888 = vadd.f32 %v2832, %v2875
        %v2889 = vadd.f32 %v2833, %v2880
        %2890 = vst.msk [vmem:[%s217] sm:$0xff] %vm531, %v2882
        %2891 = vst.msk [vmem:[%s217 + $0x8] sm:$0xff] %vm531, %v2883
        %2892 = vst.msk [vmem:[%s217 + $0x10] sm:$0xff] %vm531, %v2884
        %2893 = vst.msk [vmem:[%s217 + $0x18] sm:$0xff] %vm531, %v2885
        %2894 = vst.msk [vmem:[%s217 + $0x20] sm:$0xff] %vm531, %v2886
        %2895 = vst.msk [vmem:[%s217 + $0x28] sm:$0xff] %vm531, %v2887
        %2896 = vst.msk [vmem:[%s217 + $0x30] sm:$0xff] %vm531, %v2888
        %2897 = vst.msk [vmem:[%s217 + $0x38] sm:$0xff] %vm531, %v2889
        %s2898 = sand.u32 %s137, 1
        %s2899 = scalar_lea.sflag [#allocation3], %s2898
        %s2900 = sand.u32 %s137, 1
        %s2901 = smul.addr %s2900, 64
        %s2902 = scalar_lea.vmem [#allocation2], %s2901
        // Predicated region
        $region41: #{tpu_custom_call.1} parent=39 // pred_check
          %p2903 = pneg %p147
        $region42: #{tpu_custom_call.1} parent=39 // pred_check_branch
          %2905 = sbr.rel (%p2903) target = $region44
        $region43: #{tpu_custom_call.1} parent=39 // pred_region
          %s2907 = ssub.s32 1024, 1024
          %2908 = vsyncadd %s2899, %s2907
          %s2909 = smul.addr %s19, 8
          %s2910 = smul.addr %s2909, 128
          %s2911 = scalar_lea.hbm %s5, %s2910
          %s2912 = sshll.u32 %s2902, 4
          %s2913 = int_to_ptr.vmem [resolvable:$true] %s2912
          %2918 = dma.vmem_to_hbm [thread:$0]  %s2913, 1024, %s2911, %s2899, 128, 128, 8
        $region44: #{tpu_custom_call.1} parent=39 // pred_fallthru
          _
      $region40: #{tpu_custom_call.1} parent=5 // pred_fallthru
        _
      %p2919 = scmp.le.s32.totalorder 2, %s14
      // Predicated region
      $region45: #{tpu_custom_call.1} parent=5 // pred_check
        %p2920 = pneg %p2919
      $region46: #{tpu_custom_call.1} parent=5 // pred_check_branch
        %2922 = sbr.rel (%p2920) target = $region48
      $region47: #{tpu_custom_call.1} parent=5 // pred_region
        %s2923 = ssub.s32 %s14, 2
        // Predicated region
        $region49: #{tpu_custom_call.1} parent=47 // pred_check
          %p2924 = pneg %p153
        $region50: #{tpu_custom_call.1} parent=47 // pred_check_branch
          %2926 = sbr.rel (%p2924) target = $region52
        $region51: #{tpu_custom_call.1} parent=47 // pred_region
          %s2927 = sand.u32 %s138, 1
          %s2928 = scalar_lea.sflag [#allocation3], %s2927
          %s2929 = sand.u32 %s138, 1
          %s2930 = smul.addr %s2929, 64
          %s2931 = scalar_lea.vmem [#allocation2], %s2930
          %2932 = dma.done %s2928, 1024
        $region52: #{tpu_custom_call.1} parent=47 // pred_fallthru
          _
      $region48: #{tpu_custom_call.1} parent=5 // pred_fallthru
        _
    $region6: #{tpu_custom_call.1} parent=1 // loop_footer
      %s18 = sadd.s32 1, %s14
    $region7: #{tpu_custom_call.1} parent=1 // loop_footer_branch
      %13 = sbr.rel target = $region3
    $region8: #{tpu_custom_call.1} parent=1 // loop_exit
      _
    %2933 = vsyncpa [#allocation3], 1
    %s2934 = scalar_lea.sflag [#allocation3], 1
    %2935 = vsyncpa %s2934, 1

</llo_original>
